<compile_context>
chip_gen: v7x
topology: tpu7x:2x2x1
jax: 0.10.0
libtpu: 0.0.40
codegen_flags: <defaults>
</compile_context>

<pallas_src>
import jax
import jax.numpy as jnp
from jax import lax
from jax.experimental import pallas as pl
from jax.experimental.pallas import tpu as pltpu


# ----------------------------------------------------------------------------
# Kernel 1: bidirectional LSTM recurrence. grid = (D,), one step per
# (sequence, direction) pair; even grid indices run forward in time, odd ones
# backward. The whole time loop lives inside the kernel (lax.fori_loop), state
# is carried in registers, and outputs are stored in natural time order.
#   lens : (D,) int32 SMEM   -- valid sequence length per grid element
#   xp   : (D, Lmax, B, 4H)  -- x @ W_ih + (b_ih + b_hh), time-padded to Lmax
#   whh  : (D, H, 4H)        -- recurrent weights, gate order (i, f, g, o)
# ----------------------------------------------------------------------------
def lstm_seq_kernel(len_ref, xp_ref, whh_ref, out_ref):
    d_idx = pl.program_id(0)
    L = len_ref[d_idx]                      # dynamic scalar from SMEM
    Lmax, B, H4 = xp_ref.shape
    Hd = H4 // 4
    is_bwd = d_idx % 2                      # even = forward, odd = backward
    whh = whh_ref[...]                      # (H, 4H), hoisted out of the loop

    def step(t, carry):
        h, c = carry                        # (B, H) each, register-resident
        # forward: t ; backward: L-1-t (clamped; padded steps are frozen, so
        # the clamped rewrite of position 0 stores an identical value).
        t_eff = jnp.where(is_bwd == 1, jnp.maximum(L - 1 - t, 0), t)
        # Single fused-gate matmul + hoisted input projection.
        gates = xp_ref[t_eff] + jnp.dot(h, whh,
                                        preferred_element_type=jnp.float32)
        # TODO(synk): at real sizes make H a multiple of 128 so these lane
        #             slices are free vreg views.
        i_g = jax.nn.sigmoid(gates[:, 0:Hd])
        f_g = jax.nn.sigmoid(gates[:, Hd:2 * Hd])
        g_g = jnp.tanh(gates[:, 2 * Hd:3 * Hd])
        o_g = jax.nn.sigmoid(gates[:, 3 * Hd:4 * Hd])
        c_new = f_g * c + i_g * g_g
        h_new = o_g * jnp.tanh(c_new)
        valid = t < L                       # mask padded steps (fused-pair case)
        h_new = jnp.where(valid, h_new, h)
        c_new = jnp.where(valid, c_new, c)
        out_ref[t_eff] = h_new              # VMEM store, natural time order
        return h_new, c_new

    zeros = jnp.zeros((B, Hd), jnp.float32)
    lax.fori_loop(0, Lmax, step, (zeros, zeros))


def _lstm_pallas(lens, xp, whh):
    D, Lmax, B, H4 = xp.shape
    Hd = H4 // 4
    return pl.pallas_call(
        lstm_seq_kernel,
        out_shape=jax.ShapeDtypeStruct((D, Lmax, B, Hd), jnp.float32),
        grid=(D,),
        in_specs=[
            pl.BlockSpec(memory_space=pltpu.SMEM),                 # lengths
            pl.BlockSpec((None, Lmax, B, H4), lambda d: (d, 0, 0, 0)),
            pl.BlockSpec((None, Hd, H4), lambda d: (d, 0, 0)),
        ],
        out_specs=pl.BlockSpec((None, Lmax, B, Hd), lambda d: (d, 0, 0, 0)),
        compiler_params=pltpu.CompilerParams(
            dimension_semantics=("parallel",)),
    )(lens, xp, whh)


def _input_proj(x, lp):
    # Hoisted input projection: one large XLA matmul for both directions and
    # all timesteps, bias (b_ih + b_hh) folded in. Default MXU precision.
    return (jnp.einsum("tbi,dih->dtbh", x, lp["w_ih"],
                       preferred_element_type=jnp.float32)
            + lp["b"][:, None, None, :])                     # (2, T, B, 4H)


def _bilstm_single_layer(x, lp):
    T = x.shape[0]
    xp = _input_proj(x, lp)                                  # (2, T, B, 4H)
    lens = jnp.full((2,), T, jnp.int32)
    h = _lstm_pallas(lens, xp, lp["w_hh"])                   # (2, T, B, H)
    return jnp.concatenate([h[0], h[1]], axis=-1)            # (T, B, 2H)


def bilstm(x, layers):
    out = x
    for lp in layers:
        out = _bilstm_single_layer(out, lp)
    return out


def _bilstm_pair_layer(x1, x2, lp1, lp2):
    """Fused ctx+qry layer: one pallas_call, 4-long parallel grid."""
    T, J = x1.shape[0], x2.shape[0]
    Lmax = max(T, J)
    xp1 = _input_proj(x1, lp1)
    xp2 = _input_proj(x2, lp2)
    xp1 = jnp.pad(xp1, ((0, 0), (0, Lmax - T), (0, 0), (0, 0)))
    xp2 = jnp.pad(xp2, ((0, 0), (0, Lmax - J), (0, 0), (0, 0)))
    xp = jnp.concatenate([xp1, xp2], axis=0)                 # (4, Lmax, B, 4H)
    whh = jnp.concatenate([lp1["w_hh"], lp2["w_hh"]], axis=0)  # (4, H, 4H)
    lens = jnp.array([T, T, J, J], jnp.int32)
    h = _lstm_pallas(lens, xp, whh)                          # (4, Lmax, B, H)
    out1 = jnp.concatenate([h[0, :T], h[1, :T]], axis=-1)    # (T, B, 2H)
    out2 = jnp.concatenate([h[2, :J], h[3, :J]], axis=-1)    # (J, B, 2H)
    return out1, out2


def bilstm_pair(x1, x2, layers1, layers2):
    for lp1, lp2 in zip(layers1, layers2):
        x1, x2 = _bilstm_pair_layer(x1, x2, lp1, lp2)
    return x1, x2


# ----------------------------------------------------------------------------
# Kernel 2: per-batch attention flow + att_model1. For each batch element:
#   S[t,j]   = att_model(cat[H_t, U_j, H_t*U_j])
#   a        = softmax_j(S)
#   U~[t]    = sum_j a[t,j] U_j
#   bmax[t]  = max_j S[t,j]            (NOT softmaxed, as in source)
#   h~       = sum_t bmax[t] H_t
#   G[t]     = att_model1(cat[H_t, U~[t], H_t*U~[t], H_t*h~])
# att_model weight passed split as (3, 1, 2d) = (wH, wU, wHU); att_model1
# weight passed pre-split as (4, 2d, 8d) so the four pieces accumulate into
# one f32 result without a lane-offset concat.
# ----------------------------------------------------------------------------
def attention_G_kernel(batt_ref, h_ref, u_ref, watt_ref, w1_ref, b1_ref, g_ref):
    Hb = h_ref[0]          # (T, 2d)
    Ub = u_ref[0]          # (J, 2d)
    wH = watt_ref[0]       # (1, 2d)
    wU = watt_ref[1]
    wHU = watt_ref[2]

    dn = (((1,), (1,)), ((), ()))  # contract last dims, no batch dims
    sH = lax.dot_general(Hb, wH, dn, preferred_element_type=jnp.float32)          # (T, 1)
    sU = lax.dot_general(wU, Ub, dn, preferred_element_type=jnp.float32)          # (1, J)
    core = lax.dot_general(Hb * wHU, Ub, dn, preferred_element_type=jnp.float32)  # (T, J)
    S = sH + sU + core + batt_ref[0]                                              # (T, J)

    a = jax.nn.softmax(S, axis=-1)                                                # (T, J)
    Utl = jnp.dot(a, Ub, preferred_element_type=jnp.float32)                      # (T, 2d)
    bmax = jnp.max(S, axis=-1, keepdims=True)                                     # (T, 1)
    htl = jnp.sum(bmax * Hb, axis=0, keepdims=True)                               # (1, 2d)

    # att_model1 as four accumulated (T,2d)x(2d,8d) MXU matmuls (no concat).
    g = jnp.dot(Hb, w1_ref[0], preferred_element_type=jnp.float32)
    g = g + jnp.dot(Utl, w1_ref[1], preferred_element_type=jnp.float32)
    g = g + jnp.dot(Hb * Utl, w1_ref[2], preferred_element_type=jnp.float32)
    g = g + jnp.dot(Hb * htl, w1_ref[3], preferred_element_type=jnp.float32)
    g_ref[0] = g + b1_ref[...]                                                    # (T, 8d)


def attention_G(Hb, Ub, b_att, watt, w1, b1):
    B, T, d2 = Hb.shape
    J = Ub.shape[1]
    d8 = w1.shape[-1]
    return pl.pallas_call(
        attention_G_kernel,
        out_shape=jax.ShapeDtypeStruct((B, T, d8), jnp.float32),
        grid=(B,),
        in_specs=[
            pl.BlockSpec(memory_space=pltpu.SMEM),            # b_att scalar
            pl.BlockSpec((1, T, d2), lambda b: (b, 0, 0)),
            pl.BlockSpec((1, J, d2), lambda b: (b, 0, 0)),
            pl.BlockSpec((3, 1, d2), lambda b: (0, 0, 0)),    # index-invariant
            pl.BlockSpec((4, d2, d8), lambda b: (0, 0, 0)),   # index-invariant
            pl.BlockSpec((1, d8), lambda b: (0, 0)),
        ],
        out_specs=pl.BlockSpec((1, T, d8), lambda b: (b, 0, 0)),
        compiler_params=pltpu.CompilerParams(dimension_semantics=("parallel",)),
    )(b_att, Hb, Ub, watt, w1, b1)


# ----------------------------------------------------------------------------
# Kernel 3: output projections (MXU matmuls instead of cross-lane reductions)
# + softmax over the batch axis (dim=1, as in the original code).
#   wg : (8d, 2)  columns = [out_layer_1 G-part, out_layer_2 G-part]
#   wm1: (2d, 1)  out_layer_1 M-part ;  wm2: (2d, 1)  out_layer_2 M-part
#   bias: (2,) SMEM = [b_o1, b_o2]
# TODO(synk): at real sizes flatten to (T*B, .) 2-D matmuls and tile over T.
# ----------------------------------------------------------------------------
def output_kernel(bias_ref, g_ref, m1_ref, m2_ref, wg_ref, wm1_ref, wm2_ref,
                  p1_ref, p2_ref):
    G = g_ref[...]     # (T, B, 8d)
    M1 = m1_ref[...]   # (T, B, 2d)
    M2 = m2_ref[...]   # (T, B, 2d)
    B = G.shape[1]
    wg = wg_ref[...]
    wm1 = wm1_ref[...]
    wm2 = wm2_ref[...]
    p1_cols, p2_cols = [], []
    for b in range(B):  # static unroll over the (small) batch
        pG = jnp.dot(G[:, b, :], wg, preferred_element_type=jnp.float32)    # (T, 2)
        pm1 = jnp.dot(M1[:, b, :], wm1, preferred_element_type=jnp.float32)  # (T, 1)
        pm2 = jnp.dot(M2[:, b, :], wm2, preferred_element_type=jnp.float32)  # (T, 1)
        p1_cols.append(pG[:, 0:1] + pm1)
        p2_cols.append(pG[:, 1:2] + pm2)
    p1 = jnp.concatenate(p1_cols, axis=1) + bias_ref[0]      # (T, B)
    p2 = jnp.concatenate(p2_cols, axis=1) + bias_ref[1]      # (T, B)
    p1_ref[...] = jax.nn.softmax(p1, axis=1)                 # batch-axis softmax (faithful)
    p2_ref[...] = jax.nn.softmax(p2, axis=1)


def output_layers(G, M1, M2, wg, wm1, wm2, bias):
    T, B, d8 = G.shape
    d2 = M1.shape[-1]
    return pl.pallas_call(
        output_kernel,
        out_shape=(jax.ShapeDtypeStruct((T, B), jnp.float32),
                   jax.ShapeDtypeStruct((T, B), jnp.float32)),
        grid=(1,),
        in_specs=[
            pl.BlockSpec(memory_space=pltpu.SMEM),            # [b_o1, b_o2]
            pl.BlockSpec((T, B, d8), lambda i: (0, 0, 0)),
            pl.BlockSpec((T, B, d2), lambda i: (0, 0, 0)),
            pl.BlockSpec((T, B, d2), lambda i: (0, 0, 0)),
            pl.BlockSpec((d8, 2), lambda i: (0, 0)),
            pl.BlockSpec((d2, 1), lambda i: (0, 0)),
            pl.BlockSpec((d2, 1), lambda i: (0, 0)),
        ],
        out_specs=(pl.BlockSpec((T, B), lambda i: (0, 0)),
                   pl.BlockSpec((T, B), lambda i: (0, 0))),
    )(bias, G, M1, M2, wg, wm1, wm2)


# ----------------------------------------------------------------------------
# Parameter init (deterministic, PyTorch-style uniform ranges).
# ----------------------------------------------------------------------------
def _uniform(key, shape, k):
    return jax.random.uniform(key, shape, jnp.float32, -k, k)


def init_params(key, input_size, d, num_layers):
    keys = iter(jax.random.split(key, 64))
    k_lstm = 1.0 / (d ** 0.5)

    def lstm_dir_params(in_size):
        w_ih = _uniform(next(keys), (4 * d, in_size), k_lstm)   # torch (4H, In)
        w_hh = _uniform(next(keys), (4 * d, d), k_lstm)         # torch (4H, H)
        b_ih = _uniform(next(keys), (4 * d,), k_lstm)
        b_hh = _uniform(next(keys), (4 * d,), k_lstm)
        # Pre-transpose so gates are fused along the output (lane) dim.
        return w_ih.T, w_hh.T, b_ih + b_hh                      # (In,4H),(H,4H),(4H,)

    def bilstm_params(in_size):
        layers = []
        cur = in_size
        for _ in range(num_layers):
            fw = lstm_dir_params(cur)
            bw = lstm_dir_params(cur)
            layers.append(dict(
                w_ih=jnp.stack([fw[0], bw[0]]),   # (2, In, 4H)
                w_hh=jnp.stack([fw[1], bw[1]]),   # (2, H, 4H)
                b=jnp.stack([fw[2], bw[2]]),      # (2, 4H)
            ))
            cur = 2 * d
        return layers

    p = {}
    p["ctx"] = bilstm_params(input_size)       # bilstm_context
    p["qry"] = bilstm_params(input_size)       # bilstm_query
    p["lstm2"] = bilstm_params(8 * d)          # bi_lstm2
    p["lstm3"] = bilstm_params(2 * d)          # bi_lstm3

    # att_model: Linear(6d -> 1)
    k6 = 1.0 / ((6 * d) ** 0.5)
    w_att = _uniform(next(keys), (1, 6 * d), k6)
    b_att = _uniform(next(keys), (1,), k6)
    p["w_att"] = w_att.reshape(3, 2 * d)[:, None, :]   # (3, 1, 2d): wH, wU, wHU
    p["b_att"] = b_att                                 # (1,) -> SMEM scalar

    # att_model1: Linear(8d -> 8d), pre-transposed & split along the input axis.
    k8 = 1.0 / ((8 * d) ** 0.5)
    w1 = _uniform(next(keys), (8 * d, 8 * d), k8)
    b1 = _uniform(next(keys), (8 * d,), k8)
    p["w1"] = w1.T.reshape(4, 2 * d, 8 * d)            # (4, 2d, 8d)
    p["b1"] = b1.reshape(1, 8 * d)

    # out_layer_1 / out_layer_2: Linear(10d -> 1)
    k10 = 1.0 / ((10 * d) ** 0.5)
    w_o1 = _uniform(next(keys), (1, 10 * d), k10)
    b_o1 = _uniform(next(keys), (1,), k10)
    w_o2 = _uniform(next(keys), (1, 10 * d), k10)
    b_o2 = _uniform(next(keys), (1,), k10)
    p["wg_out"] = jnp.stack([w_o1[0, :8 * d], w_o2[0, :8 * d]], axis=1)  # (8d, 2)
    p["wm1_out"] = w_o1[0, 8 * d:].reshape(2 * d, 1)                     # (2d, 1)
    p["wm2_out"] = w_o2[0, 8 * d:].reshape(2 * d, 1)                     # (2d, 1)
    p["b_out"] = jnp.concatenate([b_o1, b_o2])                           # (2,)
    return p


# ----------------------------------------------------------------------------
# Full forward pass (glue in plain JAX, hot paths in Pallas kernels above).
# ----------------------------------------------------------------------------
@jax.jit
def bidaf_forward(X, Q, params):
    T, B, _ = X.shape
    d = params["w_att"].shape[-1] // 2  # hidden_size

    # Fused context+query BiLSTMs: single pallas_call, 4-long parallel grid.
    H, U = bilstm_pair(X, Q, params["ctx"], params["qry"])   # (T,B,2d), (J,B,2d)

    Hb = jnp.transpose(H, (1, 0, 2))   # (B, T, 2d)
    Ub = jnp.transpose(U, (1, 0, 2))   # (B, J, 2d)

    Gk = attention_G(Hb, Ub, params["b_att"], params["w_att"],
                     params["w1"], params["b1"])             # (B, T, 8d)

    # Reproduce original: G has shape (8d, B, T), then G.view([T, B, 8d])
    # (raw row-major memory reinterpretation, not a transpose).
    G_raw = jnp.transpose(Gk, (2, 0, 1))                     # (8d, B, T)
    G_view = G_raw.reshape(T, B, 8 * d)                      # (T, B, 8d)

    M1 = bilstm(G_view, params["lstm2"])                     # (T, B, 2d)
    M2 = bilstm(M1, params["lstm3"])                         # (T, B, 2d)

    p1, p2 = output_layers(
        G_view, M1, M2,
        params["wg_out"], params["wm1_out"], params["wm2_out"], params["b_out"])
    return p1, p2


if __name__ == "__main__":
    input_size = 16
    hidden_size = 8     # d
    num_layers = 1
    batch_size = 2
    T, J = 6, 5

    key = jax.random.PRNGKey(0)
    k_params, k_x, k_q = jax.random.split(key, 3)
    params = init_params(k_params, input_size, hidden_size, num_layers)

    X = jax.random.normal(k_x, (T, batch_size, input_size), jnp.float32)
    Q = jax.random.normal(k_q, (J, batch_size, input_size), jnp.float32)

    p1, p2 = bidaf_forward(X, Q, params)
    jax.block_until_ready((p1, p2))

    assert p1.shape == (T, batch_size) and p2.shape == (T, batch_size)
    assert bool(jnp.all(jnp.isfinite(p1))) and bool(jnp.all(jnp.isfinite(p2)))
    # rows sum to 1 along the (buggy-but-faithful) batch softmax axis
    assert bool(jnp.allclose(jnp.sum(p1, axis=1), 1.0, atol=1e-5))
    assert bool(jnp.allclose(jnp.sum(p2, axis=1), 1.0, atol=1e-5))
    print("KERNEL_OK")
</pallas_src>

<mosaic_0001>
module attributes {stable_mosaic.version = 11 : i64} {
  func.func @lstm_seq_kernel(%arg0: i32, %arg1: memref<4xi32, #tpu.memory_space<smem>>, %arg2: memref<1x6x2x32xf32, #tpu.memory_space<vmem>>, %arg3: memref<1x8x32xf32, #tpu.memory_space<vmem>>, %arg4: memref<1x6x2x8xf32, #tpu.memory_space<vmem>>) attributes {dimension_semantics = [#tpu.dimension_semantics<parallel>], iteration_bounds = array<i64: 4>, scalar_prefetch = 0 : i64, scratch_operands = 0 : i64, tpu.core_type = #tpu.core_type<tc>, window_params = [{transform_indices = @transform_0, window_bounds = array<i64: 4>}, {transform_indices = @transform_1, window_bounds = array<i64: 1, 6, 2, 32>}, {transform_indices = @transform_2, window_bounds = array<i64: 1, 8, 32>}, {transform_indices = @transform_3, window_bounds = array<i64: 1, 6, 2, 8>}]} {
    %0 = arith.index_cast %arg0 : i32 to index
    %1 = memref.load %arg1[%0] : memref<4xi32, #tpu.memory_space<smem>>
    %c2_i32 = arith.constant 2 : i32
    %c0_i32 = arith.constant 0 : i32
    %2 = arith.cmpi eq, %c2_i32, %c0_i32 : i32
    %c1_i32 = arith.constant 1 : i32
    %3 = arith.select %2, %c1_i32, %c2_i32 : i32
    %4 = arith.remsi %arg0, %3 : i32
    %c0_i32_0 = arith.constant 0 : i32
    %5 = arith.cmpi ne, %4, %c0_i32_0 : i32
    %c0_i32_1 = arith.constant 0 : i32
    %6 = arith.cmpi slt, %4, %c0_i32_1 : i32
    %c0_i32_2 = arith.constant 0 : i32
    %7 = arith.cmpi slt, %3, %c0_i32_2 : i32
    %8 = arith.xori %6, %7 : i1
    %9 = arith.andi %8, %5 : i1
    %10 = arith.addi %4, %3 : i32
    %11 = arith.select %9, %10, %4 : i32
    %c0 = arith.constant 0 : index
    %c0_3 = arith.constant 0 : index
    %c0_4 = arith.constant 0 : index
    %12 = vector.load %arg3[%c0, %c0_3, %c0_4] : memref<1x8x32xf32, #tpu.memory_space<vmem>>, vector<1x8x32xf32>
    %13 = vector.shape_cast %12 : vector<1x8x32xf32> to vector<8x32xf32>
    %cst = arith.constant 0.000000e+00 : f32
    %14 = vector.broadcast %cst : f32 to vector<2x8xf32>
    %c0_i32_5 = arith.constant 0 : i32
    %c6_i32 = arith.constant 6 : i32
    %15 = arith.addi %c0_i32_5, %c6_i32 : i32
    %c1_i32_6 = arith.constant 1 : i32
    %16:2 = scf.for %arg5 = %c0_i32_5 to %15 step %c1_i32_6 iter_args(%arg6 = %14, %arg7 = %14) -> (vector<2x8xf32>, vector<2x8xf32>)  : i32 {
      %c1_i32_8 = arith.constant 1 : i32
      %17 = arith.cmpi eq, %11, %c1_i32_8 : i32
      %c1_i32_9 = arith.constant 1 : i32
      %18 = arith.subi %1, %c1_i32_9 : i32
      %19 = arith.subi %18, %arg5 : i32
      %c0_i32_10 = arith.constant 0 : i32
      %20 = arith.maxsi %19, %c0_i32_10 : i32
      %21 = arith.select %17, %20, %arg5 : i32
      %c0_11 = arith.constant 0 : index
      %22 = arith.index_cast %21 : i32 to index
      %c0_12 = arith.constant 0 : index
      %c0_13 = arith.constant 0 : index
      %23 = vector.load %arg2[%c0_11, %22, %c0_12, %c0_13] : memref<1x6x2x32xf32, #tpu.memory_space<vmem>>, vector<1x1x2x32xf32>
      %24 = vector.shape_cast %23 : vector<1x1x2x32xf32> to vector<2x32xf32>
      %cst_14 = arith.constant dense<0.000000e+00> : vector<2x32xf32>
      %25 = tpu.matmul %arg6, %13, %cst_14 {dimension_numbers = #tpu.dot_dimension_numbers<[1], [0], [0], [1], [0, 0, 1, 1], [], []>} : vector<2x8xf32>, vector<8x32xf32>, vector<2x32xf32> -> vector<2x32xf32>
      %26 = arith.addf %24, %25 : vector<2x32xf32>
      %27 = vector.extract_strided_slice %26 {offsets = [0, 0], sizes = [2, 8], strides = [1, 1]} : vector<2x32xf32> to vector<2x8xf32>
      %28 = arith.negf %27 : vector<2x8xf32>
      %29 = math.exp %28 : vector<2x8xf32>
      %cst_15 = arith.constant 1.000000e+00 : f32
      %30 = vector.broadcast %cst_15 : f32 to vector<2x8xf32>
      %31 = arith.addf %30, %29 : vector<2x8xf32>
      %32 = arith.divf %30, %31 : vector<2x8xf32>
      %33 = vector.extract_strided_slice %26 {offsets = [0, 8], sizes = [2, 8], strides = [1, 1]} : vector<2x32xf32> to vector<2x8xf32>
      %34 = arith.negf %33 : vector<2x8xf32>
      %35 = math.exp %34 : vector<2x8xf32>
      %cst_16 = arith.constant 1.000000e+00 : f32
      %36 = vector.broadcast %cst_16 : f32 to vector<2x8xf32>
      %37 = arith.addf %36, %35 : vector<2x8xf32>
      %38 = arith.divf %36, %37 : vector<2x8xf32>
      %39 = vector.extract_strided_slice %26 {offsets = [0, 16], sizes = [2, 8], strides = [1, 1]} : vector<2x32xf32> to vector<2x8xf32>
      %40 = math.tanh %39 : vector<2x8xf32>
      %41 = vector.extract_strided_slice %26 {offsets = [0, 24], sizes = [2, 8], strides = [1, 1]} : vector<2x32xf32> to vector<2x8xf32>
      %42 = arith.negf %41 : vector<2x8xf32>
      %43 = math.exp %42 : vector<2x8xf32>
      %cst_17 = arith.constant 1.000000e+00 : f32
      %44 = vector.broadcast %cst_17 : f32 to vector<2x8xf32>
      %45 = arith.addf %44, %43 : vector<2x8xf32>
      %46 = arith.divf %44, %45 : vector<2x8xf32>
      %47 = arith.mulf %38, %arg7 : vector<2x8xf32>
      %48 = arith.mulf %32, %40 : vector<2x8xf32>
      %49 = arith.addf %47, %48 : vector<2x8xf32>
      %50 = math.tanh %49 : vector<2x8xf32>
      %51 = arith.mulf %46, %50 : vector<2x8xf32>
      %52 = arith.cmpi slt, %arg5, %1 : i32
      %53 = arith.select %52, %51, %arg6 : vector<2x8xf32>
      %54 = arith.select %52, %49, %arg7 : vector<2x8xf32>
      %c0_18 = arith.constant 0 : index
      %55 = arith.index_cast %21 : i32 to index
      %c0_19 = arith.constant 0 : index
      %c0_20 = arith.constant 0 : index
      %56 = vector.load %arg4[%c0_18, %55, %c0_19, %c0_20] : memref<1x6x2x8xf32, #tpu.memory_space<vmem>>, vector<1x1x2x8xf32>
      %57 = vector.shape_cast %56 : vector<1x1x2x8xf32> to vector<2x8xf32>
      %58 = vector.shape_cast %53 : vector<2x8xf32> to vector<1x1x2x8xf32>
      tpu.vector_store %arg4[%c0_18, %55, %c0_19, %c0_20], %58 {strides = array<i32>} : memref<1x6x2x8xf32, #tpu.memory_space<vmem>>, vector<1x1x2x8xf32>,
      scf.yield %53, %54 : vector<2x8xf32>, vector<2x8xf32>
    }
    %c6_i32_7 = arith.constant 6 : i32
    return
  }
  func.func @transform_0(%arg0: i32) -> i32 {
    %c0_i32 = arith.constant 0 : i32
    %c0_i32_0 = arith.constant 0 : i32
    return %c0_i32 : i32
  }
  func.func @transform_1(%arg0: i32) -> (i32, i32, i32, i32) {
    %c0_i32 = arith.constant 0 : i32
    %c0_i32_0 = arith.constant 0 : i32
    %c0_i32_1 = arith.constant 0 : i32
    %c0_i32_2 = arith.constant 0 : i32
    return %arg0, %c0_i32, %c0_i32_0, %c0_i32_1 : i32, i32, i32, i32
  }
  func.func @transform_2(%arg0: i32) -> (i32, i32, i32) {
    %c0_i32 = arith.constant 0 : i32
    %c0_i32_0 = arith.constant 0 : i32
    %c0_i32_1 = arith.constant 0 : i32
    return %arg0, %c0_i32, %c0_i32_0 : i32, i32, i32
  }
  func.func @transform_3(%arg0: i32) -> (i32, i32, i32, i32) {
    %c0_i32 = arith.constant 0 : i32
    %c0_i32_0 = arith.constant 0 : i32
    %c0_i32_1 = arith.constant 0 : i32
    %c0_i32_2 = arith.constant 0 : i32
    return %arg0, %c0_i32, %c0_i32_0, %c0_i32_1 : i32, i32, i32, i32
  }
}

module attributes {stable_mosaic.version = 11 : i64} {
  func.func @attention_G_kernel(%arg0: i32, %arg1: memref<1xf32, #tpu.memory_space<smem>>, %arg2: memref<1x6x16xf32, #tpu.memory_space<vmem>>, %arg3: memref<1x5x16xf32, #tpu.memory_space<vmem>>, %arg4: memref<3x1x16xf32, #tpu.memory_space<vmem>>, %arg5: memref<4x16x64xf32, #tpu.memory_space<vmem>>, %arg6: memref<1x64xf32, #tpu.memory_space<vmem>>, %arg7: memref<1x6x64xf32, #tpu.memory_space<vmem>>) attributes {dimension_semantics = [#tpu.dimension_semantics<parallel>], iteration_bounds = array<i64: 2>, scalar_prefetch = 0 : i64, scratch_operands = 0 : i64, tpu.core_type = #tpu.core_type<tc>, window_params = [{transform_indices = @transform_0, window_bounds = array<i64: 1>}, {transform_indices = @transform_1, window_bounds = array<i64: 1, 6, 16>}, {transform_indices = @transform_2, window_bounds = array<i64: 1, 5, 16>}, {pipeline_mode = #tpu.pipeline_mode<synchronous>, transform_indices = @transform_3, window_bounds = array<i64: 3, 1, 16>}, {pipeline_mode = #tpu.pipeline_mode<synchronous>, transform_indices = @transform_4, window_bounds = array<i64: 4, 16, 64>}, {pipeline_mode = #tpu.pipeline_mode<synchronous>, transform_indices = @transform_5, window_bounds = array<i64: 1, 64>}, {transform_indices = @transform_6, window_bounds = array<i64: 1, 6, 64>}]} {
    %c0 = arith.constant 0 : index
    %c0_0 = arith.constant 0 : index
    %c0_1 = arith.constant 0 : index
    %0 = vector.load %arg2[%c0, %c0_0, %c0_1] : memref<1x6x16xf32, #tpu.memory_space<vmem>>, vector<1x6x16xf32>
    %1 = vector.shape_cast %0 : vector<1x6x16xf32> to vector<6x16xf32>
    %c0_2 = arith.constant 0 : index
    %c0_3 = arith.constant 0 : index
    %c0_4 = arith.constant 0 : index
    %2 = vector.load %arg3[%c0_2, %c0_3, %c0_4] : memref<1x5x16xf32, #tpu.memory_space<vmem>>, vector<1x5x16xf32>
    %3 = vector.shape_cast %2 : vector<1x5x16xf32> to vector<5x16xf32>
    %c0_5 = arith.constant 0 : index
    %c0_6 = arith.constant 0 : index
    %c0_7 = arith.constant 0 : index
    %4 = vector.load %arg4[%c0_5, %c0_6, %c0_7] : memref<3x1x16xf32, #tpu.memory_space<vmem>>, vector<1x1x16xf32>
    %5 = vector.shape_cast %4 : vector<1x1x16xf32> to vector<1x16xf32>
    %c1 = arith.constant 1 : index
    %c0_8 = arith.constant 0 : index
    %c0_9 = arith.constant 0 : index
    %6 = vector.load %arg4[%c1, %c0_8, %c0_9] : memref<3x1x16xf32, #tpu.memory_space<vmem>>, vector<1x1x16xf32>
    %7 = vector.shape_cast %6 : vector<1x1x16xf32> to vector<1x16xf32>
    %c2 = arith.constant 2 : index
    %c0_10 = arith.constant 0 : index
    %c0_11 = arith.constant 0 : index
    %8 = vector.load %arg4[%c2, %c0_10, %c0_11] : memref<3x1x16xf32, #tpu.memory_space<vmem>>, vector<1x1x16xf32>
    %9 = vector.shape_cast %8 : vector<1x1x16xf32> to vector<1x16xf32>
    %cst = arith.constant dense<0.000000e+00> : vector<6x1xf32>
    %10 = tpu.matmul %1, %5, %cst {dimension_numbers = #tpu.dot_dimension_numbers<[1], [1], [0], [0], [0, 0, 1, 0], [], []>} : vector<6x16xf32>, vector<1x16xf32>, vector<6x1xf32> -> vector<6x1xf32>
    %cst_12 = arith.constant dense<0.000000e+00> : vector<1x5xf32>
    %11 = tpu.matmul %7, %3, %cst_12 {dimension_numbers = #tpu.dot_dimension_numbers<[1], [1], [0], [0], [0, 0, 1, 0], [], []>} : vector<1x16xf32>, vector<5x16xf32>, vector<1x5xf32> -> vector<1x5xf32>
    %12 = vector.broadcast %9 : vector<1x16xf32> to vector<6x16xf32>
    %13 = arith.mulf %1, %12 : vector<6x16xf32>
    %cst_13 = arith.constant dense<0.000000e+00> : vector<6x5xf32>
    %14 = tpu.matmul %13, %3, %cst_13 {dimension_numbers = #tpu.dot_dimension_numbers<[1], [1], [0], [0], [0, 0, 1, 0], [], []>} : vector<6x16xf32>, vector<5x16xf32>, vector<6x5xf32> -> vector<6x5xf32>
    %15 = vector.broadcast %10 : vector<6x1xf32> to vector<6x5xf32>
    %16 = vector.broadcast %11 : vector<1x5xf32> to vector<6x5xf32>
    %17 = arith.addf %15, %16 : vector<6x5xf32>
    %18 = arith.addf %17, %14 : vector<6x5xf32>
    %c0_14 = arith.constant 0 : index
    %19 = memref.load %arg1[%c0_14] : memref<1xf32, #tpu.memory_space<smem>>
    %20 = vector.broadcast %19 : f32 to vector<6x5xf32>
    %21 = arith.addf %18, %20 : vector<6x5xf32>
    %cst_15 = arith.constant dense<0xFF800000> : vector<6xf32>
    %22 = vector.multi_reduction <maximumf>, %21, %cst_15 [1] : vector<6x5xf32> to vector<6xf32>
    %cst_16 = arith.constant 0xFF800000 : f32
    %23 = vector.broadcast %cst_16 : f32 to vector<6xf32>
    %24 = arith.maximumf %23, %22 : vector<6xf32>
    %25 = vector.shape_cast %24 : vector<6xf32> to vector<6x1xf32>
    %26 = vector.broadcast %25 : vector<6x1xf32> to vector<6x5xf32>
    %27 = arith.subf %21, %26 : vector<6x5xf32>
    %28 = math.exp %27 : vector<6x5xf32>
    %cst_17 = arith.constant dense<0.000000e+00> : vector<6xf32>
    %29 = vector.multi_reduction <add>, %28, %cst_17 [1] : vector<6x5xf32> to vector<6xf32>
    %30 = vector.shape_cast %29 : vector<6xf32> to vector<6x1xf32>
    %31 = vector.broadcast %30 : vector<6x1xf32> to vector<6x5xf32>
    %32 = arith.divf %28, %31 : vector<6x5xf32>
    %cst_18 = arith.constant dense<0.000000e+00> : vector<6x16xf32>
    %33 = tpu.matmul %32, %3, %cst_18 {dimension_numbers = #tpu.dot_dimension_numbers<[1], [0], [0], [1], [0, 0, 1, 1], [], []>} : vector<6x5xf32>, vector<5x16xf32>, vector<6x16xf32> -> vector<6x16xf32>
    %cst_19 = arith.constant dense<0xFF800000> : vector<6xf32>
    %34 = vector.multi_reduction <maximumf>, %21, %cst_19 [1] : vector<6x5xf32> to vector<6xf32>
    %35 = vector.shape_cast %34 : vector<6xf32> to vector<6x1xf32>
    %36 = vector.broadcast %35 : vector<6x1xf32> to vector<6x16xf32>
    %37 = arith.mulf %36, %1 : vector<6x16xf32>
    %cst_20 = arith.constant dense<0.000000e+00> : vector<16xf32>
    %38 = vector.multi_reduction <add>, %37, %cst_20 [0] : vector<6x16xf32> to vector<16xf32>
    %39 = vector.shape_cast %38 : vector<16xf32> to vector<1x16xf32>
    %c0_21 = arith.constant 0 : index
    %c0_22 = arith.constant 0 : index
    %c0_23 = arith.constant 0 : index
    %40 = vector.load %arg5[%c0_21, %c0_22, %c0_23] : memref<4x16x64xf32, #tpu.memory_space<vmem>>, vector<1x16x64xf32>
    %41 = vector.shape_cast %40 : vector<1x16x64xf32> to vector<16x64xf32>
    %cst_24 = arith.constant dense<0.000000e+00> : vector<6x64xf32>
    %42 = tpu.matmul %1, %41, %cst_24 {dimension_numbers = #tpu.dot_dimension_numbers<[1], [0], [0], [1], [0, 0, 1, 1], [], []>} : vector<6x16xf32>, vector<16x64xf32>, vector<6x64xf32> -> vector<6x64xf32>
    %c1_25 = arith.constant 1 : index
    %c0_26 = arith.constant 0 : index
    %c0_27 = arith.constant 0 : index
    %43 = vector.load %arg5[%c1_25, %c0_26, %c0_27] : memref<4x16x64xf32, #tpu.memory_space<vmem>>, vector<1x16x64xf32>
    %44 = vector.shape_cast %43 : vector<1x16x64xf32> to vector<16x64xf32>
    %cst_28 = arith.constant dense<0.000000e+00> : vector<6x64xf32>
    %45 = tpu.matmul %33, %44, %cst_28 {dimension_numbers = #tpu.dot_dimension_numbers<[1], [0], [0], [1], [0, 0, 1, 1], [], []>} : vector<6x16xf32>, vector<16x64xf32>, vector<6x64xf32> -> vector<6x64xf32>
    %46 = arith.addf %42, %45 : vector<6x64xf32>
    %47 = arith.mulf %1, %33 : vector<6x16xf32>
    %c2_29 = arith.constant 2 : index
    %c0_30 = arith.constant 0 : index
    %c0_31 = arith.constant 0 : index
    %48 = vector.load %arg5[%c2_29, %c0_30, %c0_31] : memref<4x16x64xf32, #tpu.memory_space<vmem>>, vector<1x16x64xf32>
    %49 = vector.shape_cast %48 : vector<1x16x64xf32> to vector<16x64xf32>
    %cst_32 = arith.constant dense<0.000000e+00> : vector<6x64xf32>
    %50 = tpu.matmul %47, %49, %cst_32 {dimension_numbers = #tpu.dot_dimension_numbers<[1], [0], [0], [1], [0, 0, 1, 1], [], []>} : vector<6x16xf32>, vector<16x64xf32>, vector<6x64xf32> -> vector<6x64xf32>
    %51 = arith.addf %46, %50 : vector<6x64xf32>
    %52 = vector.broadcast %39 : vector<1x16xf32> to vector<6x16xf32>
    %53 = arith.mulf %1, %52 : vector<6x16xf32>
    %c3 = arith.constant 3 : index
    %c0_33 = arith.constant 0 : index
    %c0_34 = arith.constant 0 : index
    %54 = vector.load %arg5[%c3, %c0_33, %c0_34] : memref<4x16x64xf32, #tpu.memory_space<vmem>>, vector<1x16x64xf32>
    %55 = vector.shape_cast %54 : vector<1x16x64xf32> to vector<16x64xf32>
    %cst_35 = arith.constant dense<0.000000e+00> : vector<6x64xf32>
    %56 = tpu.matmul %53, %55, %cst_35 {dimension_numbers = #tpu.dot_dimension_numbers<[1], [0], [0], [1], [0, 0, 1, 1], [], []>} : vector<6x16xf32>, vector<16x64xf32>, vector<6x64xf32> -> vector<6x64xf32>
    %57 = arith.addf %51, %56 : vector<6x64xf32>
    %c0_36 = arith.constant 0 : index
    %c0_37 = arith.constant 0 : index
    %58 = vector.load %arg6[%c0_36, %c0_37] : memref<1x64xf32, #tpu.memory_space<vmem>>, vector<1x64xf32>
    %59 = vector.broadcast %58 : vector<1x64xf32> to vector<6x64xf32>
    %60 = arith.addf %57, %59 : vector<6x64xf32>
    %c0_38 = arith.constant 0 : index
    %c0_39 = arith.constant 0 : index
    %c0_40 = arith.constant 0 : index
    %61 = vector.load %arg7[%c0_38, %c0_39, %c0_40] : memref<1x6x64xf32, #tpu.memory_space<vmem>>, vector<1x6x64xf32>
    %62 = vector.shape_cast %61 : vector<1x6x64xf32> to vector<6x64xf32>
    %63 = vector.shape_cast %60 : vector<6x64xf32> to vector<1x6x64xf32>
    tpu.vector_store %arg7[%c0_38, %c0_39, %c0_40], %63 {strides = array<i32>} : memref<1x6x64xf32, #tpu.memory_space<vmem>>, vector<1x6x64xf32>,
    return
  }
  func.func @transform_0(%arg0: i32) -> i32 {
    %c0_i32 = arith.constant 0 : i32
    %c0_i32_0 = arith.constant 0 : i32
    return %c0_i32 : i32
  }
  func.func @transform_1(%arg0: i32) -> (i32, i32, i32) {
    %c0_i32 = arith.constant 0 : i32
    %c0_i32_0 = arith.constant 0 : i32
    %c0_i32_1 = arith.constant 0 : i32
    return %arg0, %c0_i32, %c0_i32_0 : i32, i32, i32
  }
  func.func @transform_2(%arg0: i32) -> (i32, i32, i32) {
    %c0_i32 = arith.constant 0 : i32
    %c0_i32_0 = arith.constant 0 : i32
    %c0_i32_1 = arith.constant 0 : i32
    return %arg0, %c0_i32, %c0_i32_0 : i32, i32, i32
  }
  func.func @transform_3(%arg0: i32) -> (i32, i32, i32) {
    %c0_i32 = arith.constant 0 : i32
    %c0_i32_0 = arith.constant 0 : i32
    %c0_i32_1 = arith.constant 0 : i32
    %c0_i32_2 = arith.constant 0 : i32
    return %c0_i32, %c0_i32_0, %c0_i32_1 : i32, i32, i32
  }
  func.func @transform_4(%arg0: i32) -> (i32, i32, i32) {
    %c0_i32 = arith.constant 0 : i32
    %c0_i32_0 = arith.constant 0 : i32
    %c0_i32_1 = arith.constant 0 : i32
    %c0_i32_2 = arith.constant 0 : i32
    return %c0_i32, %c0_i32_0, %c0_i32_1 : i32, i32, i32
  }
  func.func @transform_5(%arg0: i32) -> (i32, i32) {
    %c0_i32 = arith.constant 0 : i32
    %c0_i32_0 = arith.constant 0 : i32
    %c0_i32_1 = arith.constant 0 : i32
    return %c0_i32, %c0_i32_0 : i32, i32
  }
  func.func @transform_6(%arg0: i32) -> (i32, i32, i32) {
    %c0_i32 = arith.constant 0 : i32
    %c0_i32_0 = arith.constant 0 : i32
    %c0_i32_1 = arith.constant 0 : i32
    return %arg0, %c0_i32, %c0_i32_0 : i32, i32, i32
  }
}

module attributes {stable_mosaic.version = 11 : i64} {
  func.func @lstm_seq_kernel(%arg0: i32, %arg1: memref<2xi32, #tpu.memory_space<smem>>, %arg2: memref<1x6x2x32xf32, #tpu.memory_space<vmem>>, %arg3: memref<1x8x32xf32, #tpu.memory_space<vmem>>, %arg4: memref<1x6x2x8xf32, #tpu.memory_space<vmem>>) attributes {dimension_semantics = [#tpu.dimension_semantics<parallel>], iteration_bounds = array<i64: 2>, scalar_prefetch = 0 : i64, scratch_operands = 0 : i64, tpu.core_type = #tpu.core_type<tc>, window_params = [{transform_indices = @transform_0, window_bounds = array<i64: 2>}, {transform_indices = @transform_1, window_bounds = array<i64: 1, 6, 2, 32>}, {transform_indices = @transform_2, window_bounds = array<i64: 1, 8, 32>}, {transform_indices = @transform_3, window_bounds = array<i64: 1, 6, 2, 8>}]} {
    %0 = arith.index_cast %arg0 : i32 to index
    %1 = memref.load %arg1[%0] : memref<2xi32, #tpu.memory_space<smem>>
    %c2_i32 = arith.constant 2 : i32
    %c0_i32 = arith.constant 0 : i32
    %2 = arith.cmpi eq, %c2_i32, %c0_i32 : i32
    %c1_i32 = arith.constant 1 : i32
    %3 = arith.select %2, %c1_i32, %c2_i32 : i32
    %4 = arith.remsi %arg0, %3 : i32
    %c0_i32_0 = arith.constant 0 : i32
    %5 = arith.cmpi ne, %4, %c0_i32_0 : i32
    %c0_i32_1 = arith.constant 0 : i32
    %6 = arith.cmpi slt, %4, %c0_i32_1 : i32
    %c0_i32_2 = arith.constant 0 : i32
    %7 = arith.cmpi slt, %3, %c0_i32_2 : i32
    %8 = arith.xori %6, %7 : i1
    %9 = arith.andi %8, %5 : i1
    %10 = arith.addi %4, %3 : i32
    %11 = arith.select %9, %10, %4 : i32
    %c0 = arith.constant 0 : index
    %c0_3 = arith.constant 0 : index
    %c0_4 = arith.constant 0 : index
    %12 = vector.load %arg3[%c0, %c0_3, %c0_4] : memref<1x8x32xf32, #tpu.memory_space<vmem>>, vector<1x8x32xf32>
    %13 = vector.shape_cast %12 : vector<1x8x32xf32> to vector<8x32xf32>
    %cst = arith.constant 0.000000e+00 : f32
    %14 = vector.broadcast %cst : f32 to vector<2x8xf32>
    %c0_i32_5 = arith.constant 0 : i32
    %c6_i32 = arith.constant 6 : i32
    %15 = arith.addi %c0_i32_5, %c6_i32 : i32
    %c1_i32_6 = arith.constant 1 : i32
    %16:2 = scf.for %arg5 = %c0_i32_5 to %15 step %c1_i32_6 iter_args(%arg6 = %14, %arg7 = %14) -> (vector<2x8xf32>, vector<2x8xf32>)  : i32 {
      %c1_i32_8 = arith.constant 1 : i32
      %17 = arith.cmpi eq, %11, %c1_i32_8 : i32
      %c1_i32_9 = arith.constant 1 : i32
      %18 = arith.subi %1, %c1_i32_9 : i32
      %19 = arith.subi %18, %arg5 : i32
      %c0_i32_10 = arith.constant 0 : i32
      %20 = arith.maxsi %19, %c0_i32_10 : i32
      %21 = arith.select %17, %20, %arg5 : i32
      %c0_11 = arith.constant 0 : index
      %22 = arith.index_cast %21 : i32 to index
      %c0_12 = arith.constant 0 : index
      %c0_13 = arith.constant 0 : index
      %23 = vector.load %arg2[%c0_11, %22, %c0_12, %c0_13] : memref<1x6x2x32xf32, #tpu.memory_space<vmem>>, vector<1x1x2x32xf32>
      %24 = vector.shape_cast %23 : vector<1x1x2x32xf32> to vector<2x32xf32>
      %cst_14 = arith.constant dense<0.000000e+00> : vector<2x32xf32>
      %25 = tpu.matmul %arg6, %13, %cst_14 {dimension_numbers = #tpu.dot_dimension_numbers<[1], [0], [0], [1], [0, 0, 1, 1], [], []>} : vector<2x8xf32>, vector<8x32xf32>, vector<2x32xf32> -> vector<2x32xf32>
      %26 = arith.addf %24, %25 : vector<2x32xf32>
      %27 = vector.extract_strided_slice %26 {offsets = [0, 0], sizes = [2, 8], strides = [1, 1]} : vector<2x32xf32> to vector<2x8xf32>
      %28 = arith.negf %27 : vector<2x8xf32>
      %29 = math.exp %28 : vector<2x8xf32>
      %cst_15 = arith.constant 1.000000e+00 : f32
      %30 = vector.broadcast %cst_15 : f32 to vector<2x8xf32>
      %31 = arith.addf %30, %29 : vector<2x8xf32>
      %32 = arith.divf %30, %31 : vector<2x8xf32>
      %33 = vector.extract_strided_slice %26 {offsets = [0, 8], sizes = [2, 8], strides = [1, 1]} : vector<2x32xf32> to vector<2x8xf32>
      %34 = arith.negf %33 : vector<2x8xf32>
      %35 = math.exp %34 : vector<2x8xf32>
      %cst_16 = arith.constant 1.000000e+00 : f32
      %36 = vector.broadcast %cst_16 : f32 to vector<2x8xf32>
      %37 = arith.addf %36, %35 : vector<2x8xf32>
      %38 = arith.divf %36, %37 : vector<2x8xf32>
      %39 = vector.extract_strided_slice %26 {offsets = [0, 16], sizes = [2, 8], strides = [1, 1]} : vector<2x32xf32> to vector<2x8xf32>
      %40 = math.tanh %39 : vector<2x8xf32>
      %41 = vector.extract_strided_slice %26 {offsets = [0, 24], sizes = [2, 8], strides = [1, 1]} : vector<2x32xf32> to vector<2x8xf32>
      %42 = arith.negf %41 : vector<2x8xf32>
      %43 = math.exp %42 : vector<2x8xf32>
      %cst_17 = arith.constant 1.000000e+00 : f32
      %44 = vector.broadcast %cst_17 : f32 to vector<2x8xf32>
      %45 = arith.addf %44, %43 : vector<2x8xf32>
      %46 = arith.divf %44, %45 : vector<2x8xf32>
      %47 = arith.mulf %38, %arg7 : vector<2x8xf32>
      %48 = arith.mulf %32, %40 : vector<2x8xf32>
      %49 = arith.addf %47, %48 : vector<2x8xf32>
      %50 = math.tanh %49 : vector<2x8xf32>
      %51 = arith.mulf %46, %50 : vector<2x8xf32>
      %52 = arith.cmpi slt, %arg5, %1 : i32
      %53 = arith.select %52, %51, %arg6 : vector<2x8xf32>
      %54 = arith.select %52, %49, %arg7 : vector<2x8xf32>
      %c0_18 = arith.constant 0 : index
      %55 = arith.index_cast %21 : i32 to index
      %c0_19 = arith.constant 0 : index
      %c0_20 = arith.constant 0 : index
      %56 = vector.load %arg4[%c0_18, %55, %c0_19, %c0_20] : memref<1x6x2x8xf32, #tpu.memory_space<vmem>>, vector<1x1x2x8xf32>
      %57 = vector.shape_cast %56 : vector<1x1x2x8xf32> to vector<2x8xf32>
      %58 = vector.shape_cast %53 : vector<2x8xf32> to vector<1x1x2x8xf32>
      tpu.vector_store %arg4[%c0_18, %55, %c0_19, %c0_20], %58 {strides = array<i32>} : memref<1x6x2x8xf32, #tpu.memory_space<vmem>>, vector<1x1x2x8xf32>,
      scf.yield %53, %54 : vector<2x8xf32>, vector<2x8xf32>
    }
    %c6_i32_7 = arith.constant 6 : i32
    return
  }
  func.func @transform_0(%arg0: i32) -> i32 {
    %c0_i32 = arith.constant 0 : i32
    %c0_i32_0 = arith.constant 0 : i32
    return %c0_i32 : i32
  }
  func.func @transform_1(%arg0: i32) -> (i32, i32, i32, i32) {
    %c0_i32 = arith.constant 0 : i32
    %c0_i32_0 = arith.constant 0 : i32
    %c0_i32_1 = arith.constant 0 : i32
    %c0_i32_2 = arith.constant 0 : i32
    return %arg0, %c0_i32, %c0_i32_0, %c0_i32_1 : i32, i32, i32, i32
  }
  func.func @transform_2(%arg0: i32) -> (i32, i32, i32) {
    %c0_i32 = arith.constant 0 : i32
    %c0_i32_0 = arith.constant 0 : i32
    %c0_i32_1 = arith.constant 0 : i32
    return %arg0, %c0_i32, %c0_i32_0 : i32, i32, i32
  }
  func.func @transform_3(%arg0: i32) -> (i32, i32, i32, i32) {
    %c0_i32 = arith.constant 0 : i32
    %c0_i32_0 = arith.constant 0 : i32
    %c0_i32_1 = arith.constant 0 : i32
    %c0_i32_2 = arith.constant 0 : i32
    return %arg0, %c0_i32, %c0_i32_0, %c0_i32_1 : i32, i32, i32, i32
  }
}

module attributes {stable_mosaic.version = 11 : i64} {
  func.func @output_kernel(%arg0: i32, %arg1: memref<2xf32, #tpu.memory_space<smem>>, %arg2: memref<6x2x64xf32, #tpu.memory_space<vmem>>, %arg3: memref<6x2x16xf32, #tpu.memory_space<vmem>>, %arg4: memref<6x2x16xf32, #tpu.memory_space<vmem>>, %arg5: memref<64x2xf32, #tpu.memory_space<vmem>>, %arg6: memref<16x1xf32, #tpu.memory_space<vmem>>, %arg7: memref<16x1xf32, #tpu.memory_space<vmem>>, %arg8: memref<6x2xf32, #tpu.memory_space<vmem>>, %arg9: memref<6x2xf32, #tpu.memory_space<vmem>>) attributes {dimension_semantics = [#tpu.dimension_semantics<arbitrary>], iteration_bounds = array<i64: 1>, scalar_prefetch = 0 : i64, scratch_operands = 0 : i64, tpu.core_type = #tpu.core_type<tc>, window_params = [{transform_indices = @transform_0, window_bounds = array<i64: 2>}, {pipeline_mode = #tpu.pipeline_mode<synchronous>, transform_indices = @transform_1, window_bounds = array<i64: 6, 2, 64>}, {pipeline_mode = #tpu.pipeline_mode<synchronous>, transform_indices = @transform_2, window_bounds = array<i64: 6, 2, 16>}, {pipeline_mode = #tpu.pipeline_mode<synchronous>, transform_indices = @transform_3, window_bounds = array<i64: 6, 2, 16>}, {pipeline_mode = #tpu.pipeline_mode<synchronous>, transform_indices = @transform_4, window_bounds = array<i64: 64, 2>}, {pipeline_mode = #tpu.pipeline_mode<synchronous>, transform_indices = @transform_5, window_bounds = array<i64: 16, 1>}, {pipeline_mode = #tpu.pipeline_mode<synchronous>, transform_indices = @transform_6, window_bounds = array<i64: 16, 1>}, {pipeline_mode = #tpu.pipeline_mode<synchronous>, transform_indices = @transform_7, window_bounds = array<i64: 6, 2>}, {pipeline_mode = #tpu.pipeline_mode<synchronous>, transform_indices = @transform_8, window_bounds = array<i64: 6, 2>}]} {
    %c0 = arith.constant 0 : index
    %c0_0 = arith.constant 0 : index
    %c0_1 = arith.constant 0 : index
    %0 = vector.load %arg2[%c0, %c0_0, %c0_1] : memref<6x2x64xf32, #tpu.memory_space<vmem>>, vector<6x2x64xf32>
    %c0_2 = arith.constant 0 : index
    %c0_3 = arith.constant 0 : index
    %c0_4 = arith.constant 0 : index
    %1 = vector.load %arg3[%c0_2, %c0_3, %c0_4] : memref<6x2x16xf32, #tpu.memory_space<vmem>>, vector<6x2x16xf32>
    %c0_5 = arith.constant 0 : index
    %c0_6 = arith.constant 0 : index
    %c0_7 = arith.constant 0 : index
    %2 = vector.load %arg4[%c0_5, %c0_6, %c0_7] : memref<6x2x16xf32, #tpu.memory_space<vmem>>, vector<6x2x16xf32>
    %c0_8 = arith.constant 0 : index
    %c0_9 = arith.constant 0 : index
    %3 = vector.load %arg5[%c0_8, %c0_9] : memref<64x2xf32, #tpu.memory_space<vmem>>, vector<64x2xf32>
    %c0_10 = arith.constant 0 : index
    %c0_11 = arith.constant 0 : index
    %4 = vector.load %arg6[%c0_10, %c0_11] : memref<16x1xf32, #tpu.memory_space<vmem>>, vector<16x1xf32>
    %c0_12 = arith.constant 0 : index
    %c0_13 = arith.constant 0 : index
    %5 = vector.load %arg7[%c0_12, %c0_13] : memref<16x1xf32, #tpu.memory_space<vmem>>, vector<16x1xf32>
    %6 = vector.extract_strided_slice %0 {offsets = [0, 0, 0], sizes = [6, 1, 64], strides = [1, 1, 1]} : vector<6x2x64xf32> to vector<6x1x64xf32>
    %7 = vector.shape_cast %6 : vector<6x1x64xf32> to vector<6x64xf32>
    %cst = arith.constant dense<0.000000e+00> : vector<6x2xf32>
    %8 = tpu.matmul %7, %3, %cst {dimension_numbers = #tpu.dot_dimension_numbers<[1], [0], [0], [1], [0, 0, 1, 1], [], []>} : vector<6x64xf32>, vector<64x2xf32>, vector<6x2xf32> -> vector<6x2xf32>
    %9 = vector.extract_strided_slice %1 {offsets = [0, 0, 0], sizes = [6, 1, 16], strides = [1, 1, 1]} : vector<6x2x16xf32> to vector<6x1x16xf32>
    %10 = vector.shape_cast %9 : vector<6x1x16xf32> to vector<6x16xf32>
    %cst_14 = arith.constant dense<0.000000e+00> : vector<6x1xf32>
    %11 = tpu.matmul %10, %4, %cst_14 {dimension_numbers = #tpu.dot_dimension_numbers<[1], [0], [0], [1], [0, 0, 1, 1], [], []>} : vector<6x16xf32>, vector<16x1xf32>, vector<6x1xf32> -> vector<6x1xf32>
    %12 = vector.extract_strided_slice %2 {offsets = [0, 0, 0], sizes = [6, 1, 16], strides = [1, 1, 1]} : vector<6x2x16xf32> to vector<6x1x16xf32>
    %13 = vector.shape_cast %12 : vector<6x1x16xf32> to vector<6x16xf32>
    %cst_15 = arith.constant dense<0.000000e+00> : vector<6x1xf32>
    %14 = tpu.matmul %13, %5, %cst_15 {dimension_numbers = #tpu.dot_dimension_numbers<[1], [0], [0], [1], [0, 0, 1, 1], [], []>} : vector<6x16xf32>, vector<16x1xf32>, vector<6x1xf32> -> vector<6x1xf32>
    %15 = vector.extract_strided_slice %8 {offsets = [0, 0], sizes = [6, 1], strides = [1, 1]} : vector<6x2xf32> to vector<6x1xf32>
    %16 = arith.addf %15, %11 : vector<6x1xf32>
    %17 = vector.extract_strided_slice %8 {offsets = [0, 1], sizes = [6, 1], strides = [1, 1]} : vector<6x2xf32> to vector<6x1xf32>
    %18 = arith.addf %17, %14 : vector<6x1xf32>
    %19 = vector.extract_strided_slice %0 {offsets = [0, 1, 0], sizes = [6, 1, 64], strides = [1, 1, 1]} : vector<6x2x64xf32> to vector<6x1x64xf32>
    %20 = vector.shape_cast %19 : vector<6x1x64xf32> to vector<6x64xf32>
    %cst_16 = arith.constant dense<0.000000e+00> : vector<6x2xf32>
    %21 = tpu.matmul %20, %3, %cst_16 {dimension_numbers = #tpu.dot_dimension_numbers<[1], [0], [0], [1], [0, 0, 1, 1], [], []>} : vector<6x64xf32>, vector<64x2xf32>, vector<6x2xf32> -> vector<6x2xf32>
    %22 = vector.extract_strided_slice %1 {offsets = [0, 1, 0], sizes = [6, 1, 16], strides = [1, 1, 1]} : vector<6x2x16xf32> to vector<6x1x16xf32>
    %23 = vector.shape_cast %22 : vector<6x1x16xf32> to vector<6x16xf32>
    %cst_17 = arith.constant dense<0.000000e+00> : vector<6x1xf32>
    %24 = tpu.matmul %23, %4, %cst_17 {dimension_numbers = #tpu.dot_dimension_numbers<[1], [0], [0], [1], [0, 0, 1, 1], [], []>} : vector<6x16xf32>, vector<16x1xf32>, vector<6x1xf32> -> vector<6x1xf32>
    %25 = vector.extract_strided_slice %2 {offsets = [0, 1, 0], sizes = [6, 1, 16], strides = [1, 1, 1]} : vector<6x2x16xf32> to vector<6x1x16xf32>
    %26 = vector.shape_cast %25 : vector<6x1x16xf32> to vector<6x16xf32>
    %cst_18 = arith.constant dense<0.000000e+00> : vector<6x1xf32>
    %27 = tpu.matmul %26, %5, %cst_18 {dimension_numbers = #tpu.dot_dimension_numbers<[1], [0], [0], [1], [0, 0, 1, 1], [], []>} : vector<6x16xf32>, vector<16x1xf32>, vector<6x1xf32> -> vector<6x1xf32>
    %28 = vector.extract_strided_slice %21 {offsets = [0, 0], sizes = [6, 1], strides = [1, 1]} : vector<6x2xf32> to vector<6x1xf32>
    %29 = arith.addf %28, %24 : vector<6x1xf32>
    %30 = vector.extract_strided_slice %21 {offsets = [0, 1], sizes = [6, 1], strides = [1, 1]} : vector<6x2xf32> to vector<6x1xf32>
    %31 = arith.addf %30, %27 : vector<6x1xf32>
    %32 = tpu.concatenate %16, %29 in 1 : vector<6x1xf32>, vector<6x1xf32> -> vector<6x2xf32>
    %c0_19 = arith.constant 0 : index
    %33 = memref.load %arg1[%c0_19] : memref<2xf32, #tpu.memory_space<smem>>
    %34 = vector.broadcast %33 : f32 to vector<6x2xf32>
    %35 = arith.addf %32, %34 : vector<6x2xf32>
    %36 = tpu.concatenate %18, %31 in 1 : vector<6x1xf32>, vector<6x1xf32> -> vector<6x2xf32>
    %c1 = arith.constant 1 : index
    %37 = memref.load %arg1[%c1] : memref<2xf32, #tpu.memory_space<smem>>
    %38 = vector.broadcast %37 : f32 to vector<6x2xf32>
    %39 = arith.addf %36, %38 : vector<6x2xf32>
    %cst_20 = arith.constant dense<0xFF800000> : vector<6xf32>
    %40 = vector.multi_reduction <maximumf>, %35, %cst_20 [1] : vector<6x2xf32> to vector<6xf32>
    %cst_21 = arith.constant 0xFF800000 : f32
    %41 = vector.broadcast %cst_21 : f32 to vector<6xf32>
    %42 = arith.maximumf %41, %40 : vector<6xf32>
    %43 = vector.shape_cast %42 : vector<6xf32> to vector<6x1xf32>
    %44 = vector.broadcast %43 : vector<6x1xf32> to vector<6x2xf32>
    %45 = arith.subf %35, %44 : vector<6x2xf32>
    %46 = math.exp %45 : vector<6x2xf32>
    %cst_22 = arith.constant dense<0.000000e+00> : vector<6xf32>
    %47 = vector.multi_reduction <add>, %46, %cst_22 [1] : vector<6x2xf32> to vector<6xf32>
    %48 = vector.shape_cast %47 : vector<6xf32> to vector<6x1xf32>
    %49 = vector.broadcast %48 : vector<6x1xf32> to vector<6x2xf32>
    %50 = arith.divf %46, %49 : vector<6x2xf32>
    %c0_23 = arith.constant 0 : index
    %c0_24 = arith.constant 0 : index
    %51 = vector.load %arg8[%c0_23, %c0_24] : memref<6x2xf32, #tpu.memory_space<vmem>>, vector<6x2xf32>
    tpu.vector_store %arg8[%c0_23, %c0_24], %50 {strides = array<i32>} : memref<6x2xf32, #tpu.memory_space<vmem>>, vector<6x2xf32>,
    %cst_25 = arith.constant dense<0xFF800000> : vector<6xf32>
    %52 = vector.multi_reduction <maximumf>, %39, %cst_25 [1] : vector<6x2xf32> to vector<6xf32>
    %cst_26 = arith.constant 0xFF800000 : f32
    %53 = vector.broadcast %cst_26 : f32 to vector<6xf32>
    %54 = arith.maximumf %53, %52 : vector<6xf32>
    %55 = vector.shape_cast %54 : vector<6xf32> to vector<6x1xf32>
    %56 = vector.broadcast %55 : vector<6x1xf32> to vector<6x2xf32>
    %57 = arith.subf %39, %56 : vector<6x2xf32>
    %58 = math.exp %57 : vector<6x2xf32>
    %cst_27 = arith.constant dense<0.000000e+00> : vector<6xf32>
    %59 = vector.multi_reduction <add>, %58, %cst_27 [1] : vector<6x2xf32> to vector<6xf32>
    %60 = vector.shape_cast %59 : vector<6xf32> to vector<6x1xf32>
    %61 = vector.broadcast %60 : vector<6x1xf32> to vector<6x2xf32>
    %62 = arith.divf %58, %61 : vector<6x2xf32>
    %c0_28 = arith.constant 0 : index
    %c0_29 = arith.constant 0 : index
    %63 = vector.load %arg9[%c0_28, %c0_29] : memref<6x2xf32, #tpu.memory_space<vmem>>, vector<6x2xf32>
    tpu.vector_store %arg9[%c0_28, %c0_29], %62 {strides = array<i32>} : memref<6x2xf32, #tpu.memory_space<vmem>>, vector<6x2xf32>,
    return
  }
  func.func @transform_0(%arg0: i32) -> i32 {
    %c0_i32 = arith.constant 0 : i32
    %c0_i32_0 = arith.constant 0 : i32
    return %c0_i32 : i32
  }
  func.func @transform_1(%arg0: i32) -> (i32, i32, i32) {
    %c0_i32 = arith.constant 0 : i32
    %c0_i32_0 = arith.constant 0 : i32
    %c0_i32_1 = arith.constant 0 : i32
    %c0_i32_2 = arith.constant 0 : i32
    return %c0_i32, %c0_i32_0, %c0_i32_1 : i32, i32, i32
  }
  func.func @transform_2(%arg0: i32) -> (i32, i32, i32) {
    %c0_i32 = arith.constant 0 : i32
    %c0_i32_0 = arith.constant 0 : i32
    %c0_i32_1 = arith.constant 0 : i32
    %c0_i32_2 = arith.constant 0 : i32
    return %c0_i32, %c0_i32_0, %c0_i32_1 : i32, i32, i32
  }
  func.func @transform_3(%arg0: i32) -> (i32, i32, i32) {
    %c0_i32 = arith.constant 0 : i32
    %c0_i32_0 = arith.constant 0 : i32
    %c0_i32_1 = arith.constant 0 : i32
    %c0_i32_2 = arith.constant 0 : i32
    return %c0_i32, %c0_i32_0, %c0_i32_1 : i32, i32, i32
  }
  func.func @transform_4(%arg0: i32) -> (i32, i32) {
    %c0_i32 = arith.constant 0 : i32
    %c0_i32_0 = arith.constant 0 : i32
    %c0_i32_1 = arith.constant 0 : i32
    return %c0_i32, %c0_i32_0 : i32, i32
  }
  func.func @transform_5(%arg0: i32) -> (i32, i32) {
    %c0_i32 = arith.constant 0 : i32
    %c0_i32_0 = arith.constant 0 : i32
    %c0_i32_1 = arith.constant 0 : i32
    return %c0_i32, %c0_i32_0 : i32, i32
  }
  func.func @transform_6(%arg0: i32) -> (i32, i32) {
    %c0_i32 = arith.constant 0 : i32
    %c0_i32_0 = arith.constant 0 : i32
    %c0_i32_1 = arith.constant 0 : i32
    return %c0_i32, %c0_i32_0 : i32, i32
  }
  func.func @transform_7(%arg0: i32) -> (i32, i32) {
    %c0_i32 = arith.constant 0 : i32
    %c0_i32_0 = arith.constant 0 : i32
    %c0_i32_1 = arith.constant 0 : i32
    return %c0_i32, %c0_i32_0 : i32, i32
  }
  func.func @transform_8(%arg0: i32) -> (i32, i32) {
    %c0_i32 = arith.constant 0 : i32
    %c0_i32_0 = arith.constant 0 : i32
    %c0_i32_1 = arith.constant 0 : i32
    return %c0_i32, %c0_i32_0 : i32, i32
  }
}

</mosaic_0001>

<llo_original>
// kernel: bidaf_forward.5
$region0: #{bidaf_forward.5}
  #allocation0 [shape = 'u32[]', space=smem, size = 0x4, offset = 0x4, fixed_abs, tag = 'smem constant byte address 0x4 - core index']
  #allocation1 [shape = 'u32[144,128]{1,0:T(1,128)}', space=vmem, size = 0x12000, scoped, tag = 'internal scratch']
  %s0 = inlined_call_operand.vmem [shape: s32[4], index: 0, kind: input, shape index: {}]
  %s1 = inlined_call_operand.vmem [shape: f32[4,6,2,32], index: 1, kind: input, shape index: {}]
  %s2 = inlined_call_operand.vmem [shape: f32[4,8,32], index: 2, kind: input, shape index: {}]
  %s3 = inlined_call_operand.vmem [shape: f32[4,6,2,8], index: 3, kind: output, shape index: {}]
  %s4 = sld [smem:[#allocation0]]
  $region56: #{bidaf_forward.5} parent=0
    _
  %s6 = ssub.s32 1, %s4
  %s7 = scalar_select 0, %s6, %s4
  $region1: #{bidaf_forward.5} parent=0
    #allocation2 [shape = 'u8[512]{0}', space=smem, size = 0x200, scoped, tag = 'input window, operand 0, single buffered']
    #allocation3 [shape = 's32[2]{0}', space=sflag, size = 0x8, scoped, tag = 'scoped memory for bidaf_forward.5']
    %8 = vsyncpa [#allocation3], 0
    loop: start=0, step=1, limit=6
    $region2: #{bidaf_forward.5} parent=1 // loop_pre_header
      _
    $region3: #{bidaf_forward.5} parent=1 // loop_header
      %s10 = sphi 0, %s14
      %p11 = scmp.ge.s32.totalorder %s10, 6
      %s18 = sphi 0, %s18
      %s20 = sphi 0, %s18
      %s21 = sphi 0, %s20
      %s35 = sphi 0, %s21
      %s41 = sphi 0, %s43
      %s44 = sphi 0, %s41
      %s45 = sphi 0, %s44
      %s61 = sphi 0, %s45
      %s67 = sphi 0, %s69
      %s70 = sphi 0, %s67
      %s71 = sphi 0, %s70
      %s87 = sphi 0, %s71
      %s93 = sphi 0, %s95
      %s96 = sphi 0, %s93
      %s97 = sphi 0, %s96
      %s113 = sphi 0, %s97
    $region4: #{bidaf_forward.5} parent=1 // loop_header_branch
      %13 = sbr.rel (%p11) target = $region8
    $region5: #{bidaf_forward.5} parent=1 // loop_body
      %s15 = ssub.s32 %s10, 1
      %s16 = ssub.s32 %s10, 2
      %s17 = sadd.s32 %s10, 1
      %s19 = sadd.s32 %s18, 1
      %p22 = scmp.eq.s32.totalorder %s10, 3
      %p23 = scmp.ne.s32.totalorder %s18, %s20
      %p24 = scmp.eq.s32.totalorder %s10, 0
      %p25 = por %p23, %p24
      %p26 = scmp.ne.s32.totalorder %s18, %s20
      %p27 = scmp.eq.s32.totalorder %s15, 3
      %p28 = por %p26, %p27
      %p29 = scmp.ne.s32.totalorder %s20, %s21
      %p30 = scmp.eq.s32.totalorder %s15, 0
      %p31 = por %p29, %p30
      %p32 = scmp.ne.s32.totalorder %s20, %s21
      %p33 = scmp.eq.s32.totalorder %s16, 3
      %p34 = por %p32, %p33
      %p36 = scmp.ne.s32.totalorder %s21, %s35
      %p37 = scmp.eq.s32.totalorder %s16, 0
      %p38 = por %p36, %p37
      %s39 = ssub.s32 %s10, %s17
      %p40 = scmp.eq.s32.totalorder %s39, 0
      %s42 = sadd.s32 %s41, 1
      %s43 = scalar_select %p40, %s41, %s42
      %p46 = pneg %p40
      %p47 = scmp.eq.s32.totalorder %s10, 3
      %p48 = por %p46, %p47
      %p49 = scmp.ne.s32.totalorder %s41, %s44
      %p50 = scmp.eq.s32.totalorder %s10, 0
      %p51 = por %p49, %p50
      %p52 = scmp.ne.s32.totalorder %s41, %s44
      %p53 = scmp.eq.s32.totalorder %s15, 3
      %p54 = por %p52, %p53
      %p55 = scmp.ne.s32.totalorder %s44, %s45
      %p56 = scmp.eq.s32.totalorder %s15, 0
      %p57 = por %p55, %p56
      %p58 = scmp.ne.s32.totalorder %s44, %s45
      %p59 = scmp.eq.s32.totalorder %s16, 3
      %p60 = por %p58, %p59
      %p62 = scmp.ne.s32.totalorder %s45, %s61
      %p63 = scmp.eq.s32.totalorder %s16, 0
      %p64 = por %p62, %p63
      %s65 = ssub.s32 %s10, %s17
      %p66 = scmp.eq.s32.totalorder %s65, 0
      %s68 = sadd.s32 %s67, 1
      %s69 = scalar_select %p66, %s67, %s68
      %p72 = pneg %p66
      %p73 = scmp.eq.s32.totalorder %s10, 3
      %p74 = por %p72, %p73
      %p75 = scmp.ne.s32.totalorder %s67, %s70
      %p76 = scmp.eq.s32.totalorder %s10, 0
      %p77 = por %p75, %p76
      %p78 = scmp.ne.s32.totalorder %s67, %s70
      %p79 = scmp.eq.s32.totalorder %s15, 3
      %p80 = por %p78, %p79
      %p81 = scmp.ne.s32.totalorder %s70, %s71
      %p82 = scmp.eq.s32.totalorder %s15, 0
      %p83 = por %p81, %p82
      %p84 = scmp.ne.s32.totalorder %s70, %s71
      %p85 = scmp.eq.s32.totalorder %s16, 3
      %p86 = por %p84, %p85
      %p88 = scmp.ne.s32.totalorder %s71, %s87
      %p89 = scmp.eq.s32.totalorder %s16, 0
      %p90 = por %p88, %p89
      %s91 = ssub.s32 %s10, %s17
      %p92 = scmp.eq.s32.totalorder %s91, 0
      %s94 = sadd.s32 %s93, 1
      %s95 = scalar_select %p92, %s93, %s94
      %p98 = pneg %p92
      %p99 = scmp.eq.s32.totalorder %s10, 3
      %p100 = por %p98, %p99
      %p101 = scmp.ne.s32.totalorder %s93, %s96
      %p102 = scmp.eq.s32.totalorder %s10, 0
      %p103 = por %p101, %p102
      %p104 = scmp.ne.s32.totalorder %s93, %s96
      %p105 = scmp.eq.s32.totalorder %s15, 3
      %p106 = por %p104, %p105
      %p107 = scmp.ne.s32.totalorder %s96, %s97
      %p108 = scmp.eq.s32.totalorder %s15, 0
      %p109 = por %p107, %p108
      %p110 = scmp.ne.s32.totalorder %s96, %s97
      %p111 = scmp.eq.s32.totalorder %s16, 3
      %p112 = por %p110, %p111
      %p114 = scmp.ne.s32.totalorder %s97, %s113
      %p115 = scmp.eq.s32.totalorder %s16, 0
      %p116 = por %p114, %p115
      %p117 = scmp.le.s32.totalorder 1, %s10
      %p118 = scmp.lt.s32.totalorder %s10, 5
      %p119 = pnand %p117, %p118
      %p120 = pneg %p119
      // Predicated region
      $region9: #{bidaf_forward.5} parent=5 // pred_check
        _
      $region10: #{bidaf_forward.5} parent=5 // pred_check_branch
        %122 = sbr.rel (%p119) target = $region12
      $region11: #{bidaf_forward.5} parent=5 // pred_region
        %s123 = ssub.s32 %s10, 1
        // Predicated region
        $region13: #{bidaf_forward.5} parent=11 // pred_check
          %p124 = pneg %p31
        $region14: #{bidaf_forward.5} parent=11 // pred_check_branch
          %126 = sbr.rel (%p124) target = $region16
        $region15: #{bidaf_forward.5} parent=11 // pred_region
          %s128 = ssub.s32 16, 16
          %129 = vsyncadd [#allocation3], %s128
          %s131 = sshll.u32 %s0, 4
          %s132 = int_to_ptr.vmem [resolvable:$true] %s131
          %134 = dma.vmem_to_smem %s132, 16, [#allocation2], [#allocation3]
        $region16: #{bidaf_forward.5} parent=11 // pred_fallthru
          _
      $region12: #{bidaf_forward.5} parent=5 // pred_fallthru
        _
      %p135 = scmp.lt.s32.totalorder %s10, 4
      // Predicated region
      $region17: #{bidaf_forward.5} parent=5 // pred_check
        %p136 = pneg %p135
      $region18: #{bidaf_forward.5} parent=5 // pred_check_branch
        %138 = sbr.rel (%p136) target = $region20
      $region19: #{bidaf_forward.5} parent=5 // pred_region
        // Predicated region
        $region21: #{bidaf_forward.5} parent=19 // pred_check
          %p139 = pneg %p51
        $region22: #{bidaf_forward.5} parent=19 // pred_check_branch
          %141 = sbr.rel (%p139) target = $region24
        $region23: #{bidaf_forward.5} parent=19 // pred_region
          %p142 = scmp.lt.s32.totalorder %s10, 3
          %s143 = scalar_select %p142, %s10, 3
          %s144 = smul.addr %s143, 6
          %s145 = smul.addr %s144, 2
          %s146 = scalar_lea.vmem %s1, %s145
        $region24: #{bidaf_forward.5} parent=19 // pred_fallthru
          _
        // Predicated region
        $region25: #{bidaf_forward.5} parent=19 // pred_check
          %p147 = pneg %p77
        $region26: #{bidaf_forward.5} parent=19 // pred_check_branch
          %149 = sbr.rel (%p147) target = $region28
        $region27: #{bidaf_forward.5} parent=19 // pred_region
          %p150 = scmp.lt.s32.totalorder %s10, 3
          %s151 = scalar_select %p150, %s10, 3
          %s152 = smul.addr %s151, 8
          %s153 = scalar_lea.vmem %s2, %s152
        $region28: #{bidaf_forward.5} parent=19 // pred_fallthru
          _
      $region20: #{bidaf_forward.5} parent=5 // pred_fallthru
        _
      %p154 = scmp.le.s32.totalorder 1, %s10
      %p155 = scmp.lt.s32.totalorder %s10, 5
      %p156 = pnand %p154, %p155
      %p157 = pneg %p156
      // Predicated region
      $region29: #{bidaf_forward.5} parent=5 // pred_check
        _
      $region30: #{bidaf_forward.5} parent=5 // pred_check_branch
        %159 = sbr.rel (%p156) target = $region32
      $region31: #{bidaf_forward.5} parent=5 // pred_region
        %s160 = ssub.s32 %s10, 1
        // Predicated region
        $region33: #{bidaf_forward.5} parent=31 // pred_check
          %p161 = pneg %p31
        $region34: #{bidaf_forward.5} parent=31 // pred_check_branch
          %163 = sbr.rel (%p161) target = $region36
        $region35: #{bidaf_forward.5} parent=31 // pred_region
          %164 = dma.done [#allocation3], 16
        $region36: #{bidaf_forward.5} parent=31 // pred_fallthru
          _
        %165 = sfence
        %p166 = pneg %p31
        %p167 = pneg %p28
        %p168 = scmp.lt.s32.totalorder %s15, 3
        %s169 = scalar_select %p168, %s15, 3
        %s170 = smul.addr %s169, 6
        %s171 = smul.addr %s170, 2
        %s172 = scalar_lea.vmem %s1, %s171
        %p173 = pneg %p57
        %p174 = pneg %p54
        %p175 = scmp.lt.s32.totalorder %s15, 3
        %s176 = scalar_select %p175, %s15, 3
        %s177 = smul.addr %s176, 8
        %s178 = scalar_lea.vmem %s2, %s177
        %p179 = pneg %p83
        %p180 = pneg %p80
        %p181 = pneg %p109
        %p182 = pneg %p106
        %p183 = scmp.lt.s32.totalorder %s15, 3
        %s184 = scalar_select %p183, %s15, 3
        %s185 = smul.addr %s184, 6
        %s186 = smul.addr %s185, 2
        %s187 = scalar_lea.vmem %s3, %s186
        %p188 = scmp.lt.s32.totalorder %s15, 3
        %s189 = scalar_select %p188, %s15, 3
        %s190 = smul.addr %s189, 6
        %s191 = smul.addr %s190, 2
        %s192 = scalar_lea.vmem %s1, %s191
        %p193 = scmp.lt.s32.totalorder %s15, 3
        %s194 = scalar_select %p193, %s15, 3
        %s195 = smul.addr %s194, 8
        %s196 = scalar_lea.vmem %s2, %s195
        %p197 = scmp.lt.s32.totalorder %s15, 3
        %s198 = scalar_select %p197, %s15, 3
        %s199 = smul.addr %s198, 6
        %s200 = smul.addr %s199, 2
        %s201 = scalar_lea.vmem %s3, %s200
        %s202 = sld [smem:[#allocation2 + %s15]]
        %p203 = scmp.lt.s32.totalorder %s15, 0
        %s204 = ssub.s32 0, %s15
        %s205 = scalar_select %p203, %s204, %s15
        %s206 = sand.u32 %s205, 1
        %s207 = ssub.s32 0, %s206
        %s208 = scalar_select %p203, %s207, %s206
        %p209 = scmp.ne.s32.totalorder %s208, 0
        %p210 = scmp.lt.s32.totalorder %s208, 0
        %p211 = pnand %p210, %p209
        %p212 = pneg %p211
        %s213 = sadd.s32 %s208, 2
        %s214 = scalar_select %p212, %s213, %s208
        %v215 = vld [vmem:[%s196] sm:$0xff]
        loop: start=0, step=1, limit=6
        $region37: #{bidaf_forward.5} parent=31 // loop_pre_header
          _
        $region38: #{bidaf_forward.5} parent=31 // loop_header
          %s217 = sphi 0, %s221
          %p218 = scmp.ge.s32.totalorder %s217, 6
          %v222 = vphi 0.0, %v338
          %v223 = vphi 0.0, %v339
        $region39: #{bidaf_forward.5} parent=31 // loop_header_branch
          %220 = sbr.rel (%p218) target = $region43
        $region40: #{bidaf_forward.5} parent=31 // loop_body
          %p224 = scmp.eq.s32.totalorder %s214, 1
          %s225 = ssub.s32 %s202, 1
          %s226 = ssub.s32 %s225, %s217
          %p227 = scmp.gt.s32.totalorder %s226, 0
          %s228 = scalar_select %p227, %s226, 0
          %s229 = scalar_select %p224, %s228, %s217
          %s230 = smul.u32 %s229, 2
          %s231 = scalar_lea.vmem %s192, %s230
          %v232 = vld [vmem:[%s231] sm:$0x3]
          %234 = vrot.lane.b32.xlu0 %v222, 104
          %v235 = vpop.permute.xlu0 %234
          %vm236 = vcmask 64512
          %v237 = vsel %vm236, %v235, 0
          %239 = vmatprep.subr.mxu0 0.0
          %240 = vmatpush1.msra.mxu0 %v215
          %241 = vmatprep.subr.mxu0 0.0
          %242 = vmatpush1.msra.mxu0 0.0
          %243 = vmatprep.subr.mxu0 0.0
          %244 = vmatpush1.msra.mxu0 0.0
          %245 = vmatprep.subr.mxu0 0.0
          %246 = vmatpush1.msra.mxu0 0.0
          %247 = vmatprep.subr.mxu0 0.0
          %248 = vmatpush1.msra.mxu0 0.0
          %249 = vmatprep.subr.mxu0 0.0
          %250 = vmatpush1.msra.mxu0 0.0
          %251 = vmatprep.subr.mxu0 0.0
          %252 = vmatpush1.msra.mxu0 0.0
          %253 = vmatprep.subr.mxu0 0.0
          %254 = vmatpush1.msra.mxu0 0.0
          %255 = vmatprep.subr.mxu0 0.0
          %256 = vmatpush1.msra.mxu0 0.0
          %257 = vmatprep.subr.mxu0 0.0
          %258 = vmatpush1.msra.mxu0 0.0
          %259 = vmatprep.subr.mxu0 0.0
          %260 = vmatpush1.msra.mxu0 0.0
          %261 = vmatprep.subr.mxu0 0.0
          %262 = vmatpush1.msra.mxu0 0.0
          %263 = vmatprep.subr.mxu0 0.0
          %264 = vmatpush1.msra.mxu0 0.0
          %265 = vmatprep.subr.mxu0 0.0
          %266 = vmatpush1.msra.mxu0 0.0
          %267 = vmatprep.subr.mxu0 0.0
          %268 = vmatpush1.msra.mxu0 0.0
          %269 = vmatprep.subr.mxu0 0.0
          %270 = vmatpush1.msra.mxu0 0.0
          %271 = vmatprep.subr.mxu0 0.0
          %272 = vmatpush1.msra.mxu0 0.0
          %273 = vmatprep.subr.mxu0 0.0
          %274 = vmatpush1.msra.mxu0 0.0
          %275 = vmatprep.subr.mxu0 0.0
          %276 = vmatpush1.msra.mxu0 0.0
          %277 = vmatprep.subr.mxu0 0.0
          %278 = vmatpush1.msra.mxu0 0.0
          %279 = vmatprep.subr.mxu0 0.0
          %280 = vmatpush1.msra.mxu0 0.0
          %281 = vmatprep.subr.mxu0 0.0
          %282 = vmatpush1.msra.mxu0 0.0
          %283 = vmatprep.subr.mxu0 0.0
          %284 = vmatpush1.msra.mxu0 0.0
          %285 = vmatprep.subr.mxu0 0.0
          %286 = vmatpush1.msra.mxu0 0.0
          %287 = vmatprep.subr.mxu0 0.0
          %288 = vmatpush1.msra.mxu0 0.0
          %289 = vmatprep.subr.mxu0 0.0
          %290 = vmatpush1.msra.mxu0 0.0
          %291 = vmatprep.subr.mxu0 0.0
          %292 = vmatpush1.msra.mxu0 0.0
          %293 = vmatprep.subr.mxu0 0.0
          %294 = vmatpush1.msra.mxu0 0.0
          %295 = vmatprep.subr.mxu0 0.0
          %296 = vmatpush1.msra.mxu0 0.0
          %297 = vmatprep.subr.mxu0 0.0
          %298 = vmatpush1.msra.mxu0 0.0
          %299 = vmatprep.subr.mxu0 0.0
          %300 = vmatpush1.msra.mxu0 0.0
          %301 = vmatprep.subr.mxu0 0.0
          %302 = vmatpush1.msra.mxu0 0.0
          %303 = vmatprep.mubr.f32.mxu0 0.0
          %304 = vmatmul.mubr.f32.gmra.mrb[0].mxu0 %v237
          %v305 = vpop.f32.mrb[0].mxu0
          %v306 = vadd.f32 0.0, %v305
          %v307 = vpop.f32.mrb[0].mxu0
          %308 = vdwg.mxu0
          %v309 = vadd.f32 %v232, %v306
          %v310 = vxor.u32 %v309, 2147483648
          %v311 = vmul.f32 %v310, 1.442695
          %v312 = vpow.pop %v311
          %v313 = vadd.f32 %v312, 1.0
          %v314 = vrcp.pop %v313
          %v315 = vmul.f32 1.0, %v314
          %v316 = vtanh.pop %v309
          %v317 = vmul.f32 %v315, %v223
          %319 = vrot.lane.b32.xlu0 %v316, 112
          %v320 = vpop.permute.xlu0 %319
          %v322 = vmul.f32 %v315, %v320
          %324 = vrot.lane.b32.xlu0 %v322, 8
          %v325 = vpop.permute.xlu0 %324
          %v327 = vadd.f32 %v317, %v325
          %v328 = vtanh.pop %v327
          %330 = vrot.lane.b32.xlu0 %v328, 16
          %v331 = vpop.permute.xlu0 %330
          %v333 = vmul.f32 %v315, %v331
          %p334 = scmp.lt.s32.totalorder %s217, %s202
          %s335 = scalar_select %p334, 1, 0
          %v336 = vstv %s335
          %vm337 = vcmp.eq.s32.totalorder %v336, 1
          %v338 = vsel %vm337, %v333, %v222
          %v339 = vsel %vm337, %v327, %v223
          %341 = vrot.lane.b32.xlu0 %v338, 104
          %v342 = vpop.permute.xlu0 %341
          %s344 = scalar_lea.vmem %s201, %s230
          %vm345 = vcmask 58368
          %346 = vst.msk [vmem:[%s344] sm:$0x3] %vm345, %v342
        $region41: #{bidaf_forward.5} parent=31 // loop_footer
          %s221 = sadd.s32 1, %s217
        $region42: #{bidaf_forward.5} parent=31 // loop_footer_branch
          %216 = sbr.rel target = $region38
        $region43: #{bidaf_forward.5} parent=31 // loop_exit
          _
        %p347 = scmp.lt.s32.totalorder %s15, 3
        %s348 = scalar_select %p347, %s15, 3
        %s349 = smul.addr %s348, 6
        %s350 = smul.addr %s349, 2
        %s351 = scalar_lea.vmem %s3, %s350
        // Predicated region
        $region44: #{bidaf_forward.5} parent=31 // pred_check
          %p352 = pneg %p106
        $region45: #{bidaf_forward.5} parent=31 // pred_check_branch
          %354 = sbr.rel (%p352) target = $region47
        $region46: #{bidaf_forward.5} parent=31 // pred_region
          _
        $region47: #{bidaf_forward.5} parent=31 // pred_fallthru
          _
      $region32: #{bidaf_forward.5} parent=5 // pred_fallthru
        _
      %p355 = scmp.le.s32.totalorder 2, %s10
      // Predicated region
      $region48: #{bidaf_forward.5} parent=5 // pred_check
        %p356 = pneg %p355
      $region49: #{bidaf_forward.5} parent=5 // pred_check_branch
        %358 = sbr.rel (%p356) target = $region51
      $region50: #{bidaf_forward.5} parent=5 // pred_region
        %s359 = ssub.s32 %s10, 2
        // Predicated region
        $region52: #{bidaf_forward.5} parent=50 // pred_check
          %p360 = pneg %p112
        $region53: #{bidaf_forward.5} parent=50 // pred_check_branch
          %362 = sbr.rel (%p360) target = $region55
        $region54: #{bidaf_forward.5} parent=50 // pred_region
          %p363 = scmp.lt.s32.totalorder %s16, 3
          %s364 = scalar_select %p363, %s16, 3
          %s365 = smul.addr %s364, 6
          %s366 = smul.addr %s365, 2
          %s367 = scalar_lea.vmem %s3, %s366
        $region55: #{bidaf_forward.5} parent=50 // pred_fallthru
          _
      $region51: #{bidaf_forward.5} parent=5 // pred_fallthru
        _
    $region6: #{bidaf_forward.5} parent=1 // loop_footer
      %s14 = sadd.s32 1, %s10
    $region7: #{bidaf_forward.5} parent=1 // loop_footer_branch
      %9 = sbr.rel target = $region3
    $region8: #{bidaf_forward.5} parent=1 // loop_exit
      _
    %368 = vsyncpa [#allocation3], 1
    %s369 = scalar_lea.sflag [#allocation3], 1
    %370 = vsyncpa %s369, 1

// kernel: bidaf_forward.7
$region0: #{bidaf_forward.7}
  #allocation0 [shape = 'u32[]', space=smem, size = 0x4, offset = 0x4, fixed_abs, tag = 'smem constant byte address 0x4 - core index']
  #allocation1 [shape = 'u32[144,128]{1,0:T(1,128)}', space=vmem, size = 0x12000, scoped, tag = 'internal scratch']
  %s0 = inlined_call_operand.vmem [shape: s32[2], index: 0, kind: input, shape index: {}]
  %s1 = inlined_call_operand.vmem [shape: f32[2,6,2,32], index: 1, kind: input, shape index: {}]
  %s2 = inlined_call_operand.vmem [shape: f32[2,8,32], index: 2, kind: input, shape index: {}]
  %s3 = inlined_call_operand.vmem [shape: f32[2,6,2,8], index: 3, kind: output, shape index: {}]
  %s4 = sld [smem:[#allocation0]]
  $region56: #{bidaf_forward.7} parent=0
    _
  %s6 = ssub.s32 1, %s4
  %s7 = scalar_select 0, %s6, %s4
  $region1: #{bidaf_forward.7} parent=0
    #allocation2 [shape = 'u8[512]{0}', space=smem, size = 0x200, scoped, tag = 'input window, operand 0, single buffered']
    #allocation3 [shape = 's32[2]{0}', space=sflag, size = 0x8, scoped, tag = 'scoped memory for bidaf_forward.7']
    %8 = vsyncpa [#allocation3], 0
    loop: start=0, step=1, limit=4
    $region2: #{bidaf_forward.7} parent=1 // loop_pre_header
      _
    $region3: #{bidaf_forward.7} parent=1 // loop_header
      %s10 = sphi 0, %s14
      %p11 = scmp.ge.s32.totalorder %s10, 4
      %s18 = sphi 0, %s18
      %s20 = sphi 0, %s18
      %s21 = sphi 0, %s20
      %s35 = sphi 0, %s21
      %s41 = sphi 0, %s43
      %s44 = sphi 0, %s41
      %s45 = sphi 0, %s44
      %s61 = sphi 0, %s45
      %s67 = sphi 0, %s69
      %s70 = sphi 0, %s67
      %s71 = sphi 0, %s70
      %s87 = sphi 0, %s71
      %s93 = sphi 0, %s95
      %s96 = sphi 0, %s93
      %s97 = sphi 0, %s96
      %s113 = sphi 0, %s97
    $region4: #{bidaf_forward.7} parent=1 // loop_header_branch
      %13 = sbr.rel (%p11) target = $region8
    $region5: #{bidaf_forward.7} parent=1 // loop_body
      %s15 = ssub.s32 %s10, 1
      %s16 = ssub.s32 %s10, 2
      %s17 = sadd.s32 %s10, 1
      %s19 = sadd.s32 %s18, 1
      %p22 = scmp.eq.s32.totalorder %s10, 1
      %p23 = scmp.ne.s32.totalorder %s18, %s20
      %p24 = scmp.eq.s32.totalorder %s10, 0
      %p25 = por %p23, %p24
      %p26 = scmp.ne.s32.totalorder %s18, %s20
      %p27 = scmp.eq.s32.totalorder %s15, 1
      %p28 = por %p26, %p27
      %p29 = scmp.ne.s32.totalorder %s20, %s21
      %p30 = scmp.eq.s32.totalorder %s15, 0
      %p31 = por %p29, %p30
      %p32 = scmp.ne.s32.totalorder %s20, %s21
      %p33 = scmp.eq.s32.totalorder %s16, 1
      %p34 = por %p32, %p33
      %p36 = scmp.ne.s32.totalorder %s21, %s35
      %p37 = scmp.eq.s32.totalorder %s16, 0
      %p38 = por %p36, %p37
      %s39 = ssub.s32 %s10, %s17
      %p40 = scmp.eq.s32.totalorder %s39, 0
      %s42 = sadd.s32 %s41, 1
      %s43 = scalar_select %p40, %s41, %s42
      %p46 = pneg %p40
      %p47 = scmp.eq.s32.totalorder %s10, 1
      %p48 = por %p46, %p47
      %p49 = scmp.ne.s32.totalorder %s41, %s44
      %p50 = scmp.eq.s32.totalorder %s10, 0
      %p51 = por %p49, %p50
      %p52 = scmp.ne.s32.totalorder %s41, %s44
      %p53 = scmp.eq.s32.totalorder %s15, 1
      %p54 = por %p52, %p53
      %p55 = scmp.ne.s32.totalorder %s44, %s45
      %p56 = scmp.eq.s32.totalorder %s15, 0
      %p57 = por %p55, %p56
      %p58 = scmp.ne.s32.totalorder %s44, %s45
      %p59 = scmp.eq.s32.totalorder %s16, 1
      %p60 = por %p58, %p59
      %p62 = scmp.ne.s32.totalorder %s45, %s61
      %p63 = scmp.eq.s32.totalorder %s16, 0
      %p64 = por %p62, %p63
      %s65 = ssub.s32 %s10, %s17
      %p66 = scmp.eq.s32.totalorder %s65, 0
      %s68 = sadd.s32 %s67, 1
      %s69 = scalar_select %p66, %s67, %s68
      %p72 = pneg %p66
      %p73 = scmp.eq.s32.totalorder %s10, 1
      %p74 = por %p72, %p73
      %p75 = scmp.ne.s32.totalorder %s67, %s70
      %p76 = scmp.eq.s32.totalorder %s10, 0
      %p77 = por %p75, %p76
      %p78 = scmp.ne.s32.totalorder %s67, %s70
      %p79 = scmp.eq.s32.totalorder %s15, 1
      %p80 = por %p78, %p79
      %p81 = scmp.ne.s32.totalorder %s70, %s71
      %p82 = scmp.eq.s32.totalorder %s15, 0
      %p83 = por %p81, %p82
      %p84 = scmp.ne.s32.totalorder %s70, %s71
      %p85 = scmp.eq.s32.totalorder %s16, 1
      %p86 = por %p84, %p85
      %p88 = scmp.ne.s32.totalorder %s71, %s87
      %p89 = scmp.eq.s32.totalorder %s16, 0
      %p90 = por %p88, %p89
      %s91 = ssub.s32 %s10, %s17
      %p92 = scmp.eq.s32.totalorder %s91, 0
      %s94 = sadd.s32 %s93, 1
      %s95 = scalar_select %p92, %s93, %s94
      %p98 = pneg %p92
      %p99 = scmp.eq.s32.totalorder %s10, 1
      %p100 = por %p98, %p99
      %p101 = scmp.ne.s32.totalorder %s93, %s96
      %p102 = scmp.eq.s32.totalorder %s10, 0
      %p103 = por %p101, %p102
      %p104 = scmp.ne.s32.totalorder %s93, %s96
      %p105 = scmp.eq.s32.totalorder %s15, 1
      %p106 = por %p104, %p105
      %p107 = scmp.ne.s32.totalorder %s96, %s97
      %p108 = scmp.eq.s32.totalorder %s15, 0
      %p109 = por %p107, %p108
      %p110 = scmp.ne.s32.totalorder %s96, %s97
      %p111 = scmp.eq.s32.totalorder %s16, 1
      %p112 = por %p110, %p111
      %p114 = scmp.ne.s32.totalorder %s97, %s113
      %p115 = scmp.eq.s32.totalorder %s16, 0
      %p116 = por %p114, %p115
      %p117 = scmp.le.s32.totalorder 1, %s10
      %p118 = scmp.lt.s32.totalorder %s10, 3
      %p119 = pnand %p117, %p118
      %p120 = pneg %p119
      // Predicated region
      $region9: #{bidaf_forward.7} parent=5 // pred_check
        _
      $region10: #{bidaf_forward.7} parent=5 // pred_check_branch
        %122 = sbr.rel (%p119) target = $region12
      $region11: #{bidaf_forward.7} parent=5 // pred_region
        %s123 = ssub.s32 %s10, 1
        // Predicated region
        $region13: #{bidaf_forward.7} parent=11 // pred_check
          %p124 = pneg %p31
        $region14: #{bidaf_forward.7} parent=11 // pred_check_branch
          %126 = sbr.rel (%p124) target = $region16
        $region15: #{bidaf_forward.7} parent=11 // pred_region
          %s128 = ssub.s32 16, 16
          %129 = vsyncadd [#allocation3], %s128
          %s131 = sshll.u32 %s0, 4
          %s132 = int_to_ptr.vmem [resolvable:$true] %s131
          %134 = dma.vmem_to_smem %s132, 16, [#allocation2], [#allocation3]
        $region16: #{bidaf_forward.7} parent=11 // pred_fallthru
          _
      $region12: #{bidaf_forward.7} parent=5 // pred_fallthru
        _
      %p135 = scmp.lt.s32.totalorder %s10, 2
      // Predicated region
      $region17: #{bidaf_forward.7} parent=5 // pred_check
        %p136 = pneg %p135
      $region18: #{bidaf_forward.7} parent=5 // pred_check_branch
        %138 = sbr.rel (%p136) target = $region20
      $region19: #{bidaf_forward.7} parent=5 // pred_region
        // Predicated region
        $region21: #{bidaf_forward.7} parent=19 // pred_check
          %p139 = pneg %p51
        $region22: #{bidaf_forward.7} parent=19 // pred_check_branch
          %141 = sbr.rel (%p139) target = $region24
        $region23: #{bidaf_forward.7} parent=19 // pred_region
          %p142 = scmp.lt.s32.totalorder %s10, 1
          %s143 = scalar_select %p142, %s10, 1
          %s144 = smul.addr %s143, 6
          %s145 = smul.addr %s144, 2
          %s146 = scalar_lea.vmem %s1, %s145
        $region24: #{bidaf_forward.7} parent=19 // pred_fallthru
          _
        // Predicated region
        $region25: #{bidaf_forward.7} parent=19 // pred_check
          %p147 = pneg %p77
        $region26: #{bidaf_forward.7} parent=19 // pred_check_branch
          %149 = sbr.rel (%p147) target = $region28
        $region27: #{bidaf_forward.7} parent=19 // pred_region
          %p150 = scmp.lt.s32.totalorder %s10, 1
          %s151 = scalar_select %p150, %s10, 1
          %s152 = smul.addr %s151, 8
          %s153 = scalar_lea.vmem %s2, %s152
        $region28: #{bidaf_forward.7} parent=19 // pred_fallthru
          _
      $region20: #{bidaf_forward.7} parent=5 // pred_fallthru
        _
      %p154 = scmp.le.s32.totalorder 1, %s10
      %p155 = scmp.lt.s32.totalorder %s10, 3
      %p156 = pnand %p154, %p155
      %p157 = pneg %p156
      // Predicated region
      $region29: #{bidaf_forward.7} parent=5 // pred_check
        _
      $region30: #{bidaf_forward.7} parent=5 // pred_check_branch
        %159 = sbr.rel (%p156) target = $region32
      $region31: #{bidaf_forward.7} parent=5 // pred_region
        %s160 = ssub.s32 %s10, 1
        // Predicated region
        $region33: #{bidaf_forward.7} parent=31 // pred_check
          %p161 = pneg %p31
        $region34: #{bidaf_forward.7} parent=31 // pred_check_branch
          %163 = sbr.rel (%p161) target = $region36
        $region35: #{bidaf_forward.7} parent=31 // pred_region
          %164 = dma.done [#allocation3], 16
        $region36: #{bidaf_forward.7} parent=31 // pred_fallthru
          _
        %165 = sfence
        %p166 = pneg %p31
        %p167 = pneg %p28
        %p168 = scmp.lt.s32.totalorder %s15, 1
        %s169 = scalar_select %p168, %s15, 1
        %s170 = smul.addr %s169, 6
        %s171 = smul.addr %s170, 2
        %s172 = scalar_lea.vmem %s1, %s171
        %p173 = pneg %p57
        %p174 = pneg %p54
        %p175 = scmp.lt.s32.totalorder %s15, 1
        %s176 = scalar_select %p175, %s15, 1
        %s177 = smul.addr %s176, 8
        %s178 = scalar_lea.vmem %s2, %s177
        %p179 = pneg %p83
        %p180 = pneg %p80
        %p181 = pneg %p109
        %p182 = pneg %p106
        %p183 = scmp.lt.s32.totalorder %s15, 1
        %s184 = scalar_select %p183, %s15, 1
        %s185 = smul.addr %s184, 6
        %s186 = smul.addr %s185, 2
        %s187 = scalar_lea.vmem %s3, %s186
        %p188 = scmp.lt.s32.totalorder %s15, 1
        %s189 = scalar_select %p188, %s15, 1
        %s190 = smul.addr %s189, 6
        %s191 = smul.addr %s190, 2
        %s192 = scalar_lea.vmem %s1, %s191
        %p193 = scmp.lt.s32.totalorder %s15, 1
        %s194 = scalar_select %p193, %s15, 1
        %s195 = smul.addr %s194, 8
        %s196 = scalar_lea.vmem %s2, %s195
        %p197 = scmp.lt.s32.totalorder %s15, 1
        %s198 = scalar_select %p197, %s15, 1
        %s199 = smul.addr %s198, 6
        %s200 = smul.addr %s199, 2
        %s201 = scalar_lea.vmem %s3, %s200
        %s202 = sld [smem:[#allocation2 + %s15]]
        %p203 = scmp.lt.s32.totalorder %s15, 0
        %s204 = ssub.s32 0, %s15
        %s205 = scalar_select %p203, %s204, %s15
        %s206 = sand.u32 %s205, 1
        %s207 = ssub.s32 0, %s206
        %s208 = scalar_select %p203, %s207, %s206
        %p209 = scmp.ne.s32.totalorder %s208, 0
        %p210 = scmp.lt.s32.totalorder %s208, 0
        %p211 = pnand %p210, %p209
        %p212 = pneg %p211
        %s213 = sadd.s32 %s208, 2
        %s214 = scalar_select %p212, %s213, %s208
        %v215 = vld [vmem:[%s196] sm:$0xff]
        loop: start=0, step=1, limit=6
        $region37: #{bidaf_forward.7} parent=31 // loop_pre_header
          _
        $region38: #{bidaf_forward.7} parent=31 // loop_header
          %s217 = sphi 0, %s221
          %p218 = scmp.ge.s32.totalorder %s217, 6
          %v222 = vphi 0.0, %v338
          %v223 = vphi 0.0, %v339
        $region39: #{bidaf_forward.7} parent=31 // loop_header_branch
          %220 = sbr.rel (%p218) target = $region43
        $region40: #{bidaf_forward.7} parent=31 // loop_body
          %p224 = scmp.eq.s32.totalorder %s214, 1
          %s225 = ssub.s32 %s202, 1
          %s226 = ssub.s32 %s225, %s217
          %p227 = scmp.gt.s32.totalorder %s226, 0
          %s228 = scalar_select %p227, %s226, 0
          %s229 = scalar_select %p224, %s228, %s217
          %s230 = smul.u32 %s229, 2
          %s231 = scalar_lea.vmem %s192, %s230
          %v232 = vld [vmem:[%s231] sm:$0x3]
          %234 = vrot.lane.b32.xlu0 %v222, 104
          %v235 = vpop.permute.xlu0 %234
          %vm236 = vcmask 64512
          %v237 = vsel %vm236, %v235, 0
          %239 = vmatprep.subr.mxu0 0.0
          %240 = vmatpush1.msra.mxu0 %v215
          %241 = vmatprep.subr.mxu0 0.0
          %242 = vmatpush1.msra.mxu0 0.0
          %243 = vmatprep.subr.mxu0 0.0
          %244 = vmatpush1.msra.mxu0 0.0
          %245 = vmatprep.subr.mxu0 0.0
          %246 = vmatpush1.msra.mxu0 0.0
          %247 = vmatprep.subr.mxu0 0.0
          %248 = vmatpush1.msra.mxu0 0.0
          %249 = vmatprep.subr.mxu0 0.0
          %250 = vmatpush1.msra.mxu0 0.0
          %251 = vmatprep.subr.mxu0 0.0
          %252 = vmatpush1.msra.mxu0 0.0
          %253 = vmatprep.subr.mxu0 0.0
          %254 = vmatpush1.msra.mxu0 0.0
          %255 = vmatprep.subr.mxu0 0.0
          %256 = vmatpush1.msra.mxu0 0.0
          %257 = vmatprep.subr.mxu0 0.0
          %258 = vmatpush1.msra.mxu0 0.0
          %259 = vmatprep.subr.mxu0 0.0
          %260 = vmatpush1.msra.mxu0 0.0
          %261 = vmatprep.subr.mxu0 0.0
          %262 = vmatpush1.msra.mxu0 0.0
          %263 = vmatprep.subr.mxu0 0.0
          %264 = vmatpush1.msra.mxu0 0.0
          %265 = vmatprep.subr.mxu0 0.0
          %266 = vmatpush1.msra.mxu0 0.0
          %267 = vmatprep.subr.mxu0 0.0
          %268 = vmatpush1.msra.mxu0 0.0
          %269 = vmatprep.subr.mxu0 0.0
          %270 = vmatpush1.msra.mxu0 0.0
          %271 = vmatprep.subr.mxu0 0.0
          %272 = vmatpush1.msra.mxu0 0.0
          %273 = vmatprep.subr.mxu0 0.0
          %274 = vmatpush1.msra.mxu0 0.0
          %275 = vmatprep.subr.mxu0 0.0
          %276 = vmatpush1.msra.mxu0 0.0
          %277 = vmatprep.subr.mxu0 0.0
          %278 = vmatpush1.msra.mxu0 0.0
          %279 = vmatprep.subr.mxu0 0.0
          %280 = vmatpush1.msra.mxu0 0.0
          %281 = vmatprep.subr.mxu0 0.0
          %282 = vmatpush1.msra.mxu0 0.0
          %283 = vmatprep.subr.mxu0 0.0
          %284 = vmatpush1.msra.mxu0 0.0
          %285 = vmatprep.subr.mxu0 0.0
          %286 = vmatpush1.msra.mxu0 0.0
          %287 = vmatprep.subr.mxu0 0.0
          %288 = vmatpush1.msra.mxu0 0.0
          %289 = vmatprep.subr.mxu0 0.0
          %290 = vmatpush1.msra.mxu0 0.0
          %291 = vmatprep.subr.mxu0 0.0
          %292 = vmatpush1.msra.mxu0 0.0
          %293 = vmatprep.subr.mxu0 0.0
          %294 = vmatpush1.msra.mxu0 0.0
          %295 = vmatprep.subr.mxu0 0.0
          %296 = vmatpush1.msra.mxu0 0.0
          %297 = vmatprep.subr.mxu0 0.0
          %298 = vmatpush1.msra.mxu0 0.0
          %299 = vmatprep.subr.mxu0 0.0
          %300 = vmatpush1.msra.mxu0 0.0
          %301 = vmatprep.subr.mxu0 0.0
          %302 = vmatpush1.msra.mxu0 0.0
          %303 = vmatprep.mubr.f32.mxu0 0.0
          %304 = vmatmul.mubr.f32.gmra.mrb[0].mxu0 %v237
          %v305 = vpop.f32.mrb[0].mxu0
          %v306 = vadd.f32 0.0, %v305
          %v307 = vpop.f32.mrb[0].mxu0
          %308 = vdwg.mxu0
          %v309 = vadd.f32 %v232, %v306
          %v310 = vxor.u32 %v309, 2147483648
          %v311 = vmul.f32 %v310, 1.442695
          %v312 = vpow.pop %v311
          %v313 = vadd.f32 %v312, 1.0
          %v314 = vrcp.pop %v313
          %v315 = vmul.f32 1.0, %v314
          %v316 = vtanh.pop %v309
          %v317 = vmul.f32 %v315, %v223
          %319 = vrot.lane.b32.xlu0 %v316, 112
          %v320 = vpop.permute.xlu0 %319
          %v322 = vmul.f32 %v315, %v320
          %324 = vrot.lane.b32.xlu0 %v322, 8
          %v325 = vpop.permute.xlu0 %324
          %v327 = vadd.f32 %v317, %v325
          %v328 = vtanh.pop %v327
          %330 = vrot.lane.b32.xlu0 %v328, 16
          %v331 = vpop.permute.xlu0 %330
          %v333 = vmul.f32 %v315, %v331
          %p334 = scmp.lt.s32.totalorder %s217, %s202
          %s335 = scalar_select %p334, 1, 0
          %v336 = vstv %s335
          %vm337 = vcmp.eq.s32.totalorder %v336, 1
          %v338 = vsel %vm337, %v333, %v222
          %v339 = vsel %vm337, %v327, %v223
          %341 = vrot.lane.b32.xlu0 %v338, 104
          %v342 = vpop.permute.xlu0 %341
          %s344 = scalar_lea.vmem %s201, %s230
          %vm345 = vcmask 58368
          %346 = vst.msk [vmem:[%s344] sm:$0x3] %vm345, %v342
        $region41: #{bidaf_forward.7} parent=31 // loop_footer
          %s221 = sadd.s32 1, %s217
        $region42: #{bidaf_forward.7} parent=31 // loop_footer_branch
          %216 = sbr.rel target = $region38
        $region43: #{bidaf_forward.7} parent=31 // loop_exit
          _
        %p347 = scmp.lt.s32.totalorder %s15, 1
        %s348 = scalar_select %p347, %s15, 1
        %s349 = smul.addr %s348, 6
        %s350 = smul.addr %s349, 2
        %s351 = scalar_lea.vmem %s3, %s350
        // Predicated region
        $region44: #{bidaf_forward.7} parent=31 // pred_check
          %p352 = pneg %p106
        $region45: #{bidaf_forward.7} parent=31 // pred_check_branch
          %354 = sbr.rel (%p352) target = $region47
        $region46: #{bidaf_forward.7} parent=31 // pred_region
          _
        $region47: #{bidaf_forward.7} parent=31 // pred_fallthru
          _
      $region32: #{bidaf_forward.7} parent=5 // pred_fallthru
        _
      %p355 = scmp.le.s32.totalorder 2, %s10
      // Predicated region
      $region48: #{bidaf_forward.7} parent=5 // pred_check
        %p356 = pneg %p355
      $region49: #{bidaf_forward.7} parent=5 // pred_check_branch
        %358 = sbr.rel (%p356) target = $region51
      $region50: #{bidaf_forward.7} parent=5 // pred_region
        %s359 = ssub.s32 %s10, 2
        // Predicated region
        $region52: #{bidaf_forward.7} parent=50 // pred_check
          %p360 = pneg %p112
        $region53: #{bidaf_forward.7} parent=50 // pred_check_branch
          %362 = sbr.rel (%p360) target = $region55
        $region54: #{bidaf_forward.7} parent=50 // pred_region
          %p363 = scmp.lt.s32.totalorder %s16, 1
          %s364 = scalar_select %p363, %s16, 1
          %s365 = smul.addr %s364, 6
          %s366 = smul.addr %s365, 2
          %s367 = scalar_lea.vmem %s3, %s366
        $region55: #{bidaf_forward.7} parent=50 // pred_fallthru
          _
      $region51: #{bidaf_forward.7} parent=5 // pred_fallthru
        _
    $region6: #{bidaf_forward.7} parent=1 // loop_footer
      %s14 = sadd.s32 1, %s10
    $region7: #{bidaf_forward.7} parent=1 // loop_footer_branch
      %9 = sbr.rel target = $region3
    $region8: #{bidaf_forward.7} parent=1 // loop_exit
      _
    %368 = vsyncpa [#allocation3], 1
    %s369 = scalar_lea.sflag [#allocation3], 1
    %370 = vsyncpa %s369, 1

// kernel: bidaf_forward.6
$region0: #{bidaf_forward.6}
  #allocation0 [shape = 'u32[]', space=smem, size = 0x4, offset = 0x4, fixed_abs, tag = 'smem constant byte address 0x4 - core index']
  #allocation1 [shape = 'u32[144,128]{1,0:T(1,128)}', space=vmem, size = 0x12000, scoped, tag = 'internal scratch']
  #allocation2 [shape = 'f32[1]{0:T(128)S(6)}', space=smem, size = 0x200, scoped, tag = 'scoped memory for bidaf_forward.6']
  %s0 = inlined_call_operand.<no memory space> [shape: f32[1], index: 0, kind: input, shape index: {}]
  %s1 = inlined_call_operand.vmem [shape: f32[2,6,16], index: 1, kind: input, shape index: {}]
  %s2 = inlined_call_operand.vmem [shape: f32[2,5,16], index: 2, kind: input, shape index: {}]
  %s3 = inlined_call_operand.vmem [shape: f32[3,1,16], index: 3, kind: input, shape index: {}]
  %s4 = inlined_call_operand.vmem [shape: f32[4,16,64], index: 4, kind: input, shape index: {}]
  %s5 = inlined_call_operand.vmem [shape: f32[1,64], index: 5, kind: input, shape index: {}]
  %s6 = inlined_call_operand.vmem [shape: f32[2,6,64], index: 6, kind: output, shape index: {}]
  %s7 = sld [smem:[#allocation0]]
  $region57: #{bidaf_forward.6} parent=0
    _
  %s9 = ssub.s32 1, %s7
  %s10 = scalar_select 0, %s9, %s7
  %11 = sst [smem:[#allocation2]] %s0
  loop: start=0, step=1, limit=4
  $region2: #{bidaf_forward.6} parent=0 // loop_pre_header
    _
  $region3: #{bidaf_forward.6} parent=0 // loop_header
    %s13 = sphi 0, %s17
    %p14 = scmp.ge.s32.totalorder %s13, 4
    %s21 = sphi 0, %s21
    %s23 = sphi 0, %s21
    %s24 = sphi 0, %s23
    %s38 = sphi 0, %s24
    %s44 = sphi 0, %s46
    %s47 = sphi 0, %s44
    %s48 = sphi 0, %s47
    %s64 = sphi 0, %s48
    %s70 = sphi 0, %s72
    %s73 = sphi 0, %s70
    %s74 = sphi 0, %s73
    %s90 = sphi 0, %s74
    %s94 = sphi 0, %s94
    %s96 = sphi 0, %s94
    %s97 = sphi 0, %s96
    %s111 = sphi 0, %s97
    %s115 = sphi 0, %s115
    %s117 = sphi 0, %s115
    %s118 = sphi 0, %s117
    %s132 = sphi 0, %s118
    %s136 = sphi 0, %s136
    %s138 = sphi 0, %s136
    %s139 = sphi 0, %s138
    %s153 = sphi 0, %s139
    %s159 = sphi 0, %s161
    %s162 = sphi 0, %s159
    %s163 = sphi 0, %s162
    %s179 = sphi 0, %s163
  $region4: #{bidaf_forward.6} parent=0 // loop_header_branch
    %16 = sbr.rel (%p14) target = $region8
  $region5: #{bidaf_forward.6} parent=0 // loop_body
    %s18 = ssub.s32 %s13, 1
    %s19 = ssub.s32 %s13, 2
    %s20 = sadd.s32 %s13, 1
    %s22 = sadd.s32 %s21, 1
    %p25 = scmp.eq.s32.totalorder %s13, 1
    %p26 = scmp.ne.s32.totalorder %s21, %s23
    %p27 = scmp.eq.s32.totalorder %s13, 0
    %p28 = por %p26, %p27
    %p29 = scmp.ne.s32.totalorder %s21, %s23
    %p30 = scmp.eq.s32.totalorder %s18, 1
    %p31 = por %p29, %p30
    %p32 = scmp.ne.s32.totalorder %s23, %s24
    %p33 = scmp.eq.s32.totalorder %s18, 0
    %p34 = por %p32, %p33
    %p35 = scmp.ne.s32.totalorder %s23, %s24
    %p36 = scmp.eq.s32.totalorder %s19, 1
    %p37 = por %p35, %p36
    %p39 = scmp.ne.s32.totalorder %s24, %s38
    %p40 = scmp.eq.s32.totalorder %s19, 0
    %p41 = por %p39, %p40
    %s42 = ssub.s32 %s13, %s20
    %p43 = scmp.eq.s32.totalorder %s42, 0
    %s45 = sadd.s32 %s44, 1
    %s46 = scalar_select %p43, %s44, %s45
    %p49 = pneg %p43
    %p50 = scmp.eq.s32.totalorder %s13, 1
    %p51 = por %p49, %p50
    %p52 = scmp.ne.s32.totalorder %s44, %s47
    %p53 = scmp.eq.s32.totalorder %s13, 0
    %p54 = por %p52, %p53
    %p55 = scmp.ne.s32.totalorder %s44, %s47
    %p56 = scmp.eq.s32.totalorder %s18, 1
    %p57 = por %p55, %p56
    %p58 = scmp.ne.s32.totalorder %s47, %s48
    %p59 = scmp.eq.s32.totalorder %s18, 0
    %p60 = por %p58, %p59
    %p61 = scmp.ne.s32.totalorder %s47, %s48
    %p62 = scmp.eq.s32.totalorder %s19, 1
    %p63 = por %p61, %p62
    %p65 = scmp.ne.s32.totalorder %s48, %s64
    %p66 = scmp.eq.s32.totalorder %s19, 0
    %p67 = por %p65, %p66
    %s68 = ssub.s32 %s13, %s20
    %p69 = scmp.eq.s32.totalorder %s68, 0
    %s71 = sadd.s32 %s70, 1
    %s72 = scalar_select %p69, %s70, %s71
    %p75 = pneg %p69
    %p76 = scmp.eq.s32.totalorder %s13, 1
    %p77 = por %p75, %p76
    %p78 = scmp.ne.s32.totalorder %s70, %s73
    %p79 = scmp.eq.s32.totalorder %s13, 0
    %p80 = por %p78, %p79
    %p81 = scmp.ne.s32.totalorder %s70, %s73
    %p82 = scmp.eq.s32.totalorder %s18, 1
    %p83 = por %p81, %p82
    %p84 = scmp.ne.s32.totalorder %s73, %s74
    %p85 = scmp.eq.s32.totalorder %s18, 0
    %p86 = por %p84, %p85
    %p87 = scmp.ne.s32.totalorder %s73, %s74
    %p88 = scmp.eq.s32.totalorder %s19, 1
    %p89 = por %p87, %p88
    %p91 = scmp.ne.s32.totalorder %s74, %s90
    %p92 = scmp.eq.s32.totalorder %s19, 0
    %p93 = por %p91, %p92
    %s95 = sadd.s32 %s94, 1
    %p98 = scmp.eq.s32.totalorder %s13, 1
    %p99 = scmp.ne.s32.totalorder %s94, %s96
    %p100 = scmp.eq.s32.totalorder %s13, 0
    %p101 = por %p99, %p100
    %p102 = scmp.ne.s32.totalorder %s94, %s96
    %p103 = scmp.eq.s32.totalorder %s18, 1
    %p104 = por %p102, %p103
    %p105 = scmp.ne.s32.totalorder %s96, %s97
    %p106 = scmp.eq.s32.totalorder %s18, 0
    %p107 = por %p105, %p106
    %p108 = scmp.ne.s32.totalorder %s96, %s97
    %p109 = scmp.eq.s32.totalorder %s19, 1
    %p110 = por %p108, %p109
    %p112 = scmp.ne.s32.totalorder %s97, %s111
    %p113 = scmp.eq.s32.totalorder %s19, 0
    %p114 = por %p112, %p113
    %s116 = sadd.s32 %s115, 1
    %p119 = scmp.eq.s32.totalorder %s13, 1
    %p120 = scmp.ne.s32.totalorder %s115, %s117
    %p121 = scmp.eq.s32.totalorder %s13, 0
    %p122 = por %p120, %p121
    %p123 = scmp.ne.s32.totalorder %s115, %s117
    %p124 = scmp.eq.s32.totalorder %s18, 1
    %p125 = por %p123, %p124
    %p126 = scmp.ne.s32.totalorder %s117, %s118
    %p127 = scmp.eq.s32.totalorder %s18, 0
    %p128 = por %p126, %p127
    %p129 = scmp.ne.s32.totalorder %s117, %s118
    %p130 = scmp.eq.s32.totalorder %s19, 1
    %p131 = por %p129, %p130
    %p133 = scmp.ne.s32.totalorder %s118, %s132
    %p134 = scmp.eq.s32.totalorder %s19, 0
    %p135 = por %p133, %p134
    %s137 = sadd.s32 %s136, 1
    %p140 = scmp.eq.s32.totalorder %s13, 1
    %p141 = scmp.ne.s32.totalorder %s136, %s138
    %p142 = scmp.eq.s32.totalorder %s13, 0
    %p143 = por %p141, %p142
    %p144 = scmp.ne.s32.totalorder %s136, %s138
    %p145 = scmp.eq.s32.totalorder %s18, 1
    %p146 = por %p144, %p145
    %p147 = scmp.ne.s32.totalorder %s138, %s139
    %p148 = scmp.eq.s32.totalorder %s18, 0
    %p149 = por %p147, %p148
    %p150 = scmp.ne.s32.totalorder %s138, %s139
    %p151 = scmp.eq.s32.totalorder %s19, 1
    %p152 = por %p150, %p151
    %p154 = scmp.ne.s32.totalorder %s139, %s153
    %p155 = scmp.eq.s32.totalorder %s19, 0
    %p156 = por %p154, %p155
    %s157 = ssub.s32 %s13, %s20
    %p158 = scmp.eq.s32.totalorder %s157, 0
    %s160 = sadd.s32 %s159, 1
    %s161 = scalar_select %p158, %s159, %s160
    %p164 = pneg %p158
    %p165 = scmp.eq.s32.totalorder %s13, 1
    %p166 = por %p164, %p165
    %p167 = scmp.ne.s32.totalorder %s159, %s162
    %p168 = scmp.eq.s32.totalorder %s13, 0
    %p169 = por %p167, %p168
    %p170 = scmp.ne.s32.totalorder %s159, %s162
    %p171 = scmp.eq.s32.totalorder %s18, 1
    %p172 = por %p170, %p171
    %p173 = scmp.ne.s32.totalorder %s162, %s163
    %p174 = scmp.eq.s32.totalorder %s18, 0
    %p175 = por %p173, %p174
    %p176 = scmp.ne.s32.totalorder %s162, %s163
    %p177 = scmp.eq.s32.totalorder %s19, 1
    %p178 = por %p176, %p177
    %p180 = scmp.ne.s32.totalorder %s163, %s179
    %p181 = scmp.eq.s32.totalorder %s19, 0
    %p182 = por %p180, %p181
    %p183 = scmp.le.s32.totalorder 1, %s13
    %p184 = scmp.lt.s32.totalorder %s13, 3
    %p185 = pnand %p183, %p184
    %p186 = pneg %p185
    // Predicated region
    $region9: #{bidaf_forward.6} parent=5 // pred_check
      _
    $region10: #{bidaf_forward.6} parent=5 // pred_check_branch
      %188 = sbr.rel (%p185) target = $region12
    $region11: #{bidaf_forward.6} parent=5 // pred_region
      %s189 = ssub.s32 %s13, 1
      // Predicated region
      $region13: #{bidaf_forward.6} parent=11 // pred_check
        %p190 = pneg %p34
      $region14: #{bidaf_forward.6} parent=11 // pred_check_branch
        %192 = sbr.rel (%p190) target = $region16
      $region15: #{bidaf_forward.6} parent=11 // pred_region
        _
      $region16: #{bidaf_forward.6} parent=11 // pred_fallthru
        _
      // Predicated region
      $region17: #{bidaf_forward.6} parent=11 // pred_check
        %p193 = pneg %p107
      $region18: #{bidaf_forward.6} parent=11 // pred_check_branch
        %195 = sbr.rel (%p193) target = $region20
      $region19: #{bidaf_forward.6} parent=11 // pred_region
        _
      $region20: #{bidaf_forward.6} parent=11 // pred_fallthru
        _
      // Predicated region
      $region21: #{bidaf_forward.6} parent=11 // pred_check
        %p196 = pneg %p128
      $region22: #{bidaf_forward.6} parent=11 // pred_check_branch
        %198 = sbr.rel (%p196) target = $region24
      $region23: #{bidaf_forward.6} parent=11 // pred_region
        _
      $region24: #{bidaf_forward.6} parent=11 // pred_fallthru
        _
      // Predicated region
      $region25: #{bidaf_forward.6} parent=11 // pred_check
        %p199 = pneg %p149
      $region26: #{bidaf_forward.6} parent=11 // pred_check_branch
        %201 = sbr.rel (%p199) target = $region28
      $region27: #{bidaf_forward.6} parent=11 // pred_region
        _
      $region28: #{bidaf_forward.6} parent=11 // pred_fallthru
        _
    $region12: #{bidaf_forward.6} parent=5 // pred_fallthru
      _
    %p202 = scmp.lt.s32.totalorder %s13, 2
    // Predicated region
    $region29: #{bidaf_forward.6} parent=5 // pred_check
      %p203 = pneg %p202
    $region30: #{bidaf_forward.6} parent=5 // pred_check_branch
      %205 = sbr.rel (%p203) target = $region32
    $region31: #{bidaf_forward.6} parent=5 // pred_region
      // Predicated region
      $region33: #{bidaf_forward.6} parent=31 // pred_check
        %p206 = pneg %p54
      $region34: #{bidaf_forward.6} parent=31 // pred_check_branch
        %208 = sbr.rel (%p206) target = $region36
      $region35: #{bidaf_forward.6} parent=31 // pred_region
        %p209 = scmp.lt.s32.totalorder %s13, 1
        %s210 = scalar_select %p209, %s13, 1
        %s211 = smul.addr %s210, 8
        %s212 = scalar_lea.vmem %s1, %s211
      $region36: #{bidaf_forward.6} parent=31 // pred_fallthru
        _
      // Predicated region
      $region37: #{bidaf_forward.6} parent=31 // pred_check
        %p213 = pneg %p80
      $region38: #{bidaf_forward.6} parent=31 // pred_check_branch
        %215 = sbr.rel (%p213) target = $region40
      $region39: #{bidaf_forward.6} parent=31 // pred_region
        %p216 = scmp.lt.s32.totalorder %s13, 1
        %s217 = scalar_select %p216, %s13, 1
        %s218 = smul.addr %s217, 8
        %s219 = scalar_lea.vmem %s2, %s218
      $region40: #{bidaf_forward.6} parent=31 // pred_fallthru
        _
    $region32: #{bidaf_forward.6} parent=5 // pred_fallthru
      _
    %p220 = scmp.le.s32.totalorder 1, %s13
    %p221 = scmp.lt.s32.totalorder %s13, 3
    %p222 = pnand %p220, %p221
    %p223 = pneg %p222
    // Predicated region
    $region41: #{bidaf_forward.6} parent=5 // pred_check
      _
    $region42: #{bidaf_forward.6} parent=5 // pred_check_branch
      %225 = sbr.rel (%p222) target = $region44
    $region43: #{bidaf_forward.6} parent=5 // pred_region
      %s226 = ssub.s32 %s13, 1
      %p227 = pneg %p34
      %p228 = pneg %p31
      %p229 = scmp.lt.s32.totalorder %s18, 1
      %s230 = scalar_select %p229, %s18, 1
      %s231 = smul.addr %s230, 8
      %s232 = scalar_lea.vmem %s1, %s231
      %p233 = pneg %p60
      %p234 = pneg %p57
      %p235 = scmp.lt.s32.totalorder %s18, 1
      %s236 = scalar_select %p235, %s18, 1
      %s237 = smul.addr %s236, 8
      %s238 = scalar_lea.vmem %s2, %s237
      %p239 = pneg %p86
      %p240 = pneg %p83
      %p241 = pneg %p107
      %p242 = pneg %p104
      %p243 = pneg %p128
      %p244 = pneg %p125
      %p245 = pneg %p149
      %p246 = pneg %p146
      %p247 = pneg %p175
      %p248 = pneg %p172
      %p249 = scmp.lt.s32.totalorder %s18, 1
      %s250 = scalar_select %p249, %s18, 1
      %s251 = smul.addr %s250, 8
      %s252 = scalar_lea.vmem %s6, %s251
      %p253 = scmp.lt.s32.totalorder %s18, 1
      %s254 = scalar_select %p253, %s18, 1
      %s255 = smul.addr %s254, 8
      %s256 = scalar_lea.vmem %s1, %s255
      %p257 = scmp.lt.s32.totalorder %s18, 1
      %s258 = scalar_select %p257, %s18, 1
      %s259 = smul.addr %s258, 8
      %s260 = scalar_lea.vmem %s2, %s259
      %p261 = scmp.lt.s32.totalorder %s18, 1
      %s262 = scalar_select %p261, %s18, 1
      %s263 = smul.addr %s262, 8
      %s264 = scalar_lea.vmem %s6, %s263
      %v265 = vld [vmem:[%s256] sm:$0x3f]
      %v266 = vld [vmem:[%s260] sm:$0x1f]
      %v267 = vld [vmem:[%s3] sm:$0x1]
      %s268 = scalar_lea.vmem %s3, 1
      %v269 = vld [vmem:[%s268] sm:$0x1]
      %s270 = scalar_lea.vmem %s3, 2
      %v271 = vld [vmem:[%s270] sm:$0x1]
      %v273 = vlaneseq
      %v274 = vshrl.u32 %v273, 7
      %v275 = vsub.s32 0, %v274
      %v276 = vrot.slane %v267, %v275
      %v278 = vmul.f32 %v265, %v276
      %vm279 = vcmask 128000
      %v280 = vsel %vm279, %v278, 0.0
      %281 = vadd.xlane.f32.xlu0 %v280
      %v282 = vpop.xlane.xlu0 %281
      %vm283 = vcmask 130048
      %v285 = vsel %vm283, %v269, 0
      %v288 = vsel %vm283, %v266, 0
      %290 = vmatprep.subr.mxu0 0.0
      %291 = vmatpush1.xpose.msra.mxu0 %v288
      %292 = vmatprep.subr.mxu0 0.0
      %293 = vmatpush1.xpose.msra.mxu0 0.0
      %294 = vmatprep.subr.mxu0 0.0
      %295 = vmatpush1.xpose.msra.mxu0 0.0
      %296 = vmatprep.subr.mxu0 0.0
      %297 = vmatpush1.xpose.msra.mxu0 0.0
      %298 = vmatprep.subr.mxu0 0.0
      %299 = vmatpush1.xpose.msra.mxu0 0.0
      %300 = vmatprep.subr.mxu0 0.0
      %301 = vmatpush1.xpose.msra.mxu0 0.0
      %302 = vmatprep.subr.mxu0 0.0
      %303 = vmatpush1.xpose.msra.mxu0 0.0
      %304 = vmatprep.subr.mxu0 0.0
      %305 = vmatpush1.xpose.msra.mxu0 0.0
      %306 = vmatprep.subr.mxu0 0.0
      %307 = vmatpush1.xpose.msra.mxu0 0.0
      %308 = vmatprep.subr.mxu0 0.0
      %309 = vmatpush1.xpose.msra.mxu0 0.0
      %310 = vmatprep.subr.mxu0 0.0
      %311 = vmatpush1.xpose.msra.mxu0 0.0
      %312 = vmatprep.subr.mxu0 0.0
      %313 = vmatpush1.xpose.msra.mxu0 0.0
      %314 = vmatprep.subr.mxu0 0.0
      %315 = vmatpush1.xpose.msra.mxu0 0.0
      %316 = vmatprep.subr.mxu0 0.0
      %317 = vmatpush1.xpose.msra.mxu0 0.0
      %318 = vmatprep.subr.mxu0 0.0
      %319 = vmatpush1.xpose.msra.mxu0 0.0
      %320 = vmatprep.subr.mxu0 0.0
      %321 = vmatpush1.xpose.msra.mxu0 0.0
      %322 = vmatprep.subr.mxu0 0.0
      %323 = vmatpush1.xpose.msra.mxu0 0.0
      %324 = vmatprep.subr.mxu0 0.0
      %325 = vmatpush1.xpose.msra.mxu0 0.0
      %326 = vmatprep.subr.mxu0 0.0
      %327 = vmatpush1.xpose.msra.mxu0 0.0
      %328 = vmatprep.subr.mxu0 0.0
      %329 = vmatpush1.xpose.msra.mxu0 0.0
      %330 = vmatprep.subr.mxu0 0.0
      %331 = vmatpush1.xpose.msra.mxu0 0.0
      %332 = vmatprep.subr.mxu0 0.0
      %333 = vmatpush1.xpose.msra.mxu0 0.0
      %334 = vmatprep.subr.mxu0 0.0
      %335 = vmatpush1.xpose.msra.mxu0 0.0
      %336 = vmatprep.subr.mxu0 0.0
      %337 = vmatpush1.xpose.msra.mxu0 0.0
      %338 = vmatprep.subr.mxu0 0.0
      %339 = vmatpush1.xpose.msra.mxu0 0.0
      %340 = vmatprep.subr.mxu0 0.0
      %341 = vmatpush1.xpose.msra.mxu0 0.0
      %342 = vmatprep.subr.mxu0 0.0
      %343 = vmatpush1.xpose.msra.mxu0 0.0
      %344 = vmatprep.subr.mxu0 0.0
      %345 = vmatpush1.xpose.msra.mxu0 0.0
      %346 = vmatprep.subr.mxu0 0.0
      %347 = vmatpush1.xpose.msra.mxu0 0.0
      %348 = vmatprep.subr.mxu0 0.0
      %349 = vmatpush1.xpose.msra.mxu0 0.0
      %350 = vmatprep.subr.mxu0 0.0
      %351 = vmatpush1.xpose.msra.mxu0 0.0
      %352 = vmatprep.subr.mxu0 0.0
      %353 = vmatpush1.xpose.msra.mxu0 0.0
      %354 = vmatprep.mubr.f32.mxu0 0.0
      %355 = vmatmul.mubr.f32.gmra.mrb[0].mxu0 %v285
      %v356 = vpop.f32.mrb[0].mxu0
      %v357 = vadd.f32 0.0, %v356
      %v358 = vpop.f32.mrb[0].mxu0
      %359 = vdwg.mxu0
      %v361 = vlaneseq
      %v362 = vshrl.u32 %v361, 7
      %v363 = vsub.s32 0, %v362
      %v364 = vrot.slane %v271, %v363
      %v366 = vmul.f32 %v265, %v364
      %v368 = vsel %vm283, %v366, 0
      %370 = vmatprep.subr.mxu0 0.0
      %371 = vmatpush1.xpose.msra.mxu0 %v288
      %372 = vmatprep.subr.mxu0 0.0
      %373 = vmatpush1.xpose.msra.mxu0 0.0
      %374 = vmatprep.subr.mxu0 0.0
      %375 = vmatpush1.xpose.msra.mxu0 0.0
      %376 = vmatprep.subr.mxu0 0.0
      %377 = vmatpush1.xpose.msra.mxu0 0.0
      %378 = vmatprep.subr.mxu0 0.0
      %379 = vmatpush1.xpose.msra.mxu0 0.0
      %380 = vmatprep.subr.mxu0 0.0
      %381 = vmatpush1.xpose.msra.mxu0 0.0
      %382 = vmatprep.subr.mxu0 0.0
      %383 = vmatpush1.xpose.msra.mxu0 0.0
      %384 = vmatprep.subr.mxu0 0.0
      %385 = vmatpush1.xpose.msra.mxu0 0.0
      %386 = vmatprep.subr.mxu0 0.0
      %387 = vmatpush1.xpose.msra.mxu0 0.0
      %388 = vmatprep.subr.mxu0 0.0
      %389 = vmatpush1.xpose.msra.mxu0 0.0
      %390 = vmatprep.subr.mxu0 0.0
      %391 = vmatpush1.xpose.msra.mxu0 0.0
      %392 = vmatprep.subr.mxu0 0.0
      %393 = vmatpush1.xpose.msra.mxu0 0.0
      %394 = vmatprep.subr.mxu0 0.0
      %395 = vmatpush1.xpose.msra.mxu0 0.0
      %396 = vmatprep.subr.mxu0 0.0
      %397 = vmatpush1.xpose.msra.mxu0 0.0
      %398 = vmatprep.subr.mxu0 0.0
      %399 = vmatpush1.xpose.msra.mxu0 0.0
      %400 = vmatprep.subr.mxu0 0.0
      %401 = vmatpush1.xpose.msra.mxu0 0.0
      %402 = vmatprep.subr.mxu0 0.0
      %403 = vmatpush1.xpose.msra.mxu0 0.0
      %404 = vmatprep.subr.mxu0 0.0
      %405 = vmatpush1.xpose.msra.mxu0 0.0
      %406 = vmatprep.subr.mxu0 0.0
      %407 = vmatpush1.xpose.msra.mxu0 0.0
      %408 = vmatprep.subr.mxu0 0.0
      %409 = vmatpush1.xpose.msra.mxu0 0.0
      %410 = vmatprep.subr.mxu0 0.0
      %411 = vmatpush1.xpose.msra.mxu0 0.0
      %412 = vmatprep.subr.mxu0 0.0
      %413 = vmatpush1.xpose.msra.mxu0 0.0
      %414 = vmatprep.subr.mxu0 0.0
      %415 = vmatpush1.xpose.msra.mxu0 0.0
      %416 = vmatprep.subr.mxu0 0.0
      %417 = vmatpush1.xpose.msra.mxu0 0.0
      %418 = vmatprep.subr.mxu0 0.0
      %419 = vmatpush1.xpose.msra.mxu0 0.0
      %420 = vmatprep.subr.mxu0 0.0
      %421 = vmatpush1.xpose.msra.mxu0 0.0
      %422 = vmatprep.subr.mxu0 0.0
      %423 = vmatpush1.xpose.msra.mxu0 0.0
      %424 = vmatprep.subr.mxu0 0.0
      %425 = vmatpush1.xpose.msra.mxu0 0.0
      %426 = vmatprep.subr.mxu0 0.0
      %427 = vmatpush1.xpose.msra.mxu0 0.0
      %428 = vmatprep.subr.mxu0 0.0
      %429 = vmatpush1.xpose.msra.mxu0 0.0
      %430 = vmatprep.subr.mxu0 0.0
      %431 = vmatpush1.xpose.msra.mxu0 0.0
      %432 = vmatprep.subr.mxu0 0.0
      %433 = vmatpush1.xpose.msra.mxu0 0.0
      %434 = vmatprep.mubr.f32.mxu0 0.0
      %435 = vmatmul.mubr.f32.gmra.mrb[0].mxu0 %v368
      %v436 = vpop.f32.mrb[0].mxu0
      %v437 = vadd.f32 0.0, %v436
      %v438 = vpop.f32.mrb[0].mxu0
      %439 = vdwg.mxu0
      %v440 = vlaneseq
      %v441 = vshrl.u32 %v440, 7
      %v442 = vsub.s32 0, %v441
      %v443 = vrot.slane %v357, %v442
      %v444 = vadd.f32 %v282, %v443
      %v445 = vadd.f32 %v444, %v437
      %s446 = sld [smem:[#allocation2]]
      %v447 = vstv %s446
      %v448 = vadd.f32 %v445, %v447
      %vm449 = vcmask 37888
      %v450 = vsel %vm449, %v448, -inf
      %451 = vmax.xlane.f32.xlu0 %v450
      %v452 = vpop.xlane.xlu0 %451
      %v453 = vsub.f32 %v448, %v452
      %v454 = vmul.f32 %v453, 1.442695
      %v455 = vpow.pop %v454
      %v456 = vsel %vm449, %v455, 0.0
      %457 = vadd.xlane.f32.xlu0 %v456
      %v458 = vpop.xlane.xlu0 %457
      %v459 = vrcp.pop %v458
      %v460 = vmul.f32 %v455, %v459
      %vm461 = vcmask 39936
      %v463 = vsel %vm461, %v460, 0
      %vm465 = vcmask 1044480
      %v466 = vsel %vm465, %v266, 0
      %468 = vmatprep.subr.mxu0 0.0
      %469 = vmatpush1.msra.mxu0 %v466
      %470 = vmatprep.subr.mxu0 0.0
      %471 = vmatpush1.msra.mxu0 0.0
      %472 = vmatprep.subr.mxu0 0.0
      %473 = vmatpush1.msra.mxu0 0.0
      %474 = vmatprep.subr.mxu0 0.0
      %475 = vmatpush1.msra.mxu0 0.0
      %476 = vmatprep.subr.mxu0 0.0
      %477 = vmatpush1.msra.mxu0 0.0
      %478 = vmatprep.subr.mxu0 0.0
      %479 = vmatpush1.msra.mxu0 0.0
      %480 = vmatprep.subr.mxu0 0.0
      %481 = vmatpush1.msra.mxu0 0.0
      %482 = vmatprep.subr.mxu0 0.0
      %483 = vmatpush1.msra.mxu0 0.0
      %484 = vmatprep.subr.mxu0 0.0
      %485 = vmatpush1.msra.mxu0 0.0
      %486 = vmatprep.subr.mxu0 0.0
      %487 = vmatpush1.msra.mxu0 0.0
      %488 = vmatprep.subr.mxu0 0.0
      %489 = vmatpush1.msra.mxu0 0.0
      %490 = vmatprep.subr.mxu0 0.0
      %491 = vmatpush1.msra.mxu0 0.0
      %492 = vmatprep.subr.mxu0 0.0
      %493 = vmatpush1.msra.mxu0 0.0
      %494 = vmatprep.subr.mxu0 0.0
      %495 = vmatpush1.msra.mxu0 0.0
      %496 = vmatprep.subr.mxu0 0.0
      %497 = vmatpush1.msra.mxu0 0.0
      %498 = vmatprep.subr.mxu0 0.0
      %499 = vmatpush1.msra.mxu0 0.0
      %500 = vmatprep.subr.mxu0 0.0
      %501 = vmatpush1.msra.mxu0 0.0
      %502 = vmatprep.subr.mxu0 0.0
      %503 = vmatpush1.msra.mxu0 0.0
      %504 = vmatprep.subr.mxu0 0.0
      %505 = vmatpush1.msra.mxu0 0.0
      %506 = vmatprep.subr.mxu0 0.0
      %507 = vmatpush1.msra.mxu0 0.0
      %508 = vmatprep.subr.mxu0 0.0
      %509 = vmatpush1.msra.mxu0 0.0
      %510 = vmatprep.subr.mxu0 0.0
      %511 = vmatpush1.msra.mxu0 0.0
      %512 = vmatprep.subr.mxu0 0.0
      %513 = vmatpush1.msra.mxu0 0.0
      %514 = vmatprep.subr.mxu0 0.0
      %515 = vmatpush1.msra.mxu0 0.0
      %516 = vmatprep.subr.mxu0 0.0
      %517 = vmatpush1.msra.mxu0 0.0
      %518 = vmatprep.subr.mxu0 0.0
      %519 = vmatpush1.msra.mxu0 0.0
      %520 = vmatprep.subr.mxu0 0.0
      %521 = vmatpush1.msra.mxu0 0.0
      %522 = vmatprep.subr.mxu0 0.0
      %523 = vmatpush1.msra.mxu0 0.0
      %524 = vmatprep.subr.mxu0 0.0
      %525 = vmatpush1.msra.mxu0 0.0
      %526 = vmatprep.subr.mxu0 0.0
      %527 = vmatpush1.msra.mxu0 0.0
      %528 = vmatprep.subr.mxu0 0.0
      %529 = vmatpush1.msra.mxu0 0.0
      %530 = vmatprep.subr.mxu0 0.0
      %531 = vmatpush1.msra.mxu0 0.0
      %532 = vmatprep.mubr.f32.mxu0 0.0
      %533 = vmatmul.mubr.f32.gmra.mrb[0].mxu0 %v463
      %v534 = vpop.f32.mrb[0].mxu0
      %v535 = vadd.f32 0.0, %v534
      %v536 = vpop.f32.mrb[0].mxu0
      %537 = vdwg.mxu0
      %v538 = vmul.f32 %v452, %v265
      %v539 = vsel %vm279, %v538, 0.0
      %v540 = vrot.slane %v539, 4
      %v541 = vadd.f32 %v539, %v540
      %v542 = vrot.slane %v541, 2
      %v543 = vadd.f32 %v541, %v542
      %v544 = vrot.slane %v543, 1
      %v545 = vadd.f32 %v543, %v544
      %v546 = vld [vmem:[%s4] sm:$0xff]
      %v547 = vld [vmem:[%s4 + $0x8] sm:$0xff]
      %s548 = scalar_lea.vmem %s4, 16
      %v549 = vld [vmem:[%s548] sm:$0xff]
      %v550 = vld [vmem:[%s548 + $0x8] sm:$0xff]
      %v552 = vsel %vm283, %v535, 0
      %554 = vmatprep.subr.mxu0 0.0
      %555 = vmatpush1.msra.mxu0 %v549
      %556 = vmatprep.subr.mxu0 0.0
      %557 = vmatpush1.msra.mxu0 %v550
      %558 = vmatprep.subr.mxu0 0.0
      %559 = vmatpush1.msra.mxu0 0.0
      %560 = vmatprep.subr.mxu0 0.0
      %561 = vmatpush1.msra.mxu0 0.0
      %562 = vmatprep.subr.mxu0 0.0
      %563 = vmatpush1.msra.mxu0 0.0
      %564 = vmatprep.subr.mxu0 0.0
      %565 = vmatpush1.msra.mxu0 0.0
      %566 = vmatprep.subr.mxu0 0.0
      %567 = vmatpush1.msra.mxu0 0.0
      %568 = vmatprep.subr.mxu0 0.0
      %569 = vmatpush1.msra.mxu0 0.0
      %570 = vmatprep.subr.mxu0 0.0
      %571 = vmatpush1.msra.mxu0 0.0
      %572 = vmatprep.subr.mxu0 0.0
      %573 = vmatpush1.msra.mxu0 0.0
      %574 = vmatprep.subr.mxu0 0.0
      %575 = vmatpush1.msra.mxu0 0.0
      %576 = vmatprep.subr.mxu0 0.0
      %577 = vmatpush1.msra.mxu0 0.0
      %578 = vmatprep.subr.mxu0 0.0
      %579 = vmatpush1.msra.mxu0 0.0
      %580 = vmatprep.subr.mxu0 0.0
      %581 = vmatpush1.msra.mxu0 0.0
      %582 = vmatprep.subr.mxu0 0.0
      %583 = vmatpush1.msra.mxu0 0.0
      %584 = vmatprep.subr.mxu0 0.0
      %585 = vmatpush1.msra.mxu0 0.0
      %586 = vmatprep.subr.mxu0 0.0
      %587 = vmatpush1.msra.mxu0 0.0
      %588 = vmatprep.subr.mxu0 0.0
      %589 = vmatpush1.msra.mxu0 0.0
      %590 = vmatprep.subr.mxu0 0.0
      %591 = vmatpush1.msra.mxu0 0.0
      %592 = vmatprep.subr.mxu0 0.0
      %593 = vmatpush1.msra.mxu0 0.0
      %594 = vmatprep.subr.mxu0 0.0
      %595 = vmatpush1.msra.mxu0 0.0
      %596 = vmatprep.subr.mxu0 0.0
      %597 = vmatpush1.msra.mxu0 0.0
      %598 = vmatprep.subr.mxu0 0.0
      %599 = vmatpush1.msra.mxu0 0.0
      %600 = vmatprep.subr.mxu0 0.0
      %601 = vmatpush1.msra.mxu0 0.0
      %602 = vmatprep.subr.mxu0 0.0
      %603 = vmatpush1.msra.mxu0 0.0
      %604 = vmatprep.subr.mxu0 0.0
      %605 = vmatpush1.msra.mxu0 0.0
      %606 = vmatprep.subr.mxu0 0.0
      %607 = vmatpush1.msra.mxu0 0.0
      %608 = vmatprep.subr.mxu0 0.0
      %609 = vmatpush1.msra.mxu0 0.0
      %610 = vmatprep.subr.mxu0 0.0
      %611 = vmatpush1.msra.mxu0 0.0
      %612 = vmatprep.subr.mxu0 0.0
      %613 = vmatpush1.msra.mxu0 0.0
      %614 = vmatprep.subr.mxu0 0.0
      %615 = vmatpush1.msra.mxu0 0.0
      %616 = vmatprep.subr.mxu0 0.0
      %617 = vmatpush1.msra.mxu0 0.0
      %618 = vmatprep.mubr.f32.mxu0 0.0
      %619 = vmatmul.mubr.f32.gmra.mrb[0].mxu0 %v552
      %v620 = vpop.f32.mrb[0].mxu0
      %v621 = vadd.f32 0.0, %v620
      %v622 = vpop.f32.mrb[0].mxu0
      %623 = vdwg.mxu0
      %v625 = vsel %vm283, %v265, 0
      %627 = vmatprep.subr.mxu0 0.0
      %628 = vmatpush1.msra.mxu0 %v546
      %629 = vmatprep.subr.mxu0 0.0
      %630 = vmatpush1.msra.mxu0 %v547
      %631 = vmatprep.subr.mxu0 0.0
      %632 = vmatpush1.msra.mxu0 0.0
      %633 = vmatprep.subr.mxu0 0.0
      %634 = vmatpush1.msra.mxu0 0.0
      %635 = vmatprep.subr.mxu0 0.0
      %636 = vmatpush1.msra.mxu0 0.0
      %637 = vmatprep.subr.mxu0 0.0
      %638 = vmatpush1.msra.mxu0 0.0
      %639 = vmatprep.subr.mxu0 0.0
      %640 = vmatpush1.msra.mxu0 0.0
      %641 = vmatprep.subr.mxu0 0.0
      %642 = vmatpush1.msra.mxu0 0.0
      %643 = vmatprep.subr.mxu0 0.0
      %644 = vmatpush1.msra.mxu0 0.0
      %645 = vmatprep.subr.mxu0 0.0
      %646 = vmatpush1.msra.mxu0 0.0
      %647 = vmatprep.subr.mxu0 0.0
      %648 = vmatpush1.msra.mxu0 0.0
      %649 = vmatprep.subr.mxu0 0.0
      %650 = vmatpush1.msra.mxu0 0.0
      %651 = vmatprep.subr.mxu0 0.0
      %652 = vmatpush1.msra.mxu0 0.0
      %653 = vmatprep.subr.mxu0 0.0
      %654 = vmatpush1.msra.mxu0 0.0
      %655 = vmatprep.subr.mxu0 0.0
      %656 = vmatpush1.msra.mxu0 0.0
      %657 = vmatprep.subr.mxu0 0.0
      %658 = vmatpush1.msra.mxu0 0.0
      %659 = vmatprep.subr.mxu0 0.0
      %660 = vmatpush1.msra.mxu0 0.0
      %661 = vmatprep.subr.mxu0 0.0
      %662 = vmatpush1.msra.mxu0 0.0
      %663 = vmatprep.subr.mxu0 0.0
      %664 = vmatpush1.msra.mxu0 0.0
      %665 = vmatprep.subr.mxu0 0.0
      %666 = vmatpush1.msra.mxu0 0.0
      %667 = vmatprep.subr.mxu0 0.0
      %668 = vmatpush1.msra.mxu0 0.0
      %669 = vmatprep.subr.mxu0 0.0
      %670 = vmatpush1.msra.mxu0 0.0
      %671 = vmatprep.subr.mxu0 0.0
      %672 = vmatpush1.msra.mxu0 0.0
      %673 = vmatprep.subr.mxu0 0.0
      %674 = vmatpush1.msra.mxu0 0.0
      %675 = vmatprep.subr.mxu0 0.0
      %676 = vmatpush1.msra.mxu0 0.0
      %677 = vmatprep.subr.mxu0 0.0
      %678 = vmatpush1.msra.mxu0 0.0
      %679 = vmatprep.subr.mxu0 0.0
      %680 = vmatpush1.msra.mxu0 0.0
      %681 = vmatprep.subr.mxu0 0.0
      %682 = vmatpush1.msra.mxu0 0.0
      %683 = vmatprep.subr.mxu0 0.0
      %684 = vmatpush1.msra.mxu0 0.0
      %685 = vmatprep.subr.mxu0 0.0
      %686 = vmatpush1.msra.mxu0 0.0
      %687 = vmatprep.subr.mxu0 0.0
      %688 = vmatpush1.msra.mxu0 0.0
      %689 = vmatprep.subr.mxu0 0.0
      %690 = vmatpush1.msra.mxu0 0.0
      %691 = vmatprep.mubr.f32.mxu0 0.0
      %692 = vmatmul.mubr.f32.gmra.mrb[0].mxu0 %v625
      %v693 = vpop.f32.mrb[0].mxu0
      %v694 = vadd.f32 %v621, %v693
      %v695 = vpop.f32.mrb[0].mxu0
      %696 = vdwg.mxu0
      %v697 = vmul.f32 %v265, %v535
      %s698 = scalar_lea.vmem %s4, 32
      %v699 = vld [vmem:[%s698] sm:$0xff]
      %v700 = vld [vmem:[%s698 + $0x8] sm:$0xff]
      %v702 = vsel %vm283, %v697, 0
      %704 = vmatprep.subr.mxu0 0.0
      %705 = vmatpush1.msra.mxu0 %v699
      %706 = vmatprep.subr.mxu0 0.0
      %707 = vmatpush1.msra.mxu0 %v700
      %708 = vmatprep.subr.mxu0 0.0
      %709 = vmatpush1.msra.mxu0 0.0
      %710 = vmatprep.subr.mxu0 0.0
      %711 = vmatpush1.msra.mxu0 0.0
      %712 = vmatprep.subr.mxu0 0.0
      %713 = vmatpush1.msra.mxu0 0.0
      %714 = vmatprep.subr.mxu0 0.0
      %715 = vmatpush1.msra.mxu0 0.0
      %716 = vmatprep.subr.mxu0 0.0
      %717 = vmatpush1.msra.mxu0 0.0
      %718 = vmatprep.subr.mxu0 0.0
      %719 = vmatpush1.msra.mxu0 0.0
      %720 = vmatprep.subr.mxu0 0.0
      %721 = vmatpush1.msra.mxu0 0.0
      %722 = vmatprep.subr.mxu0 0.0
      %723 = vmatpush1.msra.mxu0 0.0
      %724 = vmatprep.subr.mxu0 0.0
      %725 = vmatpush1.msra.mxu0 0.0
      %726 = vmatprep.subr.mxu0 0.0
      %727 = vmatpush1.msra.mxu0 0.0
      %728 = vmatprep.subr.mxu0 0.0
      %729 = vmatpush1.msra.mxu0 0.0
      %730 = vmatprep.subr.mxu0 0.0
      %731 = vmatpush1.msra.mxu0 0.0
      %732 = vmatprep.subr.mxu0 0.0
      %733 = vmatpush1.msra.mxu0 0.0
      %734 = vmatprep.subr.mxu0 0.0
      %735 = vmatpush1.msra.mxu0 0.0
      %736 = vmatprep.subr.mxu0 0.0
      %737 = vmatpush1.msra.mxu0 0.0
      %738 = vmatprep.subr.mxu0 0.0
      %739 = vmatpush1.msra.mxu0 0.0
      %740 = vmatprep.subr.mxu0 0.0
      %741 = vmatpush1.msra.mxu0 0.0
      %742 = vmatprep.subr.mxu0 0.0
      %743 = vmatpush1.msra.mxu0 0.0
      %744 = vmatprep.subr.mxu0 0.0
      %745 = vmatpush1.msra.mxu0 0.0
      %746 = vmatprep.subr.mxu0 0.0
      %747 = vmatpush1.msra.mxu0 0.0
      %748 = vmatprep.subr.mxu0 0.0
      %749 = vmatpush1.msra.mxu0 0.0
      %750 = vmatprep.subr.mxu0 0.0
      %751 = vmatpush1.msra.mxu0 0.0
      %752 = vmatprep.subr.mxu0 0.0
      %753 = vmatpush1.msra.mxu0 0.0
      %754 = vmatprep.subr.mxu0 0.0
      %755 = vmatpush1.msra.mxu0 0.0
      %756 = vmatprep.subr.mxu0 0.0
      %757 = vmatpush1.msra.mxu0 0.0
      %758 = vmatprep.subr.mxu0 0.0
      %759 = vmatpush1.msra.mxu0 0.0
      %760 = vmatprep.subr.mxu0 0.0
      %761 = vmatpush1.msra.mxu0 0.0
      %762 = vmatprep.subr.mxu0 0.0
      %763 = vmatpush1.msra.mxu0 0.0
      %764 = vmatprep.subr.mxu0 0.0
      %765 = vmatpush1.msra.mxu0 0.0
      %766 = vmatprep.subr.mxu0 0.0
      %767 = vmatpush1.msra.mxu0 0.0
      %768 = vmatprep.mubr.f32.mxu0 0.0
      %769 = vmatmul.mubr.f32.gmra.mrb[0].mxu0 %v702
      %v770 = vpop.f32.mrb[0].mxu0
      %v771 = vadd.f32 0.0, %v770
      %v772 = vpop.f32.mrb[0].mxu0
      %773 = vdwg.mxu0
      %v774 = vadd.f32 %v694, %v771
      %v775 = vmul.f32 %v265, %v545
      %s776 = scalar_lea.vmem %s4, 48
      %v777 = vld [vmem:[%s776] sm:$0xff]
      %v778 = vld [vmem:[%s776 + $0x8] sm:$0xff]
      %v780 = vsel %vm283, %v775, 0
      %782 = vmatprep.subr.mxu0 0.0
      %783 = vmatpush1.msra.mxu0 %v777
      %784 = vmatprep.subr.mxu0 0.0
      %785 = vmatpush1.msra.mxu0 %v778
      %786 = vmatprep.subr.mxu0 0.0
      %787 = vmatpush1.msra.mxu0 0.0
      %788 = vmatprep.subr.mxu0 0.0
      %789 = vmatpush1.msra.mxu0 0.0
      %790 = vmatprep.subr.mxu0 0.0
      %791 = vmatpush1.msra.mxu0 0.0
      %792 = vmatprep.subr.mxu0 0.0
      %793 = vmatpush1.msra.mxu0 0.0
      %794 = vmatprep.subr.mxu0 0.0
      %795 = vmatpush1.msra.mxu0 0.0
      %796 = vmatprep.subr.mxu0 0.0
      %797 = vmatpush1.msra.mxu0 0.0
      %798 = vmatprep.subr.mxu0 0.0
      %799 = vmatpush1.msra.mxu0 0.0
      %800 = vmatprep.subr.mxu0 0.0
      %801 = vmatpush1.msra.mxu0 0.0
      %802 = vmatprep.subr.mxu0 0.0
      %803 = vmatpush1.msra.mxu0 0.0
      %804 = vmatprep.subr.mxu0 0.0
      %805 = vmatpush1.msra.mxu0 0.0
      %806 = vmatprep.subr.mxu0 0.0
      %807 = vmatpush1.msra.mxu0 0.0
      %808 = vmatprep.subr.mxu0 0.0
      %809 = vmatpush1.msra.mxu0 0.0
      %810 = vmatprep.subr.mxu0 0.0
      %811 = vmatpush1.msra.mxu0 0.0
      %812 = vmatprep.subr.mxu0 0.0
      %813 = vmatpush1.msra.mxu0 0.0
      %814 = vmatprep.subr.mxu0 0.0
      %815 = vmatpush1.msra.mxu0 0.0
      %816 = vmatprep.subr.mxu0 0.0
      %817 = vmatpush1.msra.mxu0 0.0
      %818 = vmatprep.subr.mxu0 0.0
      %819 = vmatpush1.msra.mxu0 0.0
      %820 = vmatprep.subr.mxu0 0.0
      %821 = vmatpush1.msra.mxu0 0.0
      %822 = vmatprep.subr.mxu0 0.0
      %823 = vmatpush1.msra.mxu0 0.0
      %824 = vmatprep.subr.mxu0 0.0
      %825 = vmatpush1.msra.mxu0 0.0
      %826 = vmatprep.subr.mxu0 0.0
      %827 = vmatpush1.msra.mxu0 0.0
      %828 = vmatprep.subr.mxu0 0.0
      %829 = vmatpush1.msra.mxu0 0.0
      %830 = vmatprep.subr.mxu0 0.0
      %831 = vmatpush1.msra.mxu0 0.0
      %832 = vmatprep.subr.mxu0 0.0
      %833 = vmatpush1.msra.mxu0 0.0
      %834 = vmatprep.subr.mxu0 0.0
      %835 = vmatpush1.msra.mxu0 0.0
      %836 = vmatprep.subr.mxu0 0.0
      %837 = vmatpush1.msra.mxu0 0.0
      %838 = vmatprep.subr.mxu0 0.0
      %839 = vmatpush1.msra.mxu0 0.0
      %840 = vmatprep.subr.mxu0 0.0
      %841 = vmatpush1.msra.mxu0 0.0
      %842 = vmatprep.subr.mxu0 0.0
      %843 = vmatpush1.msra.mxu0 0.0
      %844 = vmatprep.subr.mxu0 0.0
      %845 = vmatpush1.msra.mxu0 0.0
      %846 = vmatprep.mubr.f32.mxu0 0.0
      %847 = vmatmul.mubr.f32.gmra.mrb[0].mxu0 %v780
      %v848 = vpop.f32.mrb[0].mxu0
      %v849 = vadd.f32 0.0, %v848
      %v850 = vpop.f32.mrb[0].mxu0
      %851 = vdwg.mxu0
      %v852 = vadd.f32 %v774, %v849
      %v853 = vld [vmem:[%s5] sm:$0x1]
      %v855 = vlaneseq
      %v856 = vshrl.u32 %v855, 7
      %v857 = vsub.s32 0, %v856
      %v858 = vrot.slane %v853, %v857
      %v860 = vadd.f32 %v852, %v858
      %vm861 = vcmask 521216
      %862 = vst.msk [vmem:[%s264] sm:$0x3f] %vm861, %v860
      %p863 = scmp.lt.s32.totalorder %s18, 1
      %s864 = scalar_select %p863, %s18, 1
      %s865 = smul.addr %s864, 8
      %s866 = scalar_lea.vmem %s6, %s865
      // Predicated region
      $region45: #{bidaf_forward.6} parent=43 // pred_check
        %p867 = pneg %p172
      $region46: #{bidaf_forward.6} parent=43 // pred_check_branch
        %869 = sbr.rel (%p867) target = $region48
      $region47: #{bidaf_forward.6} parent=43 // pred_region
        _
      $region48: #{bidaf_forward.6} parent=43 // pred_fallthru
        _
    $region44: #{bidaf_forward.6} parent=5 // pred_fallthru
      _
    %p870 = scmp.le.s32.totalorder 2, %s13
    // Predicated region
    $region49: #{bidaf_forward.6} parent=5 // pred_check
      %p871 = pneg %p870
    $region50: #{bidaf_forward.6} parent=5 // pred_check_branch
      %873 = sbr.rel (%p871) target = $region52
    $region51: #{bidaf_forward.6} parent=5 // pred_region
      %s874 = ssub.s32 %s13, 2
      // Predicated region
      $region53: #{bidaf_forward.6} parent=51 // pred_check
        %p875 = pneg %p178
      $region54: #{bidaf_forward.6} parent=51 // pred_check_branch
        %877 = sbr.rel (%p875) target = $region56
      $region55: #{bidaf_forward.6} parent=51 // pred_region
        %p878 = scmp.lt.s32.totalorder %s19, 1
        %s879 = scalar_select %p878, %s19, 1
        %s880 = smul.addr %s879, 8
        %s881 = scalar_lea.vmem %s6, %s880
      $region56: #{bidaf_forward.6} parent=51 // pred_fallthru
        _
    $region52: #{bidaf_forward.6} parent=5 // pred_fallthru
      _
  $region6: #{bidaf_forward.6} parent=0 // loop_footer
    %s17 = sadd.s32 1, %s13
  $region7: #{bidaf_forward.6} parent=0 // loop_footer_branch
    %12 = sbr.rel target = $region3
  $region8: #{bidaf_forward.6} parent=0 // loop_exit
    _

// kernel: bidaf_forward.9
$region0: #{bidaf_forward.9}
  #allocation0 [shape = 'u32[]', space=smem, size = 0x4, offset = 0x4, fixed_abs, tag = 'smem constant byte address 0x4 - core index']
  #allocation1 [shape = 'u32[144,128]{1,0:T(1,128)}', space=vmem, size = 0x12000, scoped, tag = 'internal scratch']
  %s0 = inlined_call_operand.vmem [shape: f32[2], index: 0, kind: input, shape index: {}]
  %s1 = inlined_call_operand.vmem [shape: f32[6,2,64], index: 1, kind: input, shape index: {}]
  %s2 = inlined_call_operand.vmem [shape: f32[6,2,16], index: 2, kind: input, shape index: {}]
  %s3 = inlined_call_operand.vmem [shape: f32[6,2,16], index: 3, kind: input, shape index: {}]
  %s4 = inlined_call_operand.vmem [shape: f32[64,2], index: 4, kind: input, shape index: {}]
  %s5 = inlined_call_operand.vmem [shape: f32[16,1], index: 5, kind: input, shape index: {}]
  %s6 = inlined_call_operand.vmem [shape: f32[16,1], index: 6, kind: input, shape index: {}]
  %s7 = inlined_call_operand.vmem [shape: f32[6,2], index: 7, kind: output, shape index: {0}]
  %s8 = inlined_call_operand.vmem [shape: f32[6,2], index: 8, kind: output, shape index: {1}]
  %9 = xla_tuple %s7, %s8
  %s10 = sld [smem:[#allocation0]]
  $region50: #{bidaf_forward.9} parent=0
    _
  %s12 = ssub.s32 1, %s10
  %s13 = scalar_select 0, %s12, %s10
  $region1: #{bidaf_forward.9} parent=0
    #allocation2 [shape = 'u8[512]{0}', space=smem, size = 0x200, scoped, tag = 'input window, operand 0, single buffered']
    #allocation3 [shape = 's32[1]{0}', space=sflag, size = 0x4, scoped, tag = 'scoped memory for bidaf_forward.9']
    %14 = vsyncpa [#allocation3], 0
    // Predicated region
    $region2: #{bidaf_forward.9} parent=1 // pred_check
      _
    $region3: #{bidaf_forward.9} parent=1 // pred_check_branch
      %16 = sbr.rel (0) target = $region5
    $region4: #{bidaf_forward.9} parent=1 // pred_region
      %s18 = ssub.s32 16, 16
      %19 = vsyncadd [#allocation3], %s18
      %s21 = sshll.u32 %s0, 4
      %s22 = int_to_ptr.vmem [resolvable:$true] %s21
      %24 = dma.vmem_to_smem %s22, 16, [#allocation2], [#allocation3]
    $region5: #{bidaf_forward.9} parent=1 // pred_fallthru
      _
    // Predicated region
    $region6: #{bidaf_forward.9} parent=1 // pred_check
      _
    $region7: #{bidaf_forward.9} parent=1 // pred_check_branch
      %26 = sbr.rel (0) target = $region9
    $region8: #{bidaf_forward.9} parent=1 // pred_region
      _
    $region9: #{bidaf_forward.9} parent=1 // pred_fallthru
      _
    // Predicated region
    $region10: #{bidaf_forward.9} parent=1 // pred_check
      _
    $region11: #{bidaf_forward.9} parent=1 // pred_check_branch
      %28 = sbr.rel (0) target = $region13
    $region12: #{bidaf_forward.9} parent=1 // pred_region
      _
    $region13: #{bidaf_forward.9} parent=1 // pred_fallthru
      _
    // Predicated region
    $region14: #{bidaf_forward.9} parent=1 // pred_check
      _
    $region15: #{bidaf_forward.9} parent=1 // pred_check_branch
      %30 = sbr.rel (0) target = $region17
    $region16: #{bidaf_forward.9} parent=1 // pred_region
      _
    $region17: #{bidaf_forward.9} parent=1 // pred_fallthru
      _
    // Predicated region
    $region18: #{bidaf_forward.9} parent=1 // pred_check
      _
    $region19: #{bidaf_forward.9} parent=1 // pred_check_branch
      %32 = sbr.rel (0) target = $region21
    $region20: #{bidaf_forward.9} parent=1 // pred_region
      _
    $region21: #{bidaf_forward.9} parent=1 // pred_fallthru
      _
    // Predicated region
    $region22: #{bidaf_forward.9} parent=1 // pred_check
      _
    $region23: #{bidaf_forward.9} parent=1 // pred_check_branch
      %34 = sbr.rel (0) target = $region25
    $region24: #{bidaf_forward.9} parent=1 // pred_region
      _
    $region25: #{bidaf_forward.9} parent=1 // pred_fallthru
      _
    // Predicated region
    $region26: #{bidaf_forward.9} parent=1 // pred_check
      _
    $region27: #{bidaf_forward.9} parent=1 // pred_check_branch
      %36 = sbr.rel (0) target = $region29
    $region28: #{bidaf_forward.9} parent=1 // pred_region
      _
    $region29: #{bidaf_forward.9} parent=1 // pred_fallthru
      _
    // Predicated region
    $region30: #{bidaf_forward.9} parent=1 // pred_check
      _
    $region31: #{bidaf_forward.9} parent=1 // pred_check_branch
      %38 = sbr.rel (0) target = $region33
    $region32: #{bidaf_forward.9} parent=1 // pred_region
      %39 = dma.done [#allocation3], 16
    $region33: #{bidaf_forward.9} parent=1 // pred_fallthru
      _
    %40 = sfence
    %v41 = vld [vmem:[%s1] sm:$0x3]
    %v42 = vld [vmem:[%s1 + $0x2] sm:$0x3]
    %v43 = vld [vmem:[%s1 + $0x4] sm:$0x3]
    %v44 = vld [vmem:[%s1 + $0x6] sm:$0x3]
    %v45 = vld [vmem:[%s1 + $0x8] sm:$0x3]
    %v46 = vld [vmem:[%s1 + $0xa] sm:$0x3]
    %v47 = vld [vmem:[%s2] sm:$0x3]
    %v48 = vld [vmem:[%s2 + $0x2] sm:$0x3]
    %v49 = vld [vmem:[%s2 + $0x4] sm:$0x3]
    %v50 = vld [vmem:[%s2 + $0x6] sm:$0x3]
    %v51 = vld [vmem:[%s2 + $0x8] sm:$0x3]
    %v52 = vld [vmem:[%s2 + $0xa] sm:$0x3]
    %v53 = vld [vmem:[%s3] sm:$0x3]
    %v54 = vld [vmem:[%s3 + $0x2] sm:$0x3]
    %v55 = vld [vmem:[%s3 + $0x4] sm:$0x3]
    %v56 = vld [vmem:[%s3 + $0x6] sm:$0x3]
    %v57 = vld [vmem:[%s3 + $0x8] sm:$0x3]
    %v58 = vld [vmem:[%s3 + $0xa] sm:$0x3]
    %v59 = vld [vmem:[%s4] sm:$0xff]
    %v60 = vld [vmem:[%s4 + $0x8] sm:$0xff]
    %v61 = vld [vmem:[%s4 + $0x10] sm:$0xff]
    %v62 = vld [vmem:[%s4 + $0x18] sm:$0xff]
    %v63 = vld [vmem:[%s4 + $0x20] sm:$0xff]
    %v64 = vld [vmem:[%s4 + $0x28] sm:$0xff]
    %v65 = vld [vmem:[%s4 + $0x30] sm:$0xff]
    %v66 = vld [vmem:[%s4 + $0x38] sm:$0xff]
    %v67 = vld [vmem:[%s5] sm:$0xff]
    %v68 = vld [vmem:[%s5 + $0x8] sm:$0xff]
    %v69 = vld [vmem:[%s6] sm:$0xff]
    %v70 = vld [vmem:[%s6 + $0x8] sm:$0xff]
    %v77 = vrot.slane %v42, 7
    %vm78 = vcmask 1041409
    %v79 = vsel %vm78, %v77, %v41
    %v80 = vrot.slane %v43, 6
    %vm81 = vcmask 1042434
    %v82 = vsel %vm81, %v80, %v79
    %v83 = vrot.slane %v44, 5
    %vm84 = vcmask 1043459
    %v85 = vsel %vm84, %v83, %v82
    %v86 = vrot.slane %v45, 4
    %vm87 = vcmask 1044484
    %v88 = vsel %vm87, %v86, %v85
    %v89 = vrot.slane %v46, 3
    %vm90 = vcmask 1045509
    %v91 = vsel %vm90, %v89, %v88
    %vm92 = vcmask 523264
    %v93 = vsel %vm92, %v91, 0
    %95 = vmatprep.subr.mxu0 0.0
    %96 = vmatpush1.msra.mxu0 %v59
    %97 = vmatprep.subr.mxu0 0.0
    %98 = vmatpush1.msra.mxu0 %v60
    %99 = vmatprep.subr.mxu0 0.0
    %100 = vmatpush1.msra.mxu0 %v61
    %101 = vmatprep.subr.mxu0 0.0
    %102 = vmatpush1.msra.mxu0 %v62
    %103 = vmatprep.subr.mxu0 0.0
    %104 = vmatpush1.msra.mxu0 %v63
    %105 = vmatprep.subr.mxu0 0.0
    %106 = vmatpush1.msra.mxu0 %v64
    %107 = vmatprep.subr.mxu0 0.0
    %108 = vmatpush1.msra.mxu0 %v65
    %109 = vmatprep.subr.mxu0 0.0
    %110 = vmatpush1.msra.mxu0 %v66
    %111 = vmatprep.subr.mxu0 0.0
    %112 = vmatpush1.msra.mxu0 0.0
    %113 = vmatprep.subr.mxu0 0.0
    %114 = vmatpush1.msra.mxu0 0.0
    %115 = vmatprep.subr.mxu0 0.0
    %116 = vmatpush1.msra.mxu0 0.0
    %117 = vmatprep.subr.mxu0 0.0
    %118 = vmatpush1.msra.mxu0 0.0
    %119 = vmatprep.subr.mxu0 0.0
    %120 = vmatpush1.msra.mxu0 0.0
    %121 = vmatprep.subr.mxu0 0.0
    %122 = vmatpush1.msra.mxu0 0.0
    %123 = vmatprep.subr.mxu0 0.0
    %124 = vmatpush1.msra.mxu0 0.0
    %125 = vmatprep.subr.mxu0 0.0
    %126 = vmatpush1.msra.mxu0 0.0
    %127 = vmatprep.subr.mxu0 0.0
    %128 = vmatpush1.msra.mxu0 0.0
    %129 = vmatprep.subr.mxu0 0.0
    %130 = vmatpush1.msra.mxu0 0.0
    %131 = vmatprep.subr.mxu0 0.0
    %132 = vmatpush1.msra.mxu0 0.0
    %133 = vmatprep.subr.mxu0 0.0
    %134 = vmatpush1.msra.mxu0 0.0
    %135 = vmatprep.subr.mxu0 0.0
    %136 = vmatpush1.msra.mxu0 0.0
    %137 = vmatprep.subr.mxu0 0.0
    %138 = vmatpush1.msra.mxu0 0.0
    %139 = vmatprep.subr.mxu0 0.0
    %140 = vmatpush1.msra.mxu0 0.0
    %141 = vmatprep.subr.mxu0 0.0
    %142 = vmatpush1.msra.mxu0 0.0
    %143 = vmatprep.subr.mxu0 0.0
    %144 = vmatpush1.msra.mxu0 0.0
    %145 = vmatprep.subr.mxu0 0.0
    %146 = vmatpush1.msra.mxu0 0.0
    %147 = vmatprep.subr.mxu0 0.0
    %148 = vmatpush1.msra.mxu0 0.0
    %149 = vmatprep.subr.mxu0 0.0
    %150 = vmatpush1.msra.mxu0 0.0
    %151 = vmatprep.subr.mxu0 0.0
    %152 = vmatpush1.msra.mxu0 0.0
    %153 = vmatprep.subr.mxu0 0.0
    %154 = vmatpush1.msra.mxu0 0.0
    %155 = vmatprep.subr.mxu0 0.0
    %156 = vmatpush1.msra.mxu0 0.0
    %157 = vmatprep.subr.mxu0 0.0
    %158 = vmatpush1.msra.mxu0 0.0
    %159 = vmatprep.mubr.f32.mxu0 0.0
    %160 = vmatmul.mubr.f32.gmra.mrb[0].mxu0 %v93
    %v161 = vpop.f32.mrb[0].mxu0
    %v162 = vadd.f32 0.0, %v161
    %v163 = vpop.f32.mrb[0].mxu0
    %164 = vdwg.mxu0
    %v171 = vrot.slane %v48, 7
    %v172 = vsel %vm78, %v171, %v47
    %v173 = vrot.slane %v49, 6
    %v174 = vsel %vm81, %v173, %v172
    %v175 = vrot.slane %v50, 5
    %v176 = vsel %vm84, %v175, %v174
    %v177 = vrot.slane %v51, 4
    %v178 = vsel %vm87, %v177, %v176
    %v179 = vrot.slane %v52, 3
    %v180 = vsel %vm90, %v179, %v178
    %vm181 = vcmask 130048
    %v182 = vsel %vm181, %v180, 0
    %184 = vmatprep.subr.mxu0 0.0
    %185 = vmatpush1.msra.mxu0 %v67
    %186 = vmatprep.subr.mxu0 0.0
    %187 = vmatpush1.msra.mxu0 %v68
    %188 = vmatprep.subr.mxu0 0.0
    %189 = vmatpush1.msra.mxu0 0.0
    %190 = vmatprep.subr.mxu0 0.0
    %191 = vmatpush1.msra.mxu0 0.0
    %192 = vmatprep.subr.mxu0 0.0
    %193 = vmatpush1.msra.mxu0 0.0
    %194 = vmatprep.subr.mxu0 0.0
    %195 = vmatpush1.msra.mxu0 0.0
    %196 = vmatprep.subr.mxu0 0.0
    %197 = vmatpush1.msra.mxu0 0.0
    %198 = vmatprep.subr.mxu0 0.0
    %199 = vmatpush1.msra.mxu0 0.0
    %200 = vmatprep.subr.mxu0 0.0
    %201 = vmatpush1.msra.mxu0 0.0
    %202 = vmatprep.subr.mxu0 0.0
    %203 = vmatpush1.msra.mxu0 0.0
    %204 = vmatprep.subr.mxu0 0.0
    %205 = vmatpush1.msra.mxu0 0.0
    %206 = vmatprep.subr.mxu0 0.0
    %207 = vmatpush1.msra.mxu0 0.0
    %208 = vmatprep.subr.mxu0 0.0
    %209 = vmatpush1.msra.mxu0 0.0
    %210 = vmatprep.subr.mxu0 0.0
    %211 = vmatpush1.msra.mxu0 0.0
    %212 = vmatprep.subr.mxu0 0.0
    %213 = vmatpush1.msra.mxu0 0.0
    %214 = vmatprep.subr.mxu0 0.0
    %215 = vmatpush1.msra.mxu0 0.0
    %216 = vmatprep.subr.mxu0 0.0
    %217 = vmatpush1.msra.mxu0 0.0
    %218 = vmatprep.subr.mxu0 0.0
    %219 = vmatpush1.msra.mxu0 0.0
    %220 = vmatprep.subr.mxu0 0.0
    %221 = vmatpush1.msra.mxu0 0.0
    %222 = vmatprep.subr.mxu0 0.0
    %223 = vmatpush1.msra.mxu0 0.0
    %224 = vmatprep.subr.mxu0 0.0
    %225 = vmatpush1.msra.mxu0 0.0
    %226 = vmatprep.subr.mxu0 0.0
    %227 = vmatpush1.msra.mxu0 0.0
    %228 = vmatprep.subr.mxu0 0.0
    %229 = vmatpush1.msra.mxu0 0.0
    %230 = vmatprep.subr.mxu0 0.0
    %231 = vmatpush1.msra.mxu0 0.0
    %232 = vmatprep.subr.mxu0 0.0
    %233 = vmatpush1.msra.mxu0 0.0
    %234 = vmatprep.subr.mxu0 0.0
    %235 = vmatpush1.msra.mxu0 0.0
    %236 = vmatprep.subr.mxu0 0.0
    %237 = vmatpush1.msra.mxu0 0.0
    %238 = vmatprep.subr.mxu0 0.0
    %239 = vmatpush1.msra.mxu0 0.0
    %240 = vmatprep.subr.mxu0 0.0
    %241 = vmatpush1.msra.mxu0 0.0
    %242 = vmatprep.subr.mxu0 0.0
    %243 = vmatpush1.msra.mxu0 0.0
    %244 = vmatprep.subr.mxu0 0.0
    %245 = vmatpush1.msra.mxu0 0.0
    %246 = vmatprep.subr.mxu0 0.0
    %247 = vmatpush1.msra.mxu0 0.0
    %248 = vmatprep.mubr.f32.mxu0 0.0
    %249 = vmatmul.mubr.f32.gmra.mrb[0].mxu0 %v182
    %v250 = vpop.f32.mrb[0].mxu0
    %v251 = vadd.f32 0.0, %v250
    %v252 = vpop.f32.mrb[0].mxu0
    %253 = vdwg.mxu0
    %v260 = vrot.slane %v54, 7
    %v261 = vsel %vm78, %v260, %v53
    %v262 = vrot.slane %v55, 6
    %v263 = vsel %vm81, %v262, %v261
    %v264 = vrot.slane %v56, 5
    %v265 = vsel %vm84, %v264, %v263
    %v266 = vrot.slane %v57, 4
    %v267 = vsel %vm87, %v266, %v265
    %v268 = vrot.slane %v58, 3
    %v269 = vsel %vm90, %v268, %v267
    %v270 = vsel %vm181, %v269, 0
    %272 = vmatprep.subr.mxu0 0.0
    %273 = vmatpush1.msra.mxu0 %v69
    %274 = vmatprep.subr.mxu0 0.0
    %275 = vmatpush1.msra.mxu0 %v70
    %276 = vmatprep.subr.mxu0 0.0
    %277 = vmatpush1.msra.mxu0 0.0
    %278 = vmatprep.subr.mxu0 0.0
    %279 = vmatpush1.msra.mxu0 0.0
    %280 = vmatprep.subr.mxu0 0.0
    %281 = vmatpush1.msra.mxu0 0.0
    %282 = vmatprep.subr.mxu0 0.0
    %283 = vmatpush1.msra.mxu0 0.0
    %284 = vmatprep.subr.mxu0 0.0
    %285 = vmatpush1.msra.mxu0 0.0
    %286 = vmatprep.subr.mxu0 0.0
    %287 = vmatpush1.msra.mxu0 0.0
    %288 = vmatprep.subr.mxu0 0.0
    %289 = vmatpush1.msra.mxu0 0.0
    %290 = vmatprep.subr.mxu0 0.0
    %291 = vmatpush1.msra.mxu0 0.0
    %292 = vmatprep.subr.mxu0 0.0
    %293 = vmatpush1.msra.mxu0 0.0
    %294 = vmatprep.subr.mxu0 0.0
    %295 = vmatpush1.msra.mxu0 0.0
    %296 = vmatprep.subr.mxu0 0.0
    %297 = vmatpush1.msra.mxu0 0.0
    %298 = vmatprep.subr.mxu0 0.0
    %299 = vmatpush1.msra.mxu0 0.0
    %300 = vmatprep.subr.mxu0 0.0
    %301 = vmatpush1.msra.mxu0 0.0
    %302 = vmatprep.subr.mxu0 0.0
    %303 = vmatpush1.msra.mxu0 0.0
    %304 = vmatprep.subr.mxu0 0.0
    %305 = vmatpush1.msra.mxu0 0.0
    %306 = vmatprep.subr.mxu0 0.0
    %307 = vmatpush1.msra.mxu0 0.0
    %308 = vmatprep.subr.mxu0 0.0
    %309 = vmatpush1.msra.mxu0 0.0
    %310 = vmatprep.subr.mxu0 0.0
    %311 = vmatpush1.msra.mxu0 0.0
    %312 = vmatprep.subr.mxu0 0.0
    %313 = vmatpush1.msra.mxu0 0.0
    %314 = vmatprep.subr.mxu0 0.0
    %315 = vmatpush1.msra.mxu0 0.0
    %316 = vmatprep.subr.mxu0 0.0
    %317 = vmatpush1.msra.mxu0 0.0
    %318 = vmatprep.subr.mxu0 0.0
    %319 = vmatpush1.msra.mxu0 0.0
    %320 = vmatprep.subr.mxu0 0.0
    %321 = vmatpush1.msra.mxu0 0.0
    %322 = vmatprep.subr.mxu0 0.0
    %323 = vmatpush1.msra.mxu0 0.0
    %324 = vmatprep.subr.mxu0 0.0
    %325 = vmatpush1.msra.mxu0 0.0
    %326 = vmatprep.subr.mxu0 0.0
    %327 = vmatpush1.msra.mxu0 0.0
    %328 = vmatprep.subr.mxu0 0.0
    %329 = vmatpush1.msra.mxu0 0.0
    %330 = vmatprep.subr.mxu0 0.0
    %331 = vmatpush1.msra.mxu0 0.0
    %332 = vmatprep.subr.mxu0 0.0
    %333 = vmatpush1.msra.mxu0 0.0
    %334 = vmatprep.subr.mxu0 0.0
    %335 = vmatpush1.msra.mxu0 0.0
    %336 = vmatprep.mubr.f32.mxu0 0.0
    %337 = vmatmul.mubr.f32.gmra.mrb[0].mxu0 %v270
    %v338 = vpop.f32.mrb[0].mxu0
    %v339 = vadd.f32 0.0, %v338
    %v340 = vpop.f32.mrb[0].mxu0
    %341 = vdwg.mxu0
    %v342 = vadd.f32 %v162, %v251
    %344 = vrot.lane.b32.xlu0 %v339, 1
    %v345 = vpop.permute.xlu0 %344
    %v347 = vadd.f32 %v162, %v345
    %v348 = vrot.slane %v41, 1
    %v349 = vsel %vm78, %v42, %v348
    %v350 = vrot.slane %v43, 7
    %v351 = vsel %vm81, %v350, %v349
    %v352 = vrot.slane %v44, 6
    %v353 = vsel %vm84, %v352, %v351
    %v354 = vrot.slane %v45, 5
    %v355 = vsel %vm87, %v354, %v353
    %v356 = vrot.slane %v46, 4
    %v357 = vsel %vm90, %v356, %v355
    %v358 = vsel %vm92, %v357, 0
    %360 = vmatprep.subr.mxu0 0.0
    %361 = vmatpush1.msra.mxu0 %v59
    %362 = vmatprep.subr.mxu0 0.0
    %363 = vmatpush1.msra.mxu0 %v60
    %364 = vmatprep.subr.mxu0 0.0
    %365 = vmatpush1.msra.mxu0 %v61
    %366 = vmatprep.subr.mxu0 0.0
    %367 = vmatpush1.msra.mxu0 %v62
    %368 = vmatprep.subr.mxu0 0.0
    %369 = vmatpush1.msra.mxu0 %v63
    %370 = vmatprep.subr.mxu0 0.0
    %371 = vmatpush1.msra.mxu0 %v64
    %372 = vmatprep.subr.mxu0 0.0
    %373 = vmatpush1.msra.mxu0 %v65
    %374 = vmatprep.subr.mxu0 0.0
    %375 = vmatpush1.msra.mxu0 %v66
    %376 = vmatprep.subr.mxu0 0.0
    %377 = vmatpush1.msra.mxu0 0.0
    %378 = vmatprep.subr.mxu0 0.0
    %379 = vmatpush1.msra.mxu0 0.0
    %380 = vmatprep.subr.mxu0 0.0
    %381 = vmatpush1.msra.mxu0 0.0
    %382 = vmatprep.subr.mxu0 0.0
    %383 = vmatpush1.msra.mxu0 0.0
    %384 = vmatprep.subr.mxu0 0.0
    %385 = vmatpush1.msra.mxu0 0.0
    %386 = vmatprep.subr.mxu0 0.0
    %387 = vmatpush1.msra.mxu0 0.0
    %388 = vmatprep.subr.mxu0 0.0
    %389 = vmatpush1.msra.mxu0 0.0
    %390 = vmatprep.subr.mxu0 0.0
    %391 = vmatpush1.msra.mxu0 0.0
    %392 = vmatprep.subr.mxu0 0.0
    %393 = vmatpush1.msra.mxu0 0.0
    %394 = vmatprep.subr.mxu0 0.0
    %395 = vmatpush1.msra.mxu0 0.0
    %396 = vmatprep.subr.mxu0 0.0
    %397 = vmatpush1.msra.mxu0 0.0
    %398 = vmatprep.subr.mxu0 0.0
    %399 = vmatpush1.msra.mxu0 0.0
    %400 = vmatprep.subr.mxu0 0.0
    %401 = vmatpush1.msra.mxu0 0.0
    %402 = vmatprep.subr.mxu0 0.0
    %403 = vmatpush1.msra.mxu0 0.0
    %404 = vmatprep.subr.mxu0 0.0
    %405 = vmatpush1.msra.mxu0 0.0
    %406 = vmatprep.subr.mxu0 0.0
    %407 = vmatpush1.msra.mxu0 0.0
    %408 = vmatprep.subr.mxu0 0.0
    %409 = vmatpush1.msra.mxu0 0.0
    %410 = vmatprep.subr.mxu0 0.0
    %411 = vmatpush1.msra.mxu0 0.0
    %412 = vmatprep.subr.mxu0 0.0
    %413 = vmatpush1.msra.mxu0 0.0
    %414 = vmatprep.subr.mxu0 0.0
    %415 = vmatpush1.msra.mxu0 0.0
    %416 = vmatprep.subr.mxu0 0.0
    %417 = vmatpush1.msra.mxu0 0.0
    %418 = vmatprep.subr.mxu0 0.0
    %419 = vmatpush1.msra.mxu0 0.0
    %420 = vmatprep.subr.mxu0 0.0
    %421 = vmatpush1.msra.mxu0 0.0
    %422 = vmatprep.subr.mxu0 0.0
    %423 = vmatpush1.msra.mxu0 0.0
    %424 = vmatprep.mubr.f32.mxu0 0.0
    %425 = vmatmul.mubr.f32.gmra.mrb[0].mxu0 %v358
    %v426 = vpop.f32.mrb[0].mxu0
    %v427 = vadd.f32 0.0, %v426
    %v428 = vpop.f32.mrb[0].mxu0
    %429 = vdwg.mxu0
    %v430 = vrot.slane %v47, 1
    %v431 = vsel %vm78, %v48, %v430
    %v432 = vrot.slane %v49, 7
    %v433 = vsel %vm81, %v432, %v431
    %v434 = vrot.slane %v50, 6
    %v435 = vsel %vm84, %v434, %v433
    %v436 = vrot.slane %v51, 5
    %v437 = vsel %vm87, %v436, %v435
    %v438 = vrot.slane %v52, 4
    %v439 = vsel %vm90, %v438, %v437
    %v440 = vsel %vm181, %v439, 0
    %442 = vmatprep.subr.mxu0 0.0
    %443 = vmatpush1.msra.mxu0 %v67
    %444 = vmatprep.subr.mxu0 0.0
    %445 = vmatpush1.msra.mxu0 %v68
    %446 = vmatprep.subr.mxu0 0.0
    %447 = vmatpush1.msra.mxu0 0.0
    %448 = vmatprep.subr.mxu0 0.0
    %449 = vmatpush1.msra.mxu0 0.0
    %450 = vmatprep.subr.mxu0 0.0
    %451 = vmatpush1.msra.mxu0 0.0
    %452 = vmatprep.subr.mxu0 0.0
    %453 = vmatpush1.msra.mxu0 0.0
    %454 = vmatprep.subr.mxu0 0.0
    %455 = vmatpush1.msra.mxu0 0.0
    %456 = vmatprep.subr.mxu0 0.0
    %457 = vmatpush1.msra.mxu0 0.0
    %458 = vmatprep.subr.mxu0 0.0
    %459 = vmatpush1.msra.mxu0 0.0
    %460 = vmatprep.subr.mxu0 0.0
    %461 = vmatpush1.msra.mxu0 0.0
    %462 = vmatprep.subr.mxu0 0.0
    %463 = vmatpush1.msra.mxu0 0.0
    %464 = vmatprep.subr.mxu0 0.0
    %465 = vmatpush1.msra.mxu0 0.0
    %466 = vmatprep.subr.mxu0 0.0
    %467 = vmatpush1.msra.mxu0 0.0
    %468 = vmatprep.subr.mxu0 0.0
    %469 = vmatpush1.msra.mxu0 0.0
    %470 = vmatprep.subr.mxu0 0.0
    %471 = vmatpush1.msra.mxu0 0.0
    %472 = vmatprep.subr.mxu0 0.0
    %473 = vmatpush1.msra.mxu0 0.0
    %474 = vmatprep.subr.mxu0 0.0
    %475 = vmatpush1.msra.mxu0 0.0
    %476 = vmatprep.subr.mxu0 0.0
    %477 = vmatpush1.msra.mxu0 0.0
    %478 = vmatprep.subr.mxu0 0.0
    %479 = vmatpush1.msra.mxu0 0.0
    %480 = vmatprep.subr.mxu0 0.0
    %481 = vmatpush1.msra.mxu0 0.0
    %482 = vmatprep.subr.mxu0 0.0
    %483 = vmatpush1.msra.mxu0 0.0
    %484 = vmatprep.subr.mxu0 0.0
    %485 = vmatpush1.msra.mxu0 0.0
    %486 = vmatprep.subr.mxu0 0.0
    %487 = vmatpush1.msra.mxu0 0.0
    %488 = vmatprep.subr.mxu0 0.0
    %489 = vmatpush1.msra.mxu0 0.0
    %490 = vmatprep.subr.mxu0 0.0
    %491 = vmatpush1.msra.mxu0 0.0
    %492 = vmatprep.subr.mxu0 0.0
    %493 = vmatpush1.msra.mxu0 0.0
    %494 = vmatprep.subr.mxu0 0.0
    %495 = vmatpush1.msra.mxu0 0.0
    %496 = vmatprep.subr.mxu0 0.0
    %497 = vmatpush1.msra.mxu0 0.0
    %498 = vmatprep.subr.mxu0 0.0
    %499 = vmatpush1.msra.mxu0 0.0
    %500 = vmatprep.subr.mxu0 0.0
    %501 = vmatpush1.msra.mxu0 0.0
    %502 = vmatprep.subr.mxu0 0.0
    %503 = vmatpush1.msra.mxu0 0.0
    %504 = vmatprep.subr.mxu0 0.0
    %505 = vmatpush1.msra.mxu0 0.0
    %506 = vmatprep.mubr.f32.mxu0 0.0
    %507 = vmatmul.mubr.f32.gmra.mrb[0].mxu0 %v440
    %v508 = vpop.f32.mrb[0].mxu0
    %v509 = vadd.f32 0.0, %v508
    %v510 = vpop.f32.mrb[0].mxu0
    %511 = vdwg.mxu0
    %v512 = vrot.slane %v53, 1
    %v513 = vsel %vm78, %v54, %v512
    %v514 = vrot.slane %v55, 7
    %v515 = vsel %vm81, %v514, %v513
    %v516 = vrot.slane %v56, 6
    %v517 = vsel %vm84, %v516, %v515
    %v518 = vrot.slane %v57, 5
    %v519 = vsel %vm87, %v518, %v517
    %v520 = vrot.slane %v58, 4
    %v521 = vsel %vm90, %v520, %v519
    %v522 = vsel %vm181, %v521, 0
    %524 = vmatprep.subr.mxu0 0.0
    %525 = vmatpush1.msra.mxu0 %v69
    %526 = vmatprep.subr.mxu0 0.0
    %527 = vmatpush1.msra.mxu0 %v70
    %528 = vmatprep.subr.mxu0 0.0
    %529 = vmatpush1.msra.mxu0 0.0
    %530 = vmatprep.subr.mxu0 0.0
    %531 = vmatpush1.msra.mxu0 0.0
    %532 = vmatprep.subr.mxu0 0.0
    %533 = vmatpush1.msra.mxu0 0.0
    %534 = vmatprep.subr.mxu0 0.0
    %535 = vmatpush1.msra.mxu0 0.0
    %536 = vmatprep.subr.mxu0 0.0
    %537 = vmatpush1.msra.mxu0 0.0
    %538 = vmatprep.subr.mxu0 0.0
    %539 = vmatpush1.msra.mxu0 0.0
    %540 = vmatprep.subr.mxu0 0.0
    %541 = vmatpush1.msra.mxu0 0.0
    %542 = vmatprep.subr.mxu0 0.0
    %543 = vmatpush1.msra.mxu0 0.0
    %544 = vmatprep.subr.mxu0 0.0
    %545 = vmatpush1.msra.mxu0 0.0
    %546 = vmatprep.subr.mxu0 0.0
    %547 = vmatpush1.msra.mxu0 0.0
    %548 = vmatprep.subr.mxu0 0.0
    %549 = vmatpush1.msra.mxu0 0.0
    %550 = vmatprep.subr.mxu0 0.0
    %551 = vmatpush1.msra.mxu0 0.0
    %552 = vmatprep.subr.mxu0 0.0
    %553 = vmatpush1.msra.mxu0 0.0
    %554 = vmatprep.subr.mxu0 0.0
    %555 = vmatpush1.msra.mxu0 0.0
    %556 = vmatprep.subr.mxu0 0.0
    %557 = vmatpush1.msra.mxu0 0.0
    %558 = vmatprep.subr.mxu0 0.0
    %559 = vmatpush1.msra.mxu0 0.0
    %560 = vmatprep.subr.mxu0 0.0
    %561 = vmatpush1.msra.mxu0 0.0
    %562 = vmatprep.subr.mxu0 0.0
    %563 = vmatpush1.msra.mxu0 0.0
    %564 = vmatprep.subr.mxu0 0.0
    %565 = vmatpush1.msra.mxu0 0.0
    %566 = vmatprep.subr.mxu0 0.0
    %567 = vmatpush1.msra.mxu0 0.0
    %568 = vmatprep.subr.mxu0 0.0
    %569 = vmatpush1.msra.mxu0 0.0
    %570 = vmatprep.subr.mxu0 0.0
    %571 = vmatpush1.msra.mxu0 0.0
    %572 = vmatprep.subr.mxu0 0.0
    %573 = vmatpush1.msra.mxu0 0.0
    %574 = vmatprep.subr.mxu0 0.0
    %575 = vmatpush1.msra.mxu0 0.0
    %576 = vmatprep.subr.mxu0 0.0
    %577 = vmatpush1.msra.mxu0 0.0
    %578 = vmatprep.subr.mxu0 0.0
    %579 = vmatpush1.msra.mxu0 0.0
    %580 = vmatprep.subr.mxu0 0.0
    %581 = vmatpush1.msra.mxu0 0.0
    %582 = vmatprep.subr.mxu0 0.0
    %583 = vmatpush1.msra.mxu0 0.0
    %584 = vmatprep.subr.mxu0 0.0
    %585 = vmatpush1.msra.mxu0 0.0
    %586 = vmatprep.subr.mxu0 0.0
    %587 = vmatpush1.msra.mxu0 0.0
    %588 = vmatprep.mubr.f32.mxu0 0.0
    %589 = vmatmul.mubr.f32.gmra.mrb[0].mxu0 %v522
    %v590 = vpop.f32.mrb[0].mxu0
    %v591 = vadd.f32 0.0, %v590
    %v592 = vpop.f32.mrb[0].mxu0
    %593 = vdwg.mxu0
    %v594 = vadd.f32 %v427, %v509
    %596 = vrot.lane.b32.xlu0 %v591, 1
    %v597 = vpop.permute.xlu0 %596
    %v599 = vadd.f32 %v427, %v597
    %601 = vrot.lane.b32.xlu0 %v594, 1
    %v602 = vpop.permute.xlu0 %601
    %vm604 = vcmask 7168
    %v605 = vsel %vm604, %v342, %v602
    %s606 = sld [smem:[#allocation2]]
    %v607 = vstv %s606
    %v608 = vadd.f32 %v605, %v607
    %610 = vrot.lane.b32.xlu0 %v347, 127
    %v611 = vpop.permute.xlu0 %610
    %v613 = vsel %vm604, %v611, %v599
    %s614 = sld [smem:[#allocation2 + $0x1]]
    %v615 = vstv %s614
    %v616 = vadd.f32 %v613, %v615
    %vm617 = vcmask 13312
    %v618 = vsel %vm617, %v608, -inf
    %619 = vmax.xlane.f32.xlu0 %v618
    %v620 = vpop.xlane.xlu0 %619
    %v621 = vsub.f32 %v608, %v620
    %v622 = vmul.f32 %v621, 1.442695
    %v623 = vpow.pop %v622
    %v624 = vsel %vm617, %v623, 0.0
    %625 = vadd.xlane.f32.xlu0 %v624
    %v626 = vpop.xlane.xlu0 %625
    %v627 = vrcp.pop %v626
    %v628 = vmul.f32 %v623, %v627
    %629 = vst.msk [vmem:[%s7] sm:$0x3f] %vm617, %v628
    %v630 = vsel %vm617, %v616, -inf
    %631 = vmax.xlane.f32.xlu0 %v630
    %v632 = vpop.xlane.xlu0 %631
    %v633 = vsub.f32 %v616, %v632
    %v634 = vmul.f32 %v633, 1.442695
    %v635 = vpow.pop %v634
    %v636 = vsel %vm617, %v635, 0.0
    %637 = vadd.xlane.f32.xlu0 %v636
    %v638 = vpop.xlane.xlu0 %637
    %v639 = vrcp.pop %v638
    %v640 = vmul.f32 %v635, %v639
    %641 = vst.msk [vmem:[%s8] sm:$0x3f] %vm617, %v640
    // Predicated region
    $region34: #{bidaf_forward.9} parent=1 // pred_check
      _
    $region35: #{bidaf_forward.9} parent=1 // pred_check_branch
      %643 = sbr.rel (0) target = $region37
    $region36: #{bidaf_forward.9} parent=1 // pred_region
      _
    $region37: #{bidaf_forward.9} parent=1 // pred_fallthru
      _
    // Predicated region
    $region38: #{bidaf_forward.9} parent=1 // pred_check
      _
    $region39: #{bidaf_forward.9} parent=1 // pred_check_branch
      %645 = sbr.rel (0) target = $region41
    $region40: #{bidaf_forward.9} parent=1 // pred_region
      _
    $region41: #{bidaf_forward.9} parent=1 // pred_fallthru
      _
    // Predicated region
    $region42: #{bidaf_forward.9} parent=1 // pred_check
      _
    $region43: #{bidaf_forward.9} parent=1 // pred_check_branch
      %647 = sbr.rel (0) target = $region45
    $region44: #{bidaf_forward.9} parent=1 // pred_region
      _
    $region45: #{bidaf_forward.9} parent=1 // pred_fallthru
      _
    // Predicated region
    $region46: #{bidaf_forward.9} parent=1 // pred_check
      _
    $region47: #{bidaf_forward.9} parent=1 // pred_check_branch
      %649 = sbr.rel (0) target = $region49
    $region48: #{bidaf_forward.9} parent=1 // pred_region
      _
    $region49: #{bidaf_forward.9} parent=1 // pred_fallthru
      _
    %650 = vsyncpa [#allocation3], 1

</llo_original>
